<compile_context>
chip_gen: v6e
topology: v6e:2x2x1
jax: 0.10.0
libtpu: 0.0.40
codegen_flags: <defaults>
</compile_context>

<pallas_src>
import functools
import math

import jax
import jax.numpy as jnp
from jax import lax
from jax.experimental import pallas as pl
from jax.experimental.pallas import tpu as pltpu


def _round_up(x, m):
    return ((x + m - 1) // m) * m


# ---------------------------------------------------------------------------
# Kernel
# ---------------------------------------------------------------------------
def _frame_attn_kernel(x_full_ref, wq_ref, wk_ref, wv_ref, wproj_ref,
                       o_ref, k_sc, v_sc, *,
                       num_heads, tq, hw_real, attn_balance, approx_recip):
    # x_full_ref: (1, HW_pad, C)  whole (padded) frame, token layout
    # wq/wk/wv  : (C, C)          pre-normalized, pre-transposed (in, out)
    # wproj_ref : (C, C)          pre-normalized, pre-transposed (in, out)
    # o_ref     : (1, TQ, C)
    # k_sc/v_sc : (HW_pad, C)     per-frame K/V scratch (compute dtype)
    C = x_full_ref.shape[-1]
    hw_pad = x_full_ref.shape[1]
    hd = C // num_heads
    cdt = wq_ref.dtype                       # compute dtype for MXU operands
    qt = pl.program_id(1)

    # --- K/V for the whole frame: computed once per frame (first query tile).
    #     Separate K / V matmuls -> no (HW, 2C) intermediate, no lane slicing.
    @pl.when(qt == 0)
    def _():
        xf = x_full_ref[0].astype(cdt)                                 # (HW, C)
        k_sc[...] = jnp.dot(xf, wk_ref[...],
                            preferred_element_type=jnp.float32).astype(cdt)
        v_sc[...] = jnp.dot(xf, wv_ref[...],
                            preferred_element_type=jnp.float32).astype(cdt)

    # --- Query tile (also the residual), sliced from the resident frame.
    q_start = pl.multiple_of(qt * tq, 8)
    x_res = x_full_ref[0, pl.ds(q_start, tq), :].astype(jnp.float32)   # (TQ, C)

    scale = 1.0 / math.sqrt(hd)
    q = jnp.dot(x_res.astype(cdt), wq_ref[...],
                preferred_element_type=jnp.float32)                    # (TQ, C)
    q = (q * scale).astype(cdt)

    # --- Key-padding mask (trace-time no-op when the frame was not padded).
    if hw_real != hw_pad:
        col = lax.broadcasted_iota(jnp.int32, (tq, hw_pad), 1)
        key_valid = col < hw_real
    else:
        key_valid = None

    # --- Per-head attention with deferred softmax normalization; the output
    #     projection is folded per head into a full-width f32 accumulator.
    acc = jnp.zeros((tq, C), jnp.float32)
    for m in range(num_heads):
        sl = slice(m * hd, (m + 1) * hd)
        # QK^T without an explicit transpose: contract last dims of both.
        s = lax.dot_general(q[:, sl], k_sc[:, sl], (((1,), (1,)), ((), ())),
                            preferred_element_type=jnp.float32)        # (TQ, HW)
        if key_valid is not None:
            s = jnp.where(key_valid, s, jnp.float32(-1e30))
        s = s - jnp.max(s, axis=-1, keepdims=True)
        p = jnp.exp(s)
        l = jnp.sum(p, axis=-1, keepdims=True)                         # (TQ, 1)
        oh = jnp.dot(p.astype(cdt), v_sc[:, sl],
                     preferred_element_type=jnp.float32)               # (TQ, hd)
        # normalize AFTER the PV matmul (HW*hd divides instead of HW*HW).
        oh = oh * pl.reciprocal(l, approx=approx_recip)
        # fold the 1x1 proj: sublane-aligned (hd, C) weight slice, full-width
        # accumulation -> no lane-masked scratch stores.
        acc = acc + jnp.dot(oh.astype(cdt), wproj_ref[sl, :],
                            preferred_element_type=jnp.float32)        # (TQ, C)

    # --- mp_sum(x, y, t) = lerp(x, y, t) / sqrt((1-t)^2 + t^2)
    t = attn_balance
    inv_norm = 1.0 / math.sqrt((1.0 - t) ** 2 + t ** 2)
    o_ref[0] = (((1.0 - t) * x_res + t * acc) * inv_norm).astype(o_ref.dtype)


# ---------------------------------------------------------------------------
# Generation-aware sizing helpers
# ---------------------------------------------------------------------------
def _vmem_capacity_bytes():
    cap = 128 * 1024 * 1024
    try:
        info = pltpu.get_tpu_info()
        cap = int(getattr(info, "vmem_capacity_bytes", cap))
    except Exception:
        pass
    return cap


def _pick_query_tile(hw, c, x_bytes, cdt_bytes, budget, frame_buffers):
    """Largest query tile whose working set fits the per-generation budget."""
    hw8 = _round_up(max(hw, 8), 8)
    for cand in (512, 384, 256, 128, 64, 32, 16, 8):
        tq = min(cand, hw8)
        hw_pad = _round_up(hw8, tq)
        est = (frame_buffers * hw_pad * c * x_bytes     # frame block(s)
               + 4 * c * c * cdt_bytes                  # weights (single-buffered)
               + 2 * hw_pad * c * cdt_bytes             # K/V scratch
               + 2 * tq * c * x_bytes                   # double-buffered out tile
               + 2 * tq * hw_pad * 4                    # f32 score / exp temps
               + 4 * tq * c * 4                         # q / acc / x_res f32
               + hw_pad * c * 4)                        # transient f32 K/V result
        if est <= budget:
            return tq, hw_pad
    tq = min(8, hw8)
    return tq, _round_up(hw8, tq)


# ---------------------------------------------------------------------------
# Wrapper
# ---------------------------------------------------------------------------
def frame_attention(x_nchw, w_qkv, w_proj, *, num_heads, attn_balance=0.3,
                    batch_size=None, compute_dtype=jnp.bfloat16, eps=1e-4):
    """Pallas implementation of FrameAttention.forward (eval mode, no cache)."""
    del batch_size  # unused by this attention path (matches the reference)
    if num_heads == 0:
        return x_nchw

    B, C, H, W = x_nchw.shape
    assert C % num_heads == 0, "channels must be divisible by num_heads"
    HW = H * W

    x_bytes = jnp.dtype(x_nchw.dtype).itemsize
    cdt_bytes = jnp.dtype(compute_dtype).itemsize

    cap = _vmem_capacity_bytes()
    budget = max(int(cap * 0.75), 16 * 1024 * 1024)
    # v7x (64 MiB/TC): single-buffer the frame block too; v5e/v6e keep 2 bufs.
    single_buffer_frame = cap <= 64 * 1024 * 1024
    frame_buffers = 1 if single_buffer_frame else 2

    TQ, HW_pad = _pick_query_tile(HW, C, x_bytes, cdt_bytes, budget,
                                  frame_buffers)
    n_qt = HW_pad // TQ

    # NCHW -> (B, HW, C) token layout (channels last / lane-dense); zero-pad
    # the token axis so the query-tile grid divides evenly.
    x_tok = jnp.transpose(x_nchw, (0, 2, 3, 1)).reshape(B, HW, C)
    if HW_pad != HW:
        x_tok = jnp.pad(x_tok, ((0, 0), (0, HW_pad - HW), (0, 0)))

    # --- MPConv forced weight norm (eval path), hoisted out of the kernel.
    # effective w = w / (sqrt(fan_in)*eps + ||w_row||); pre-transpose so the
    # kernel does plain x @ w (no per-step XLU reduction / transpose).
    def eff_t(w):
        w2 = w.reshape(w.shape[0], -1).astype(jnp.float32)             # (out, in)
        n = jnp.sqrt(jnp.sum(w2 * w2, axis=1, keepdims=True))
        w_eff = w2 / (jnp.sqrt(jnp.float32(w2.shape[1])) * eps + n)
        return w_eff.T                                                 # (in, out)

    wqkv_t = eff_t(w_qkv)                                              # (C, 3C)
    wq_t = wqkv_t[:, :C].astype(compute_dtype)                         # (C, C)
    wk_t = wqkv_t[:, C:2 * C].astype(compute_dtype)                    # (C, C)
    wv_t = wqkv_t[:, 2 * C:].astype(compute_dtype)                     # (C, C)
    wproj_t = eff_t(w_proj).astype(compute_dtype)                      # (C, C)

    kernel = functools.partial(
        _frame_attn_kernel,
        num_heads=num_heads, tq=TQ, hw_real=HW,
        attn_balance=float(attn_balance),
        approx_recip=(compute_dtype == jnp.bfloat16))

    flops = B * (2 * HW_pad * C * 3 * C            # qkv projection
                 + 4 * HW_pad * HW_pad * C         # QK^T + PV
                 + 2 * HW_pad * C * C)             # output projection
    cost = pl.CostEstimate(
        flops=flops,
        transcendentals=B * HW_pad * HW_pad,
        bytes_accessed=2 * B * HW_pad * C * x_bytes + 4 * C * C * cdt_bytes)

    def build(use_buffered):
        def spec(shape, imap, single):
            if use_buffered and single and hasattr(pl, "Buffered"):
                try:
                    return pl.BlockSpec(shape, imap,
                                        pipeline_mode=pl.Buffered(1))
                except TypeError:
                    pass
            return pl.BlockSpec(shape, imap)

        grid_spec = pltpu.PrefetchScalarGridSpec(
            num_scalar_prefetch=0,
            grid=(B, n_qt),
            in_specs=[
                # full frame (constant over qt -> fetched once per frame)
                spec((1, HW_pad, C), lambda b, qt: (b, 0, 0),
                     single_buffer_frame),
                # grid-invariant weights (single-buffered)
                spec((C, C), lambda b, qt: (0, 0), True),   # wq
                spec((C, C), lambda b, qt: (0, 0), True),   # wk
                spec((C, C), lambda b, qt: (0, 0), True),   # wv
                spec((C, C), lambda b, qt: (0, 0), True),   # wproj
            ],
            out_specs=pl.BlockSpec((1, TQ, C), lambda b, qt: (b, qt, 0)),
            scratch_shapes=[
                pltpu.VMEM((HW_pad, C), compute_dtype),   # K (whole frame)
                pltpu.VMEM((HW_pad, C), compute_dtype),   # V (whole frame)
            ])
        return pl.pallas_call(
            kernel,
            out_shape=jax.ShapeDtypeStruct((B, HW_pad, C), x_tok.dtype),
            grid_spec=grid_spec,
            compiler_params=pltpu.CompilerParams(
                dimension_semantics=("parallel", "arbitrary"),
                vmem_limit_bytes=budget),
            cost_estimate=cost,
        )

    try:
        out_tok = build(True)(x_tok, wq_t, wk_t, wv_t, wproj_t)
    except Exception:
        # Graceful fallback if this JAX build rejects pipeline_mode=Buffered(1).
        out_tok = build(False)(x_tok, wq_t, wk_t, wv_t, wproj_t)

    out_tok = out_tok[:, :HW, :]
    # (B, HW, C) -> NCHW
    return jnp.transpose(out_tok.reshape(B, H, W, C), (0, 3, 1, 2))


# ---------------------------------------------------------------------------
# Pure-JAX reference (mirrors the PyTorch module, eval mode)
# ---------------------------------------------------------------------------
def _reference(x_nchw, w_qkv, w_proj, *, num_heads, attn_balance=0.3, eps=1e-4):
    B, C, H, W = x_nchw.shape
    HW = H * W
    hd = C // num_heads

    def eff(w):
        w2 = w.reshape(w.shape[0], -1).astype(jnp.float32)
        n = jnp.sqrt(jnp.sum(w2 * w2, axis=1, keepdims=True))
        return w2 / (jnp.sqrt(jnp.float32(w2.shape[1])) * eps + n)

    wq = eff(w_qkv)      # (3C, C)
    wp = eff(w_proj)     # (C, C)

    x_tok = jnp.transpose(x_nchw, (0, 2, 3, 1)).reshape(B, HW, C)
    qkv = x_tok @ wq.T                                        # (B, HW, 3C)
    qkv = qkv.reshape(B, HW, 3, num_heads, hd)                # (s, m, c) order
    q = jnp.transpose(qkv[:, :, 0], (0, 2, 1, 3))             # (B, m, HW, hd)
    k = jnp.transpose(qkv[:, :, 1], (0, 2, 1, 3))
    v = jnp.transpose(qkv[:, :, 2], (0, 2, 1, 3))
    s = jnp.einsum('bmqd,bmkd->bmqk', q, k) / jnp.sqrt(jnp.float32(hd))
    p = jax.nn.softmax(s, axis=-1)
    y = jnp.einsum('bmqk,bmkd->bmqd', p, v)                   # (B, m, HW, hd)
    y = jnp.transpose(y, (0, 2, 1, 3)).reshape(B, HW, C)      # (m c) channels
    y = y @ wp.T
    t = attn_balance
    out = ((1.0 - t) * x_tok + t * y) / jnp.sqrt((1.0 - t) ** 2 + t ** 2)
    return jnp.transpose(out.reshape(B, H, W, C), (0, 3, 1, 2))


if __name__ == "__main__":
    # Small shapes consistent with the module: bt=2 frames, channels=32,
    # num_heads=4 (head_dim=8), spatial 8x8.
    BT, C, H, W = 2, 32, 8, 8
    NUM_HEADS = 4
    ATTN_BALANCE = 0.3

    key = jax.random.PRNGKey(0)
    kx, kq, kp = jax.random.split(key, 3)
    x = jax.random.normal(kx, (BT, C, H, W), dtype=jnp.float32)
    # MPConv weights: torch.randn(out_channels, in_channels, 1, 1)
    w_qkv = jax.random.normal(kq, (3 * C, C, 1, 1), dtype=jnp.float32)
    w_proj = jax.random.normal(kp, (C, C, 1, 1), dtype=jnp.float32)

    ref = _reference(x, w_qkv, w_proj,
                     num_heads=NUM_HEADS, attn_balance=ATTN_BALANCE)

    # Strict correctness check: f32 MXU operands (same algorithm as reference).
    out_f32 = frame_attention(x, w_qkv, w_proj,
                              num_heads=NUM_HEADS,
                              attn_balance=ATTN_BALANCE,
                              batch_size=BT,
                              compute_dtype=jnp.float32)
    out_f32 = jax.block_until_ready(out_f32)
    assert out_f32.shape == (BT, C, H, W)
    assert jnp.allclose(out_f32, ref, rtol=1e-3, atol=1e-3), "f32 mismatch"

    # Default fast path: bf16 MXU operands, f32 accumulation / f32 softmax.
    out_bf16 = frame_attention(x, w_qkv, w_proj,
                               num_heads=NUM_HEADS,
                               attn_balance=ATTN_BALANCE,
                               batch_size=BT)
    out_bf16 = jax.block_until_ready(out_bf16)
    assert out_bf16.shape == (BT, C, H, W)
    assert jnp.allclose(out_bf16, ref, rtol=1e-1, atol=1e-1), "bf16 mismatch"

    # TODO(synk): KV-cache / update_cache path of the PyTorch module is a
    # no-op in this forward (returns (out, None)) and is not implemented.
    print("KERNEL_OK")
</pallas_src>

<mosaic_0001>
module attributes {stable_mosaic.version = 11 : i64} {
  func.func @_frame_attn_kernel(%arg0: i32, %arg1: i32, %arg2: memref<1x64x32xf32, #tpu.memory_space<vmem>>, %arg3: memref<32x32xf32, #tpu.memory_space<vmem>>, %arg4: memref<32x32xf32, #tpu.memory_space<vmem>>, %arg5: memref<32x32xf32, #tpu.memory_space<vmem>>, %arg6: memref<32x32xf32, #tpu.memory_space<vmem>>, %arg7: memref<1x64x32xf32, #tpu.memory_space<vmem>>, %arg8: memref<64x32xf32, #tpu.memory_space<vmem>>, %arg9: memref<64x32xf32, #tpu.memory_space<vmem>>) attributes {dimension_semantics = [#tpu.dimension_semantics<parallel>, #tpu.dimension_semantics<arbitrary>], iteration_bounds = array<i64: 2, 1>, scalar_prefetch = 0 : i64, scratch_operands = 2 : i64, tpu.core_type = #tpu.core_type<tc>, window_params = [{transform_indices = @transform_0, window_bounds = array<i64: 1, 64, 32>}, {pipeline_mode = #tpu.pipeline_mode<synchronous>, transform_indices = @transform_1, window_bounds = array<i64: 32, 32>}, {pipeline_mode = #tpu.pipeline_mode<synchronous>, transform_indices = @transform_2, window_bounds = array<i64: 32, 32>}, {pipeline_mode = #tpu.pipeline_mode<synchronous>, transform_indices = @transform_3, window_bounds = array<i64: 32, 32>}, {pipeline_mode = #tpu.pipeline_mode<synchronous>, transform_indices = @transform_4, window_bounds = array<i64: 32, 32>}, {transform_indices = @transform_5, window_bounds = array<i64: 1, 64, 32>}]} {
    %c0_i32 = arith.constant 0 : i32
    %0 = arith.cmpi eq, %arg1, %c0_i32 : i32
    %1 = arith.extui %0 : i1 to i32
    %c0_i32_0 = arith.constant 0 : i32
    %2 = arith.cmpi ne, %1, %c0_i32_0 : i32
    scf.if %2 {
      %c0_53 = arith.constant 0 : index
      %c0_54 = arith.constant 0 : index
      %c0_55 = arith.constant 0 : index
      %95 = vector.load %arg2[%c0_53, %c0_54, %c0_55] : memref<1x64x32xf32, #tpu.memory_space<vmem>>, vector<1x64x32xf32>
      %96 = vector.shape_cast %95 : vector<1x64x32xf32> to vector<64x32xf32>
      %c0_56 = arith.constant 0 : index
      %c0_57 = arith.constant 0 : index
      %97 = vector.load %arg4[%c0_56, %c0_57] : memref<32x32xf32, #tpu.memory_space<vmem>>, vector<32x32xf32>
      %cst_58 = arith.constant dense<0.000000e+00> : vector<64x32xf32>
      %98 = tpu.matmul %96, %97, %cst_58 {dimension_numbers = #tpu.dot_dimension_numbers<[1], [0], [0], [1], [0, 0, 1, 1], [], []>} : vector<64x32xf32>, vector<32x32xf32>, vector<64x32xf32> -> vector<64x32xf32>
      %c0_59 = arith.constant 0 : index
      %c0_60 = arith.constant 0 : index
      %99 = vector.load %arg8[%c0_59, %c0_60] : memref<64x32xf32, #tpu.memory_space<vmem>>, vector<64x32xf32>
      tpu.vector_store %arg8[%c0_59, %c0_60], %98 {strides = array<i32>} : memref<64x32xf32, #tpu.memory_space<vmem>>, vector<64x32xf32>,
      %c0_61 = arith.constant 0 : index
      %c0_62 = arith.constant 0 : index
      %100 = vector.load %arg5[%c0_61, %c0_62] : memref<32x32xf32, #tpu.memory_space<vmem>>, vector<32x32xf32>
      %cst_63 = arith.constant dense<0.000000e+00> : vector<64x32xf32>
      %101 = tpu.matmul %96, %100, %cst_63 {dimension_numbers = #tpu.dot_dimension_numbers<[1], [0], [0], [1], [0, 0, 1, 1], [], []>} : vector<64x32xf32>, vector<32x32xf32>, vector<64x32xf32> -> vector<64x32xf32>
      %c0_64 = arith.constant 0 : index
      %c0_65 = arith.constant 0 : index
      %102 = vector.load %arg9[%c0_64, %c0_65] : memref<64x32xf32, #tpu.memory_space<vmem>>, vector<64x32xf32>
      tpu.vector_store %arg9[%c0_64, %c0_65], %101 {strides = array<i32>} : memref<64x32xf32, #tpu.memory_space<vmem>>, vector<64x32xf32>,
    } else {
    }
    %c64_i32 = arith.constant 64 : i32
    %3 = arith.muli %arg1, %c64_i32 : i32
    %4 = tpu.assume_multiple %3, 8 : i32
    %c0 = arith.constant 0 : index
    %5 = arith.index_cast %4 : i32 to index
    %c0_1 = arith.constant 0 : index
    %6 = vector.load %arg2[%c0, %5, %c0_1] : memref<1x64x32xf32, #tpu.memory_space<vmem>>, vector<1x64x32xf32>
    %7 = vector.shape_cast %6 : vector<1x64x32xf32> to vector<64x32xf32>
    %c0_2 = arith.constant 0 : index
    %c0_3 = arith.constant 0 : index
    %8 = vector.load %arg3[%c0_2, %c0_3] : memref<32x32xf32, #tpu.memory_space<vmem>>, vector<32x32xf32>
    %cst = arith.constant dense<0.000000e+00> : vector<64x32xf32>
    %9 = tpu.matmul %7, %8, %cst {dimension_numbers = #tpu.dot_dimension_numbers<[1], [0], [0], [1], [0, 0, 1, 1], [], []>} : vector<64x32xf32>, vector<32x32xf32>, vector<64x32xf32> -> vector<64x32xf32>
    %cst_4 = arith.constant 0.353553385 : f32
    %10 = vector.broadcast %cst_4 : f32 to vector<64x32xf32>
    %11 = arith.mulf %9, %10 : vector<64x32xf32>
    %cst_5 = arith.constant 0.000000e+00 : f32
    %12 = vector.broadcast %cst_5 : f32 to vector<64x32xf32>
    %13 = vector.extract_strided_slice %11 {offsets = [0, 0], sizes = [64, 8], strides = [1, 1]} : vector<64x32xf32> to vector<64x8xf32>
    %c0_6 = arith.constant 0 : index
    %c0_7 = arith.constant 0 : index
    %14 = vector.load %arg8[%c0_6, %c0_7] : memref<64x32xf32, #tpu.memory_space<vmem>>, vector<64x8xf32>
    %cst_8 = arith.constant dense<0.000000e+00> : vector<64x64xf32>
    %15 = tpu.matmul %13, %14, %cst_8 {dimension_numbers = #tpu.dot_dimension_numbers<[1], [1], [0], [0], [0, 0, 1, 0], [], []>} : vector<64x8xf32>, vector<64x8xf32>, vector<64x64xf32> -> vector<64x64xf32>
    %cst_9 = arith.constant dense<0xFF800000> : vector<64xf32>
    %16 = vector.multi_reduction <maximumf>, %15, %cst_9 [1] : vector<64x64xf32> to vector<64xf32>
    %17 = vector.shape_cast %16 : vector<64xf32> to vector<64x1xf32>
    %18 = vector.broadcast %17 : vector<64x1xf32> to vector<64x64xf32>
    %19 = arith.subf %15, %18 : vector<64x64xf32>
    %20 = math.exp %19 : vector<64x64xf32>
    %cst_10 = arith.constant dense<0.000000e+00> : vector<64xf32>
    %21 = vector.multi_reduction <add>, %20, %cst_10 [1] : vector<64x64xf32> to vector<64xf32>
    %22 = vector.shape_cast %21 : vector<64xf32> to vector<64x1xf32>
    %c0_11 = arith.constant 0 : index
    %c0_12 = arith.constant 0 : index
    %23 = vector.load %arg9[%c0_11, %c0_12] : memref<64x32xf32, #tpu.memory_space<vmem>>, vector<64x8xf32>
    %cst_13 = arith.constant dense<0.000000e+00> : vector<64x8xf32>
    %24 = tpu.matmul %20, %23, %cst_13 {dimension_numbers = #tpu.dot_dimension_numbers<[1], [0], [0], [1], [0, 0, 1, 1], [], []>} : vector<64x64xf32>, vector<64x8xf32>, vector<64x8xf32> -> vector<64x8xf32>
    %25 = tpu.reciprocal %22 : vector<64x1xf32> -> vector<64x1xf32>
    %26 = vector.broadcast %25 : vector<64x1xf32> to vector<64x8xf32>
    %27 = arith.mulf %24, %26 : vector<64x8xf32>
    %c0_14 = arith.constant 0 : index
    %c0_15 = arith.constant 0 : index
    %28 = vector.load %arg6[%c0_14, %c0_15] : memref<32x32xf32, #tpu.memory_space<vmem>>, vector<8x32xf32>
    %cst_16 = arith.constant dense<0.000000e+00> : vector<64x32xf32>
    %29 = tpu.matmul %27, %28, %cst_16 {dimension_numbers = #tpu.dot_dimension_numbers<[1], [0], [0], [1], [0, 0, 1, 1], [], []>} : vector<64x8xf32>, vector<8x32xf32>, vector<64x32xf32> -> vector<64x32xf32>
    %30 = arith.addf %12, %29 : vector<64x32xf32>
    %31 = vector.extract_strided_slice %11 {offsets = [0, 8], sizes = [64, 8], strides = [1, 1]} : vector<64x32xf32> to vector<64x8xf32>
    %c0_17 = arith.constant 0 : index
    %c8 = arith.constant 8 : index
    %32 = vector.load %arg8[%c0_17, %c8] : memref<64x32xf32, #tpu.memory_space<vmem>>, vector<64x8xf32>
    %cst_18 = arith.constant dense<0.000000e+00> : vector<64x64xf32>
    %33 = tpu.matmul %31, %32, %cst_18 {dimension_numbers = #tpu.dot_dimension_numbers<[1], [1], [0], [0], [0, 0, 1, 0], [], []>} : vector<64x8xf32>, vector<64x8xf32>, vector<64x64xf32> -> vector<64x64xf32>
    %cst_19 = arith.constant dense<0xFF800000> : vector<64xf32>
    %34 = vector.multi_reduction <maximumf>, %33, %cst_19 [1] : vector<64x64xf32> to vector<64xf32>
    %35 = vector.shape_cast %34 : vector<64xf32> to vector<64x1xf32>
    %36 = vector.broadcast %35 : vector<64x1xf32> to vector<64x64xf32>
    %37 = arith.subf %33, %36 : vector<64x64xf32>
    %38 = math.exp %37 : vector<64x64xf32>
    %cst_20 = arith.constant dense<0.000000e+00> : vector<64xf32>
    %39 = vector.multi_reduction <add>, %38, %cst_20 [1] : vector<64x64xf32> to vector<64xf32>
    %40 = vector.shape_cast %39 : vector<64xf32> to vector<64x1xf32>
    %c0_21 = arith.constant 0 : index
    %c8_22 = arith.constant 8 : index
    %41 = vector.load %arg9[%c0_21, %c8_22] : memref<64x32xf32, #tpu.memory_space<vmem>>, vector<64x8xf32>
    %cst_23 = arith.constant dense<0.000000e+00> : vector<64x8xf32>
    %42 = tpu.matmul %38, %41, %cst_23 {dimension_numbers = #tpu.dot_dimension_numbers<[1], [0], [0], [1], [0, 0, 1, 1], [], []>} : vector<64x64xf32>, vector<64x8xf32>, vector<64x8xf32> -> vector<64x8xf32>
    %43 = tpu.reciprocal %40 : vector<64x1xf32> -> vector<64x1xf32>
    %44 = vector.broadcast %43 : vector<64x1xf32> to vector<64x8xf32>
    %45 = arith.mulf %42, %44 : vector<64x8xf32>
    %c8_24 = arith.constant 8 : index
    %c0_25 = arith.constant 0 : index
    %46 = vector.load %arg6[%c8_24, %c0_25] : memref<32x32xf32, #tpu.memory_space<vmem>>, vector<8x32xf32>
    %cst_26 = arith.constant dense<0.000000e+00> : vector<64x32xf32>
    %47 = tpu.matmul %45, %46, %cst_26 {dimension_numbers = #tpu.dot_dimension_numbers<[1], [0], [0], [1], [0, 0, 1, 1], [], []>} : vector<64x8xf32>, vector<8x32xf32>, vector<64x32xf32> -> vector<64x32xf32>
    %48 = arith.addf %30, %47 : vector<64x32xf32>
    %49 = vector.extract_strided_slice %11 {offsets = [0, 16], sizes = [64, 8], strides = [1, 1]} : vector<64x32xf32> to vector<64x8xf32>
    %c0_27 = arith.constant 0 : index
    %c16 = arith.constant 16 : index
    %50 = vector.load %arg8[%c0_27, %c16] : memref<64x32xf32, #tpu.memory_space<vmem>>, vector<64x8xf32>
    %cst_28 = arith.constant dense<0.000000e+00> : vector<64x64xf32>
    %51 = tpu.matmul %49, %50, %cst_28 {dimension_numbers = #tpu.dot_dimension_numbers<[1], [1], [0], [0], [0, 0, 1, 0], [], []>} : vector<64x8xf32>, vector<64x8xf32>, vector<64x64xf32> -> vector<64x64xf32>
    %cst_29 = arith.constant dense<0xFF800000> : vector<64xf32>
    %52 = vector.multi_reduction <maximumf>, %51, %cst_29 [1] : vector<64x64xf32> to vector<64xf32>
    %53 = vector.shape_cast %52 : vector<64xf32> to vector<64x1xf32>
    %54 = vector.broadcast %53 : vector<64x1xf32> to vector<64x64xf32>
    %55 = arith.subf %51, %54 : vector<64x64xf32>
    %56 = math.exp %55 : vector<64x64xf32>
    %cst_30 = arith.constant dense<0.000000e+00> : vector<64xf32>
    %57 = vector.multi_reduction <add>, %56, %cst_30 [1] : vector<64x64xf32> to vector<64xf32>
    %58 = vector.shape_cast %57 : vector<64xf32> to vector<64x1xf32>
    %c0_31 = arith.constant 0 : index
    %c16_32 = arith.constant 16 : index
    %59 = vector.load %arg9[%c0_31, %c16_32] : memref<64x32xf32, #tpu.memory_space<vmem>>, vector<64x8xf32>
    %cst_33 = arith.constant dense<0.000000e+00> : vector<64x8xf32>
    %60 = tpu.matmul %56, %59, %cst_33 {dimension_numbers = #tpu.dot_dimension_numbers<[1], [0], [0], [1], [0, 0, 1, 1], [], []>} : vector<64x64xf32>, vector<64x8xf32>, vector<64x8xf32> -> vector<64x8xf32>
    %61 = tpu.reciprocal %58 : vector<64x1xf32> -> vector<64x1xf32>
    %62 = vector.broadcast %61 : vector<64x1xf32> to vector<64x8xf32>
    %63 = arith.mulf %60, %62 : vector<64x8xf32>
    %c16_34 = arith.constant 16 : index
    %c0_35 = arith.constant 0 : index
    %64 = vector.load %arg6[%c16_34, %c0_35] : memref<32x32xf32, #tpu.memory_space<vmem>>, vector<8x32xf32>
    %cst_36 = arith.constant dense<0.000000e+00> : vector<64x32xf32>
    %65 = tpu.matmul %63, %64, %cst_36 {dimension_numbers = #tpu.dot_dimension_numbers<[1], [0], [0], [1], [0, 0, 1, 1], [], []>} : vector<64x8xf32>, vector<8x32xf32>, vector<64x32xf32> -> vector<64x32xf32>
    %66 = arith.addf %48, %65 : vector<64x32xf32>
    %67 = vector.extract_strided_slice %11 {offsets = [0, 24], sizes = [64, 8], strides = [1, 1]} : vector<64x32xf32> to vector<64x8xf32>
    %c0_37 = arith.constant 0 : index
    %c24 = arith.constant 24 : index
    %68 = vector.load %arg8[%c0_37, %c24] : memref<64x32xf32, #tpu.memory_space<vmem>>, vector<64x8xf32>
    %cst_38 = arith.constant dense<0.000000e+00> : vector<64x64xf32>
    %69 = tpu.matmul %67, %68, %cst_38 {dimension_numbers = #tpu.dot_dimension_numbers<[1], [1], [0], [0], [0, 0, 1, 0], [], []>} : vector<64x8xf32>, vector<64x8xf32>, vector<64x64xf32> -> vector<64x64xf32>
    %cst_39 = arith.constant dense<0xFF800000> : vector<64xf32>
    %70 = vector.multi_reduction <maximumf>, %69, %cst_39 [1] : vector<64x64xf32> to vector<64xf32>
    %71 = vector.shape_cast %70 : vector<64xf32> to vector<64x1xf32>
    %72 = vector.broadcast %71 : vector<64x1xf32> to vector<64x64xf32>
    %73 = arith.subf %69, %72 : vector<64x64xf32>
    %74 = math.exp %73 : vector<64x64xf32>
    %cst_40 = arith.constant dense<0.000000e+00> : vector<64xf32>
    %75 = vector.multi_reduction <add>, %74, %cst_40 [1] : vector<64x64xf32> to vector<64xf32>
    %76 = vector.shape_cast %75 : vector<64xf32> to vector<64x1xf32>
    %c0_41 = arith.constant 0 : index
    %c24_42 = arith.constant 24 : index
    %77 = vector.load %arg9[%c0_41, %c24_42] : memref<64x32xf32, #tpu.memory_space<vmem>>, vector<64x8xf32>
    %cst_43 = arith.constant dense<0.000000e+00> : vector<64x8xf32>
    %78 = tpu.matmul %74, %77, %cst_43 {dimension_numbers = #tpu.dot_dimension_numbers<[1], [0], [0], [1], [0, 0, 1, 1], [], []>} : vector<64x64xf32>, vector<64x8xf32>, vector<64x8xf32> -> vector<64x8xf32>
    %79 = tpu.reciprocal %76 : vector<64x1xf32> -> vector<64x1xf32>
    %80 = vector.broadcast %79 : vector<64x1xf32> to vector<64x8xf32>
    %81 = arith.mulf %78, %80 : vector<64x8xf32>
    %c24_44 = arith.constant 24 : index
    %c0_45 = arith.constant 0 : index
    %82 = vector.load %arg6[%c24_44, %c0_45] : memref<32x32xf32, #tpu.memory_space<vmem>>, vector<8x32xf32>
    %cst_46 = arith.constant dense<0.000000e+00> : vector<64x32xf32>
    %83 = tpu.matmul %81, %82, %cst_46 {dimension_numbers = #tpu.dot_dimension_numbers<[1], [0], [0], [1], [0, 0, 1, 1], [], []>} : vector<64x8xf32>, vector<8x32xf32>, vector<64x32xf32> -> vector<64x32xf32>
    %84 = arith.addf %66, %83 : vector<64x32xf32>
    %cst_47 = arith.constant 0.699999988 : f32
    %85 = vector.broadcast %cst_47 : f32 to vector<64x32xf32>
    %86 = arith.mulf %85, %7 : vector<64x32xf32>
    %cst_48 = arith.constant 3.000000e-01 : f32
    %87 = vector.broadcast %cst_48 : f32 to vector<64x32xf32>
    %88 = arith.mulf %87, %84 : vector<64x32xf32>
    %89 = arith.addf %86, %88 : vector<64x32xf32>
    %cst_49 = arith.constant 1.31306434 : f32
    %90 = vector.broadcast %cst_49 : f32 to vector<64x32xf32>
    %91 = arith.mulf %89, %90 : vector<64x32xf32>
    %c0_50 = arith.constant 0 : index
    %c0_51 = arith.constant 0 : index
    %c0_52 = arith.constant 0 : index
    %92 = vector.load %arg7[%c0_50, %c0_51, %c0_52] : memref<1x64x32xf32, #tpu.memory_space<vmem>>, vector<1x64x32xf32>
    %93 = vector.shape_cast %92 : vector<1x64x32xf32> to vector<64x32xf32>
    %94 = vector.shape_cast %91 : vector<64x32xf32> to vector<1x64x32xf32>
    tpu.vector_store %arg7[%c0_50, %c0_51, %c0_52], %94 {strides = array<i32>} : memref<1x64x32xf32, #tpu.memory_space<vmem>>, vector<1x64x32xf32>,
    return
  }
  func.func @transform_0(%arg0: i32, %arg1: i32) -> (i32, i32, i32) {
    %c0_i32 = arith.constant 0 : i32
    %c0_i32_0 = arith.constant 0 : i32
    %c0_i32_1 = arith.constant 0 : i32
    return %arg0, %c0_i32, %c0_i32_0 : i32, i32, i32
  }
  func.func @transform_1(%arg0: i32, %arg1: i32) -> (i32, i32) {
    %c0_i32 = arith.constant 0 : i32
    %c0_i32_0 = arith.constant 0 : i32
    %c0_i32_1 = arith.constant 0 : i32
    return %c0_i32, %c0_i32_0 : i32, i32
  }
  func.func @transform_2(%arg0: i32, %arg1: i32) -> (i32, i32) {
    %c0_i32 = arith.constant 0 : i32
    %c0_i32_0 = arith.constant 0 : i32
    %c0_i32_1 = arith.constant 0 : i32
    return %c0_i32, %c0_i32_0 : i32, i32
  }
  func.func @transform_3(%arg0: i32, %arg1: i32) -> (i32, i32) {
    %c0_i32 = arith.constant 0 : i32
    %c0_i32_0 = arith.constant 0 : i32
    %c0_i32_1 = arith.constant 0 : i32
    return %c0_i32, %c0_i32_0 : i32, i32
  }
  func.func @transform_4(%arg0: i32, %arg1: i32) -> (i32, i32) {
    %c0_i32 = arith.constant 0 : i32
    %c0_i32_0 = arith.constant 0 : i32
    %c0_i32_1 = arith.constant 0 : i32
    return %c0_i32, %c0_i32_0 : i32, i32
  }
  func.func @transform_5(%arg0: i32, %arg1: i32) -> (i32, i32, i32) {
    %c0_i32 = arith.constant 0 : i32
    %c0_i32_0 = arith.constant 0 : i32
    return %arg0, %arg1, %c0_i32 : i32, i32, i32
  }
}

module attributes {stable_mosaic.version = 11 : i64} {
  func.func @_frame_attn_kernel(%arg0: i32, %arg1: i32, %arg2: memref<1x64x32xf32, #tpu.memory_space<vmem>>, %arg3: memref<32x32xf32, #tpu.memory_space<vmem>>, %arg4: memref<32x32xf32, #tpu.memory_space<vmem>>, %arg5: memref<32x32xf32, #tpu.memory_space<vmem>>, %arg6: memref<32x32xf32, #tpu.memory_space<vmem>>, %arg7: memref<1x64x32xf32, #tpu.memory_space<vmem>>, %arg8: memref<64x32xf32, #tpu.memory_space<vmem>>, %arg9: memref<64x32xf32, #tpu.memory_space<vmem>>) attributes {dimension_semantics = [#tpu.dimension_semantics<parallel>, #tpu.dimension_semantics<arbitrary>], iteration_bounds = array<i64: 2, 1>, scalar_prefetch = 0 : i64, scratch_operands = 2 : i64, tpu.core_type = #tpu.core_type<tc>, window_params = [{transform_indices = @transform_0, window_bounds = array<i64: 1, 64, 32>}, {pipeline_mode = #tpu.pipeline_mode<synchronous>, transform_indices = @transform_1, window_bounds = array<i64: 32, 32>}, {pipeline_mode = #tpu.pipeline_mode<synchronous>, transform_indices = @transform_2, window_bounds = array<i64: 32, 32>}, {pipeline_mode = #tpu.pipeline_mode<synchronous>, transform_indices = @transform_3, window_bounds = array<i64: 32, 32>}, {pipeline_mode = #tpu.pipeline_mode<synchronous>, transform_indices = @transform_4, window_bounds = array<i64: 32, 32>}, {transform_indices = @transform_5, window_bounds = array<i64: 1, 64, 32>}]} {
    %c0_i32 = arith.constant 0 : i32
    %0 = arith.cmpi eq, %arg1, %c0_i32 : i32
    %1 = arith.extui %0 : i1 to i32
    %c0_i32_0 = arith.constant 0 : i32
    %2 = arith.cmpi ne, %1, %c0_i32_0 : i32
    scf.if %2 {
      %c0_53 = arith.constant 0 : index
      %c0_54 = arith.constant 0 : index
      %c0_55 = arith.constant 0 : index
      %95 = vector.load %arg2[%c0_53, %c0_54, %c0_55] : memref<1x64x32xf32, #tpu.memory_space<vmem>>, vector<1x64x32xf32>
      %96 = vector.shape_cast %95 : vector<1x64x32xf32> to vector<64x32xf32>
      %c0_56 = arith.constant 0 : index
      %c0_57 = arith.constant 0 : index
      %97 = vector.load %arg4[%c0_56, %c0_57] : memref<32x32xf32, #tpu.memory_space<vmem>>, vector<32x32xf32>
      %cst_58 = arith.constant dense<0.000000e+00> : vector<64x32xf32>
      %98 = tpu.matmul %96, %97, %cst_58 {dimension_numbers = #tpu.dot_dimension_numbers<[1], [0], [0], [1], [0, 0, 1, 1], [], []>} : vector<64x32xf32>, vector<32x32xf32>, vector<64x32xf32> -> vector<64x32xf32>
      %c0_59 = arith.constant 0 : index
      %c0_60 = arith.constant 0 : index
      %99 = vector.load %arg8[%c0_59, %c0_60] : memref<64x32xf32, #tpu.memory_space<vmem>>, vector<64x32xf32>
      tpu.vector_store %arg8[%c0_59, %c0_60], %98 {strides = array<i32>} : memref<64x32xf32, #tpu.memory_space<vmem>>, vector<64x32xf32>,
      %c0_61 = arith.constant 0 : index
      %c0_62 = arith.constant 0 : index
      %100 = vector.load %arg5[%c0_61, %c0_62] : memref<32x32xf32, #tpu.memory_space<vmem>>, vector<32x32xf32>
      %cst_63 = arith.constant dense<0.000000e+00> : vector<64x32xf32>
      %101 = tpu.matmul %96, %100, %cst_63 {dimension_numbers = #tpu.dot_dimension_numbers<[1], [0], [0], [1], [0, 0, 1, 1], [], []>} : vector<64x32xf32>, vector<32x32xf32>, vector<64x32xf32> -> vector<64x32xf32>
      %c0_64 = arith.constant 0 : index
      %c0_65 = arith.constant 0 : index
      %102 = vector.load %arg9[%c0_64, %c0_65] : memref<64x32xf32, #tpu.memory_space<vmem>>, vector<64x32xf32>
      tpu.vector_store %arg9[%c0_64, %c0_65], %101 {strides = array<i32>} : memref<64x32xf32, #tpu.memory_space<vmem>>, vector<64x32xf32>,
    } else {
    }
    %c64_i32 = arith.constant 64 : i32
    %3 = arith.muli %arg1, %c64_i32 : i32
    %4 = tpu.assume_multiple %3, 8 : i32
    %c0 = arith.constant 0 : index
    %5 = arith.index_cast %4 : i32 to index
    %c0_1 = arith.constant 0 : index
    %6 = vector.load %arg2[%c0, %5, %c0_1] : memref<1x64x32xf32, #tpu.memory_space<vmem>>, vector<1x64x32xf32>
    %7 = vector.shape_cast %6 : vector<1x64x32xf32> to vector<64x32xf32>
    %c0_2 = arith.constant 0 : index
    %c0_3 = arith.constant 0 : index
    %8 = vector.load %arg3[%c0_2, %c0_3] : memref<32x32xf32, #tpu.memory_space<vmem>>, vector<32x32xf32>
    %cst = arith.constant dense<0.000000e+00> : vector<64x32xf32>
    %9 = tpu.matmul %7, %8, %cst {dimension_numbers = #tpu.dot_dimension_numbers<[1], [0], [0], [1], [0, 0, 1, 1], [], []>} : vector<64x32xf32>, vector<32x32xf32>, vector<64x32xf32> -> vector<64x32xf32>
    %cst_4 = arith.constant 0.353553385 : f32
    %10 = vector.broadcast %cst_4 : f32 to vector<64x32xf32>
    %11 = arith.mulf %9, %10 : vector<64x32xf32>
    %cst_5 = arith.constant 0.000000e+00 : f32
    %12 = vector.broadcast %cst_5 : f32 to vector<64x32xf32>
    %13 = vector.extract_strided_slice %11 {offsets = [0, 0], sizes = [64, 8], strides = [1, 1]} : vector<64x32xf32> to vector<64x8xf32>
    %c0_6 = arith.constant 0 : index
    %c0_7 = arith.constant 0 : index
    %14 = vector.load %arg8[%c0_6, %c0_7] : memref<64x32xf32, #tpu.memory_space<vmem>>, vector<64x8xf32>
    %cst_8 = arith.constant dense<0.000000e+00> : vector<64x64xf32>
    %15 = tpu.matmul %13, %14, %cst_8 {dimension_numbers = #tpu.dot_dimension_numbers<[1], [1], [0], [0], [0, 0, 1, 0], [], []>} : vector<64x8xf32>, vector<64x8xf32>, vector<64x64xf32> -> vector<64x64xf32>
    %cst_9 = arith.constant dense<0xFF800000> : vector<64xf32>
    %16 = vector.multi_reduction <maximumf>, %15, %cst_9 [1] : vector<64x64xf32> to vector<64xf32>
    %17 = vector.shape_cast %16 : vector<64xf32> to vector<64x1xf32>
    %18 = vector.broadcast %17 : vector<64x1xf32> to vector<64x64xf32>
    %19 = arith.subf %15, %18 : vector<64x64xf32>
    %20 = math.exp %19 : vector<64x64xf32>
    %cst_10 = arith.constant dense<0.000000e+00> : vector<64xf32>
    %21 = vector.multi_reduction <add>, %20, %cst_10 [1] : vector<64x64xf32> to vector<64xf32>
    %22 = vector.shape_cast %21 : vector<64xf32> to vector<64x1xf32>
    %c0_11 = arith.constant 0 : index
    %c0_12 = arith.constant 0 : index
    %23 = vector.load %arg9[%c0_11, %c0_12] : memref<64x32xf32, #tpu.memory_space<vmem>>, vector<64x8xf32>
    %cst_13 = arith.constant dense<0.000000e+00> : vector<64x8xf32>
    %24 = tpu.matmul %20, %23, %cst_13 {dimension_numbers = #tpu.dot_dimension_numbers<[1], [0], [0], [1], [0, 0, 1, 1], [], []>} : vector<64x64xf32>, vector<64x8xf32>, vector<64x8xf32> -> vector<64x8xf32>
    %25 = tpu.reciprocal %22 : vector<64x1xf32> -> vector<64x1xf32>
    %26 = vector.broadcast %25 : vector<64x1xf32> to vector<64x8xf32>
    %27 = arith.mulf %24, %26 : vector<64x8xf32>
    %c0_14 = arith.constant 0 : index
    %c0_15 = arith.constant 0 : index
    %28 = vector.load %arg6[%c0_14, %c0_15] : memref<32x32xf32, #tpu.memory_space<vmem>>, vector<8x32xf32>
    %cst_16 = arith.constant dense<0.000000e+00> : vector<64x32xf32>
    %29 = tpu.matmul %27, %28, %cst_16 {dimension_numbers = #tpu.dot_dimension_numbers<[1], [0], [0], [1], [0, 0, 1, 1], [], []>} : vector<64x8xf32>, vector<8x32xf32>, vector<64x32xf32> -> vector<64x32xf32>
    %30 = arith.addf %12, %29 : vector<64x32xf32>
    %31 = vector.extract_strided_slice %11 {offsets = [0, 8], sizes = [64, 8], strides = [1, 1]} : vector<64x32xf32> to vector<64x8xf32>
    %c0_17 = arith.constant 0 : index
    %c8 = arith.constant 8 : index
    %32 = vector.load %arg8[%c0_17, %c8] : memref<64x32xf32, #tpu.memory_space<vmem>>, vector<64x8xf32>
    %cst_18 = arith.constant dense<0.000000e+00> : vector<64x64xf32>
    %33 = tpu.matmul %31, %32, %cst_18 {dimension_numbers = #tpu.dot_dimension_numbers<[1], [1], [0], [0], [0, 0, 1, 0], [], []>} : vector<64x8xf32>, vector<64x8xf32>, vector<64x64xf32> -> vector<64x64xf32>
    %cst_19 = arith.constant dense<0xFF800000> : vector<64xf32>
    %34 = vector.multi_reduction <maximumf>, %33, %cst_19 [1] : vector<64x64xf32> to vector<64xf32>
    %35 = vector.shape_cast %34 : vector<64xf32> to vector<64x1xf32>
    %36 = vector.broadcast %35 : vector<64x1xf32> to vector<64x64xf32>
    %37 = arith.subf %33, %36 : vector<64x64xf32>
    %38 = math.exp %37 : vector<64x64xf32>
    %cst_20 = arith.constant dense<0.000000e+00> : vector<64xf32>
    %39 = vector.multi_reduction <add>, %38, %cst_20 [1] : vector<64x64xf32> to vector<64xf32>
    %40 = vector.shape_cast %39 : vector<64xf32> to vector<64x1xf32>
    %c0_21 = arith.constant 0 : index
    %c8_22 = arith.constant 8 : index
    %41 = vector.load %arg9[%c0_21, %c8_22] : memref<64x32xf32, #tpu.memory_space<vmem>>, vector<64x8xf32>
    %cst_23 = arith.constant dense<0.000000e+00> : vector<64x8xf32>
    %42 = tpu.matmul %38, %41, %cst_23 {dimension_numbers = #tpu.dot_dimension_numbers<[1], [0], [0], [1], [0, 0, 1, 1], [], []>} : vector<64x64xf32>, vector<64x8xf32>, vector<64x8xf32> -> vector<64x8xf32>
    %43 = tpu.reciprocal %40 : vector<64x1xf32> -> vector<64x1xf32>
    %44 = vector.broadcast %43 : vector<64x1xf32> to vector<64x8xf32>
    %45 = arith.mulf %42, %44 : vector<64x8xf32>
    %c8_24 = arith.constant 8 : index
    %c0_25 = arith.constant 0 : index
    %46 = vector.load %arg6[%c8_24, %c0_25] : memref<32x32xf32, #tpu.memory_space<vmem>>, vector<8x32xf32>
    %cst_26 = arith.constant dense<0.000000e+00> : vector<64x32xf32>
    %47 = tpu.matmul %45, %46, %cst_26 {dimension_numbers = #tpu.dot_dimension_numbers<[1], [0], [0], [1], [0, 0, 1, 1], [], []>} : vector<64x8xf32>, vector<8x32xf32>, vector<64x32xf32> -> vector<64x32xf32>
    %48 = arith.addf %30, %47 : vector<64x32xf32>
    %49 = vector.extract_strided_slice %11 {offsets = [0, 16], sizes = [64, 8], strides = [1, 1]} : vector<64x32xf32> to vector<64x8xf32>
    %c0_27 = arith.constant 0 : index
    %c16 = arith.constant 16 : index
    %50 = vector.load %arg8[%c0_27, %c16] : memref<64x32xf32, #tpu.memory_space<vmem>>, vector<64x8xf32>
    %cst_28 = arith.constant dense<0.000000e+00> : vector<64x64xf32>
    %51 = tpu.matmul %49, %50, %cst_28 {dimension_numbers = #tpu.dot_dimension_numbers<[1], [1], [0], [0], [0, 0, 1, 0], [], []>} : vector<64x8xf32>, vector<64x8xf32>, vector<64x64xf32> -> vector<64x64xf32>
    %cst_29 = arith.constant dense<0xFF800000> : vector<64xf32>
    %52 = vector.multi_reduction <maximumf>, %51, %cst_29 [1] : vector<64x64xf32> to vector<64xf32>
    %53 = vector.shape_cast %52 : vector<64xf32> to vector<64x1xf32>
    %54 = vector.broadcast %53 : vector<64x1xf32> to vector<64x64xf32>
    %55 = arith.subf %51, %54 : vector<64x64xf32>
    %56 = math.exp %55 : vector<64x64xf32>
    %cst_30 = arith.constant dense<0.000000e+00> : vector<64xf32>
    %57 = vector.multi_reduction <add>, %56, %cst_30 [1] : vector<64x64xf32> to vector<64xf32>
    %58 = vector.shape_cast %57 : vector<64xf32> to vector<64x1xf32>
    %c0_31 = arith.constant 0 : index
    %c16_32 = arith.constant 16 : index
    %59 = vector.load %arg9[%c0_31, %c16_32] : memref<64x32xf32, #tpu.memory_space<vmem>>, vector<64x8xf32>
    %cst_33 = arith.constant dense<0.000000e+00> : vector<64x8xf32>
    %60 = tpu.matmul %56, %59, %cst_33 {dimension_numbers = #tpu.dot_dimension_numbers<[1], [0], [0], [1], [0, 0, 1, 1], [], []>} : vector<64x64xf32>, vector<64x8xf32>, vector<64x8xf32> -> vector<64x8xf32>
    %61 = tpu.reciprocal %58 : vector<64x1xf32> -> vector<64x1xf32>
    %62 = vector.broadcast %61 : vector<64x1xf32> to vector<64x8xf32>
    %63 = arith.mulf %60, %62 : vector<64x8xf32>
    %c16_34 = arith.constant 16 : index
    %c0_35 = arith.constant 0 : index
    %64 = vector.load %arg6[%c16_34, %c0_35] : memref<32x32xf32, #tpu.memory_space<vmem>>, vector<8x32xf32>
    %cst_36 = arith.constant dense<0.000000e+00> : vector<64x32xf32>
    %65 = tpu.matmul %63, %64, %cst_36 {dimension_numbers = #tpu.dot_dimension_numbers<[1], [0], [0], [1], [0, 0, 1, 1], [], []>} : vector<64x8xf32>, vector<8x32xf32>, vector<64x32xf32> -> vector<64x32xf32>
    %66 = arith.addf %48, %65 : vector<64x32xf32>
    %67 = vector.extract_strided_slice %11 {offsets = [0, 24], sizes = [64, 8], strides = [1, 1]} : vector<64x32xf32> to vector<64x8xf32>
    %c0_37 = arith.constant 0 : index
    %c24 = arith.constant 24 : index
    %68 = vector.load %arg8[%c0_37, %c24] : memref<64x32xf32, #tpu.memory_space<vmem>>, vector<64x8xf32>
    %cst_38 = arith.constant dense<0.000000e+00> : vector<64x64xf32>
    %69 = tpu.matmul %67, %68, %cst_38 {dimension_numbers = #tpu.dot_dimension_numbers<[1], [1], [0], [0], [0, 0, 1, 0], [], []>} : vector<64x8xf32>, vector<64x8xf32>, vector<64x64xf32> -> vector<64x64xf32>
    %cst_39 = arith.constant dense<0xFF800000> : vector<64xf32>
    %70 = vector.multi_reduction <maximumf>, %69, %cst_39 [1] : vector<64x64xf32> to vector<64xf32>
    %71 = vector.shape_cast %70 : vector<64xf32> to vector<64x1xf32>
    %72 = vector.broadcast %71 : vector<64x1xf32> to vector<64x64xf32>
    %73 = arith.subf %69, %72 : vector<64x64xf32>
    %74 = math.exp %73 : vector<64x64xf32>
    %cst_40 = arith.constant dense<0.000000e+00> : vector<64xf32>
    %75 = vector.multi_reduction <add>, %74, %cst_40 [1] : vector<64x64xf32> to vector<64xf32>
    %76 = vector.shape_cast %75 : vector<64xf32> to vector<64x1xf32>
    %c0_41 = arith.constant 0 : index
    %c24_42 = arith.constant 24 : index
    %77 = vector.load %arg9[%c0_41, %c24_42] : memref<64x32xf32, #tpu.memory_space<vmem>>, vector<64x8xf32>
    %cst_43 = arith.constant dense<0.000000e+00> : vector<64x8xf32>
    %78 = tpu.matmul %74, %77, %cst_43 {dimension_numbers = #tpu.dot_dimension_numbers<[1], [0], [0], [1], [0, 0, 1, 1], [], []>} : vector<64x64xf32>, vector<64x8xf32>, vector<64x8xf32> -> vector<64x8xf32>
    %79 = tpu.reciprocal %76 : vector<64x1xf32> -> vector<64x1xf32>
    %80 = vector.broadcast %79 : vector<64x1xf32> to vector<64x8xf32>
    %81 = arith.mulf %78, %80 : vector<64x8xf32>
    %c24_44 = arith.constant 24 : index
    %c0_45 = arith.constant 0 : index
    %82 = vector.load %arg6[%c24_44, %c0_45] : memref<32x32xf32, #tpu.memory_space<vmem>>, vector<8x32xf32>
    %cst_46 = arith.constant dense<0.000000e+00> : vector<64x32xf32>
    %83 = tpu.matmul %81, %82, %cst_46 {dimension_numbers = #tpu.dot_dimension_numbers<[1], [0], [0], [1], [0, 0, 1, 1], [], []>} : vector<64x8xf32>, vector<8x32xf32>, vector<64x32xf32> -> vector<64x32xf32>
    %84 = arith.addf %66, %83 : vector<64x32xf32>
    %cst_47 = arith.constant 0.699999988 : f32
    %85 = vector.broadcast %cst_47 : f32 to vector<64x32xf32>
    %86 = arith.mulf %85, %7 : vector<64x32xf32>
    %cst_48 = arith.constant 3.000000e-01 : f32
    %87 = vector.broadcast %cst_48 : f32 to vector<64x32xf32>
    %88 = arith.mulf %87, %84 : vector<64x32xf32>
    %89 = arith.addf %86, %88 : vector<64x32xf32>
    %cst_49 = arith.constant 1.31306434 : f32
    %90 = vector.broadcast %cst_49 : f32 to vector<64x32xf32>
    %91 = arith.mulf %89, %90 : vector<64x32xf32>
    %c0_50 = arith.constant 0 : index
    %c0_51 = arith.constant 0 : index
    %c0_52 = arith.constant 0 : index
    %92 = vector.load %arg7[%c0_50, %c0_51, %c0_52] : memref<1x64x32xf32, #tpu.memory_space<vmem>>, vector<1x64x32xf32>
    %93 = vector.shape_cast %92 : vector<1x64x32xf32> to vector<64x32xf32>
    %94 = vector.shape_cast %91 : vector<64x32xf32> to vector<1x64x32xf32>
    tpu.vector_store %arg7[%c0_50, %c0_51, %c0_52], %94 {strides = array<i32>} : memref<1x64x32xf32, #tpu.memory_space<vmem>>, vector<1x64x32xf32>,
    return
  }
  func.func @transform_0(%arg0: i32, %arg1: i32) -> (i32, i32, i32) {
    %c0_i32 = arith.constant 0 : i32
    %c0_i32_0 = arith.constant 0 : i32
    %c0_i32_1 = arith.constant 0 : i32
    return %arg0, %c0_i32, %c0_i32_0 : i32, i32, i32
  }
  func.func @transform_1(%arg0: i32, %arg1: i32) -> (i32, i32) {
    %c0_i32 = arith.constant 0 : i32
    %c0_i32_0 = arith.constant 0 : i32
    %c0_i32_1 = arith.constant 0 : i32
    return %c0_i32, %c0_i32_0 : i32, i32
  }
  func.func @transform_2(%arg0: i32, %arg1: i32) -> (i32, i32) {
    %c0_i32 = arith.constant 0 : i32
    %c0_i32_0 = arith.constant 0 : i32
    %c0_i32_1 = arith.constant 0 : i32
    return %c0_i32, %c0_i32_0 : i32, i32
  }
  func.func @transform_3(%arg0: i32, %arg1: i32) -> (i32, i32) {
    %c0_i32 = arith.constant 0 : i32
    %c0_i32_0 = arith.constant 0 : i32
    %c0_i32_1 = arith.constant 0 : i32
    return %c0_i32, %c0_i32_0 : i32, i32
  }
  func.func @transform_4(%arg0: i32, %arg1: i32) -> (i32, i32) {
    %c0_i32 = arith.constant 0 : i32
    %c0_i32_0 = arith.constant 0 : i32
    %c0_i32_1 = arith.constant 0 : i32
    return %c0_i32, %c0_i32_0 : i32, i32
  }
  func.func @transform_5(%arg0: i32, %arg1: i32) -> (i32, i32, i32) {
    %c0_i32 = arith.constant 0 : i32
    %c0_i32_0 = arith.constant 0 : i32
    return %arg0, %arg1, %c0_i32 : i32, i32, i32
  }
}

</mosaic_0001>

<llo_original>
// kernel: tpu_custom_call.1
$region0: #{tpu_custom_call.1}
  #allocation0 [shape = 'u32[]', space=smem, size = 0x4, offset = 0x4, fixed_abs, tag = 'smem constant byte address 0x4 - core index']
  #allocation1 [shape = 'u32[144,128]{1,0:T(1,128)}', space=vmem, size = 0x12000, scoped, tag = 'internal scratch']
  #allocation2 [shape = 'f32[64,32]{1,0:T(8,128)}', space=vmem, size = 0x8000, scoped, tag = 'scratch operand']
  #allocation3 [shape = 'f32[64,32]{1,0:T(8,128)}', space=vmem, size = 0x8000, scoped, tag = 'scratch operand']
  %s0 = inlined_call_operand.vmem [shape: f32[2,64,32], index: 0, kind: input, shape index: {}]
  %s1 = inlined_call_operand.vmem [shape: f32[32,32], index: 1, kind: input, shape index: {}]
  %s2 = inlined_call_operand.vmem [shape: f32[32,32], index: 2, kind: input, shape index: {}]
  %s3 = inlined_call_operand.vmem [shape: f32[32,32], index: 3, kind: input, shape index: {}]
  %s4 = inlined_call_operand.vmem [shape: f32[32,32], index: 4, kind: input, shape index: {}]
  %s5 = inlined_call_operand.vmem [shape: f32[2,64,32], index: 5, kind: output, shape index: {}]
  %s6 = sld [smem:[#allocation0]]
  $region57: #{tpu_custom_call.1} parent=0
    _
  %s8 = ssub.s32 1, %s6
  %s9 = scalar_select 0, %s8, %s6
  loop: start=0, step=1, limit=4
  $region2: #{tpu_custom_call.1} parent=0 // loop_pre_header
    _
  $region3: #{tpu_custom_call.1} parent=0 // loop_header
    %s11 = sphi 0, %s15
    %p12 = scmp.ge.s32.totalorder %s11, 4
    %s18 = sphi 0, %s30
    %s19 = sphi 0, %s26
    %s20 = sphi 0, %s18
    %s21 = sphi 0, %s19
    %s22 = sphi 0, %s20
    %s23 = sphi 0, %s21
    %s33 = sphi 0, %s35
    %s36 = sphi 0, %s33
    %s37 = sphi 0, %s36
    %s53 = sphi 0, %s37
    %s57 = sphi 0, %s57
    %s59 = sphi 0, %s57
    %s60 = sphi 0, %s59
    %s74 = sphi 0, %s60
    %s78 = sphi 0, %s78
    %s80 = sphi 0, %s78
    %s81 = sphi 0, %s80
    %s95 = sphi 0, %s81
    %s99 = sphi 0, %s99
    %s101 = sphi 0, %s99
    %s102 = sphi 0, %s101
    %s116 = sphi 0, %s102
    %s120 = sphi 0, %s120
    %s122 = sphi 0, %s120
    %s123 = sphi 0, %s122
    %s137 = sphi 0, %s123
    %s145 = sphi 0, %s147
    %s148 = sphi 0, %s145
    %s149 = sphi 0, %s148
    %s165 = sphi 0, %s149
  $region4: #{tpu_custom_call.1} parent=0 // loop_header_branch
    %14 = sbr.rel (%p12) target = $region8
  $region5: #{tpu_custom_call.1} parent=0 // loop_body
    %s16 = ssub.s32 %s11, 1
    %s17 = ssub.s32 %s11, 2
    %s24 = sadd.s32 1, %s19
    %p25 = scmp.ge.s32.totalorder %s24, 1
    %s26 = scalar_select %p25, 0, %s24
    %s27 = sadd.s32 1, %s18
    %s28 = scalar_select %p25, %s27, %s18
    %p29 = scmp.ge.s32.totalorder %s28, 2
    %s30 = scalar_select %p29, 0, %s28
    %s31 = ssub.s32 %s18, %s30
    %p32 = scmp.eq.s32.totalorder %s31, 0
    %s34 = sadd.s32 %s33, 1
    %s35 = scalar_select %p32, %s33, %s34
    %p38 = pneg %p32
    %p39 = scmp.eq.s32.totalorder %s11, 1
    %p40 = por %p38, %p39
    %p41 = scmp.ne.s32.totalorder %s33, %s36
    %p42 = scmp.eq.s32.totalorder %s11, 0
    %p43 = por %p41, %p42
    %p44 = scmp.ne.s32.totalorder %s33, %s36
    %p45 = scmp.eq.s32.totalorder %s16, 1
    %p46 = por %p44, %p45
    %p47 = scmp.ne.s32.totalorder %s36, %s37
    %p48 = scmp.eq.s32.totalorder %s16, 0
    %p49 = por %p47, %p48
    %p50 = scmp.ne.s32.totalorder %s36, %s37
    %p51 = scmp.eq.s32.totalorder %s17, 1
    %p52 = por %p50, %p51
    %p54 = scmp.ne.s32.totalorder %s37, %s53
    %p55 = scmp.eq.s32.totalorder %s17, 0
    %p56 = por %p54, %p55
    %s58 = sadd.s32 %s57, 1
    %p61 = scmp.eq.s32.totalorder %s11, 1
    %p62 = scmp.ne.s32.totalorder %s57, %s59
    %p63 = scmp.eq.s32.totalorder %s11, 0
    %p64 = por %p62, %p63
    %p65 = scmp.ne.s32.totalorder %s57, %s59
    %p66 = scmp.eq.s32.totalorder %s16, 1
    %p67 = por %p65, %p66
    %p68 = scmp.ne.s32.totalorder %s59, %s60
    %p69 = scmp.eq.s32.totalorder %s16, 0
    %p70 = por %p68, %p69
    %p71 = scmp.ne.s32.totalorder %s59, %s60
    %p72 = scmp.eq.s32.totalorder %s17, 1
    %p73 = por %p71, %p72
    %p75 = scmp.ne.s32.totalorder %s60, %s74
    %p76 = scmp.eq.s32.totalorder %s17, 0
    %p77 = por %p75, %p76
    %s79 = sadd.s32 %s78, 1
    %p82 = scmp.eq.s32.totalorder %s11, 1
    %p83 = scmp.ne.s32.totalorder %s78, %s80
    %p84 = scmp.eq.s32.totalorder %s11, 0
    %p85 = por %p83, %p84
    %p86 = scmp.ne.s32.totalorder %s78, %s80
    %p87 = scmp.eq.s32.totalorder %s16, 1
    %p88 = por %p86, %p87
    %p89 = scmp.ne.s32.totalorder %s80, %s81
    %p90 = scmp.eq.s32.totalorder %s16, 0
    %p91 = por %p89, %p90
    %p92 = scmp.ne.s32.totalorder %s80, %s81
    %p93 = scmp.eq.s32.totalorder %s17, 1
    %p94 = por %p92, %p93
    %p96 = scmp.ne.s32.totalorder %s81, %s95
    %p97 = scmp.eq.s32.totalorder %s17, 0
    %p98 = por %p96, %p97
    %s100 = sadd.s32 %s99, 1
    %p103 = scmp.eq.s32.totalorder %s11, 1
    %p104 = scmp.ne.s32.totalorder %s99, %s101
    %p105 = scmp.eq.s32.totalorder %s11, 0
    %p106 = por %p104, %p105
    %p107 = scmp.ne.s32.totalorder %s99, %s101
    %p108 = scmp.eq.s32.totalorder %s16, 1
    %p109 = por %p107, %p108
    %p110 = scmp.ne.s32.totalorder %s101, %s102
    %p111 = scmp.eq.s32.totalorder %s16, 0
    %p112 = por %p110, %p111
    %p113 = scmp.ne.s32.totalorder %s101, %s102
    %p114 = scmp.eq.s32.totalorder %s17, 1
    %p115 = por %p113, %p114
    %p117 = scmp.ne.s32.totalorder %s102, %s116
    %p118 = scmp.eq.s32.totalorder %s17, 0
    %p119 = por %p117, %p118
    %s121 = sadd.s32 %s120, 1
    %p124 = scmp.eq.s32.totalorder %s11, 1
    %p125 = scmp.ne.s32.totalorder %s120, %s122
    %p126 = scmp.eq.s32.totalorder %s11, 0
    %p127 = por %p125, %p126
    %p128 = scmp.ne.s32.totalorder %s120, %s122
    %p129 = scmp.eq.s32.totalorder %s16, 1
    %p130 = por %p128, %p129
    %p131 = scmp.ne.s32.totalorder %s122, %s123
    %p132 = scmp.eq.s32.totalorder %s16, 0
    %p133 = por %p131, %p132
    %p134 = scmp.ne.s32.totalorder %s122, %s123
    %p135 = scmp.eq.s32.totalorder %s17, 1
    %p136 = por %p134, %p135
    %p138 = scmp.ne.s32.totalorder %s123, %s137
    %p139 = scmp.eq.s32.totalorder %s17, 0
    %p140 = por %p138, %p139
    %s141 = ssub.s32 %s18, %s30
    %s142 = ssub.s32 %s19, %s26
    %s143 = sor.u32 %s141, %s142
    %p144 = scmp.eq.s32.totalorder %s143, 0
    %s146 = sadd.s32 %s145, 1
    %s147 = scalar_select %p144, %s145, %s146
    %p150 = pneg %p144
    %p151 = scmp.eq.s32.totalorder %s11, 1
    %p152 = por %p150, %p151
    %p153 = scmp.ne.s32.totalorder %s145, %s148
    %p154 = scmp.eq.s32.totalorder %s11, 0
    %p155 = por %p153, %p154
    %p156 = scmp.ne.s32.totalorder %s145, %s148
    %p157 = scmp.eq.s32.totalorder %s16, 1
    %p158 = por %p156, %p157
    %p159 = scmp.ne.s32.totalorder %s148, %s149
    %p160 = scmp.eq.s32.totalorder %s16, 0
    %p161 = por %p159, %p160
    %p162 = scmp.ne.s32.totalorder %s148, %s149
    %p163 = scmp.eq.s32.totalorder %s17, 1
    %p164 = por %p162, %p163
    %p166 = scmp.ne.s32.totalorder %s149, %s165
    %p167 = scmp.eq.s32.totalorder %s17, 0
    %p168 = por %p166, %p167
    %p169 = scmp.le.s32.totalorder 1, %s11
    %p170 = scmp.lt.s32.totalorder %s11, 3
    %p171 = pnand %p169, %p170
    %p172 = pneg %p171
    // Predicated region
    $region9: #{tpu_custom_call.1} parent=5 // pred_check
      _
    $region10: #{tpu_custom_call.1} parent=5 // pred_check_branch
      %174 = sbr.rel (%p171) target = $region12
    $region11: #{tpu_custom_call.1} parent=5 // pred_region
      %s175 = ssub.s32 %s11, 1
      // Predicated region
      $region13: #{tpu_custom_call.1} parent=11 // pred_check
        %p176 = pneg %p70
      $region14: #{tpu_custom_call.1} parent=11 // pred_check_branch
        %178 = sbr.rel (%p176) target = $region16
      $region15: #{tpu_custom_call.1} parent=11 // pred_region
        _
      $region16: #{tpu_custom_call.1} parent=11 // pred_fallthru
        _
      // Predicated region
      $region17: #{tpu_custom_call.1} parent=11 // pred_check
        %p179 = pneg %p91
      $region18: #{tpu_custom_call.1} parent=11 // pred_check_branch
        %181 = sbr.rel (%p179) target = $region20
      $region19: #{tpu_custom_call.1} parent=11 // pred_region
        _
      $region20: #{tpu_custom_call.1} parent=11 // pred_fallthru
        _
      // Predicated region
      $region21: #{tpu_custom_call.1} parent=11 // pred_check
        %p182 = pneg %p112
      $region22: #{tpu_custom_call.1} parent=11 // pred_check_branch
        %184 = sbr.rel (%p182) target = $region24
      $region23: #{tpu_custom_call.1} parent=11 // pred_region
        _
      $region24: #{tpu_custom_call.1} parent=11 // pred_fallthru
        _
      // Predicated region
      $region25: #{tpu_custom_call.1} parent=11 // pred_check
        %p185 = pneg %p133
      $region26: #{tpu_custom_call.1} parent=11 // pred_check_branch
        %187 = sbr.rel (%p185) target = $region28
      $region27: #{tpu_custom_call.1} parent=11 // pred_region
        _
      $region28: #{tpu_custom_call.1} parent=11 // pred_fallthru
        _
    $region12: #{tpu_custom_call.1} parent=5 // pred_fallthru
      _
    %p188 = scmp.lt.s32.totalorder %s11, 2
    // Predicated region
    $region29: #{tpu_custom_call.1} parent=5 // pred_check
      %p189 = pneg %p188
    $region30: #{tpu_custom_call.1} parent=5 // pred_check_branch
      %191 = sbr.rel (%p189) target = $region32
    $region31: #{tpu_custom_call.1} parent=5 // pred_region
      // Predicated region
      $region33: #{tpu_custom_call.1} parent=31 // pred_check
        %p192 = pneg %p43
      $region34: #{tpu_custom_call.1} parent=31 // pred_check_branch
        %194 = sbr.rel (%p192) target = $region36
      $region35: #{tpu_custom_call.1} parent=31 // pred_region
        %p195 = scmp.lt.s32.totalorder %s18, 1
        %s196 = scalar_select %p195, %s18, 1
        %s197 = smul.addr %s196, 8
        %s198 = smul.addr %s197, 8
        %s199 = scalar_lea.vmem %s0, %s198
      $region36: #{tpu_custom_call.1} parent=31 // pred_fallthru
        _
    $region32: #{tpu_custom_call.1} parent=5 // pred_fallthru
      _
    %p200 = scmp.le.s32.totalorder 1, %s11
    %p201 = scmp.lt.s32.totalorder %s11, 3
    %p202 = pnand %p200, %p201
    %p203 = pneg %p202
    // Predicated region
    $region37: #{tpu_custom_call.1} parent=5 // pred_check
      _
    $region38: #{tpu_custom_call.1} parent=5 // pred_check_branch
      %205 = sbr.rel (%p202) target = $region40
    $region39: #{tpu_custom_call.1} parent=5 // pred_region
      %s206 = ssub.s32 %s11, 1
      %p207 = scmp.lt.s32.totalorder %s20, 1
      %s208 = scalar_select %p207, %s20, 1
      %s209 = smul.addr %s208, 8
      %s210 = smul.addr %s209, 8
      %s211 = scalar_lea.vmem %s0, %s210
      %p212 = pneg %p49
      %p213 = pneg %p46
      %p214 = pneg %p70
      %p215 = pneg %p67
      %p216 = pneg %p91
      %p217 = pneg %p88
      %p218 = pneg %p112
      %p219 = pneg %p109
      %p220 = pneg %p133
      %p221 = pneg %p130
      %p222 = pneg %p161
      %p223 = pneg %p158
      %s224 = smul.u32 8, %s21
      %p225 = scmp.lt.s32.totalorder %s20, 1
      %s226 = scalar_select %p225, %s20, 1
      %p227 = scmp.lt.s32.totalorder %s224, 7
      %s228 = scalar_select %p227, %s224, 7
      %s229 = smul.addr %s226, 8
      %s230 = sadd.s32 %s228, %s229
      %s231 = smul.addr %s230, 8
      %s232 = scalar_lea.vmem %s5, %s231
      %p233 = scmp.lt.s32.totalorder %s20, 1
      %s234 = scalar_select %p233, %s20, 1
      %s235 = smul.addr %s234, 8
      %s236 = smul.addr %s235, 8
      %s237 = scalar_lea.vmem %s0, %s236
      %s238 = smul.u32 8, %s21
      %p239 = scmp.lt.s32.totalorder %s20, 1
      %s240 = scalar_select %p239, %s20, 1
      %p241 = scmp.lt.s32.totalorder %s238, 7
      %s242 = scalar_select %p241, %s238, 7
      %s243 = smul.addr %s240, 8
      %s244 = sadd.s32 %s242, %s243
      %s245 = smul.addr %s244, 8
      %s246 = scalar_lea.vmem %s5, %s245
      %s247 = smul.u32 8, %s21
      %p248 = scmp.eq.s32.totalorder %s21, 0
      // Predicated region
      $region41: #{tpu_custom_call.1} parent=39 // pred_check
        %p249 = pneg %p248
      $region42: #{tpu_custom_call.1} parent=39 // pred_check_branch
        %251 = sbr.rel (%p249) target = $region44
      $region43: #{tpu_custom_call.1} parent=39 // pred_region
        %v252 = vld [vmem:[%s237] sm:$0xff]
        %v253 = vld [vmem:[%s237 + $0x8] sm:$0xff]
        %v254 = vld [vmem:[%s237 + $0x10] sm:$0xff]
        %v255 = vld [vmem:[%s237 + $0x18] sm:$0xff]
        %v256 = vld [vmem:[%s237 + $0x20] sm:$0xff]
        %v257 = vld [vmem:[%s237 + $0x28] sm:$0xff]
        %v258 = vld [vmem:[%s237 + $0x30] sm:$0xff]
        %v259 = vld [vmem:[%s237 + $0x38] sm:$0xff]
        %v260 = vld [vmem:[%s2] sm:$0xff]
        %v261 = vld [vmem:[%s2 + $0x8] sm:$0xff]
        %v262 = vld [vmem:[%s2 + $0x10] sm:$0xff]
        %v263 = vld [vmem:[%s2 + $0x18] sm:$0xff]
        %vm264 = vcmask 261120
        %v266 = vsel %vm264, %v252, 0
        %v269 = vsel %vm264, %v253, 0
        %v272 = vsel %vm264, %v254, 0
        %v275 = vsel %vm264, %v255, 0
        %v278 = vsel %vm264, %v256, 0
        %v281 = vsel %vm264, %v257, 0
        %v284 = vsel %vm264, %v258, 0
        %v287 = vsel %vm264, %v259, 0
        %289 = vmatprep.subr.mxu0 0.0
        %290 = vmatpush1.msra.mxu0 0.0
        %291 = vmatprep.subr.mxu0 0.0
        %292 = vmatpush1.msra.mxu0 0.0
        %293 = vmatprep.subr.mxu0 0.0
        %294 = vmatpush1.msra.mxu0 0.0
        %295 = vmatprep.subr.mxu0 0.0
        %296 = vmatpush1.msra.mxu0 0.0
        %297 = vmatprep.subr.mxu0 0.0
        %298 = vmatpush1.msra.mxu0 0.0
        %299 = vmatprep.subr.mxu0 0.0
        %300 = vmatpush1.msra.mxu0 0.0
        %301 = vmatprep.subr.mxu0 0.0
        %302 = vmatpush1.msra.mxu0 0.0
        %303 = vmatprep.subr.mxu0 0.0
        %304 = vmatpush1.msra.mxu0 0.0
        %305 = vmatprep.subr.mxu0 0.0
        %306 = vmatpush1.msra.mxu0 0.0
        %307 = vmatprep.subr.mxu0 0.0
        %308 = vmatpush1.msra.mxu0 0.0
        %309 = vmatprep.subr.mxu0 0.0
        %310 = vmatpush1.msra.mxu0 0.0
        %311 = vmatprep.subr.mxu0 0.0
        %312 = vmatpush1.msra.mxu0 0.0
        %313 = vmatprep.subr.mxu0 0.0
        %314 = vmatpush1.msra.mxu0 %v263
        %315 = vmatprep.subr.mxu0 0.0
        %316 = vmatpush1.msra.mxu0 %v262
        %317 = vmatprep.subr.mxu0 0.0
        %318 = vmatpush1.msra.mxu0 %v261
        %319 = vmatprep.subr.mxu0 0.0
        %320 = vmatpush1.msra.mxu0 %v260
        %321 = vmatprep.subr.mxu0 0.0
        %322 = vmatpush2.msra.mxu0 0.0
        %323 = vmatprep.subr.mxu0 0.0
        %324 = vmatpush2.msra.mxu0 0.0
        %325 = vmatprep.subr.mxu0 0.0
        %326 = vmatpush2.msra.mxu0 0.0
        %327 = vmatprep.subr.mxu0 0.0
        %328 = vmatpush2.msra.mxu0 0.0
        %329 = vmatprep.subr.mxu0 0.0
        %330 = vmatpush2.msra.mxu0 0.0
        %331 = vmatprep.subr.mxu0 0.0
        %332 = vmatpush2.msra.mxu0 0.0
        %333 = vmatprep.subr.mxu0 0.0
        %334 = vmatpush2.msra.mxu0 0.0
        %335 = vmatprep.subr.mxu0 0.0
        %336 = vmatpush2.msra.mxu0 0.0
        %337 = vmatprep.subr.mxu0 0.0
        %338 = vmatpush2.msra.mxu0 0.0
        %339 = vmatprep.subr.mxu0 0.0
        %340 = vmatpush2.msra.mxu0 0.0
        %341 = vmatprep.subr.mxu0 0.0
        %342 = vmatpush2.msra.mxu0 0.0
        %343 = vmatprep.subr.mxu0 0.0
        %344 = vmatpush2.msra.mxu0 0.0
        %345 = vmatprep.subr.mxu0 0.0
        %346 = vmatpush2.msra.mxu0 0.0
        %347 = vmatprep.subr.mxu0 0.0
        %348 = vmatpush2.msra.mxu0 0.0
        %349 = vmatprep.subr.mxu0 0.0
        %350 = vmatpush2.msra.mxu0 0.0
        %351 = vmatprep.subr.mxu0 0.0
        %352 = vmatpush2.msra.mxu0 0.0
        %353 = vmatprep.mubr.f32.mxu0 0.0
        %354 = vmatmul.mubr.f32.gmra.mxu0 %v266
        %v355 = vpop.f32.mrf.mxu0
        %v356 = vadd.f32 0.0, %v355
        %v357 = vpop.f32.mrf.mxu0
        %358 = vmatprep.mubr.f32.mxu0 0.0
        %359 = vmatmul.mubr.f32.gmra.mxu0 %v269
        %v360 = vpop.f32.mrf.mxu0
        %v361 = vadd.f32 0.0, %v360
        %v362 = vpop.f32.mrf.mxu0
        %363 = vmatprep.mubr.f32.mxu0 0.0
        %364 = vmatmul.mubr.f32.gmra.mxu0 %v272
        %v365 = vpop.f32.mrf.mxu0
        %v366 = vadd.f32 0.0, %v365
        %v367 = vpop.f32.mrf.mxu0
        %368 = vmatprep.mubr.f32.mxu0 0.0
        %369 = vmatmul.mubr.f32.gmra.mxu0 %v275
        %v370 = vpop.f32.mrf.mxu0
        %v371 = vadd.f32 0.0, %v370
        %v372 = vpop.f32.mrf.mxu0
        %373 = vmatprep.mubr.f32.mxu0 0.0
        %374 = vmatmul.mubr.f32.gmra.mxu0 %v278
        %v375 = vpop.f32.mrf.mxu0
        %v376 = vadd.f32 0.0, %v375
        %v377 = vpop.f32.mrf.mxu0
        %378 = vmatprep.mubr.f32.mxu0 0.0
        %379 = vmatmul.mubr.f32.gmra.mxu0 %v281
        %v380 = vpop.f32.mrf.mxu0
        %v381 = vadd.f32 0.0, %v380
        %v382 = vpop.f32.mrf.mxu0
        %383 = vmatprep.mubr.f32.mxu0 0.0
        %384 = vmatmul.mubr.f32.gmra.mxu0 %v284
        %v385 = vpop.f32.mrf.mxu0
        %v386 = vadd.f32 0.0, %v385
        %v387 = vpop.f32.mrf.mxu0
        %388 = vmatprep.mubr.f32.mxu0 0.0
        %389 = vmatmul.mubr.f32.gmra.mxu0 %v287
        %v390 = vpop.f32.mrf.mxu0
        %v391 = vadd.f32 0.0, %v390
        %v392 = vpop.f32.mrf.mxu0
        %393 = vdwg.mxu0
        %394 = vst.msk [vmem:[#allocation2] sm:$0xff] %vm264, %v356
        %395 = vst.msk [vmem:[#allocation2 + $0x8] sm:$0xff] %vm264, %v361
        %396 = vst.msk [vmem:[#allocation2 + $0x10] sm:$0xff] %vm264, %v366
        %397 = vst.msk [vmem:[#allocation2 + $0x18] sm:$0xff] %vm264, %v371
        %398 = vst.msk [vmem:[#allocation2 + $0x20] sm:$0xff] %vm264, %v376
        %399 = vst.msk [vmem:[#allocation2 + $0x28] sm:$0xff] %vm264, %v381
        %400 = vst.msk [vmem:[#allocation2 + $0x30] sm:$0xff] %vm264, %v386
        %401 = vst.msk [vmem:[#allocation2 + $0x38] sm:$0xff] %vm264, %v391
        %v402 = vld [vmem:[%s3] sm:$0xff]
        %v403 = vld [vmem:[%s3 + $0x8] sm:$0xff]
        %v404 = vld [vmem:[%s3 + $0x10] sm:$0xff]
        %v405 = vld [vmem:[%s3 + $0x18] sm:$0xff]
        %406 = vmatprep.subr.mxu0 0.0
        %407 = vmatpush1.msra.mxu0 0.0
        %408 = vmatprep.subr.mxu0 0.0
        %409 = vmatpush1.msra.mxu0 0.0
        %410 = vmatprep.subr.mxu0 0.0
        %411 = vmatpush1.msra.mxu0 0.0
        %412 = vmatprep.subr.mxu0 0.0
        %413 = vmatpush1.msra.mxu0 0.0
        %414 = vmatprep.subr.mxu0 0.0
        %415 = vmatpush1.msra.mxu0 0.0
        %416 = vmatprep.subr.mxu0 0.0
        %417 = vmatpush1.msra.mxu0 0.0
        %418 = vmatprep.subr.mxu0 0.0
        %419 = vmatpush1.msra.mxu0 0.0
        %420 = vmatprep.subr.mxu0 0.0
        %421 = vmatpush1.msra.mxu0 0.0
        %422 = vmatprep.subr.mxu0 0.0
        %423 = vmatpush1.msra.mxu0 0.0
        %424 = vmatprep.subr.mxu0 0.0
        %425 = vmatpush1.msra.mxu0 0.0
        %426 = vmatprep.subr.mxu0 0.0
        %427 = vmatpush1.msra.mxu0 0.0
        %428 = vmatprep.subr.mxu0 0.0
        %429 = vmatpush1.msra.mxu0 0.0
        %430 = vmatprep.subr.mxu0 0.0
        %431 = vmatpush1.msra.mxu0 %v405
        %432 = vmatprep.subr.mxu0 0.0
        %433 = vmatpush1.msra.mxu0 %v404
        %434 = vmatprep.subr.mxu0 0.0
        %435 = vmatpush1.msra.mxu0 %v403
        %436 = vmatprep.subr.mxu0 0.0
        %437 = vmatpush1.msra.mxu0 %v402
        %438 = vmatprep.subr.mxu0 0.0
        %439 = vmatpush2.msra.mxu0 0.0
        %440 = vmatprep.subr.mxu0 0.0
        %441 = vmatpush2.msra.mxu0 0.0
        %442 = vmatprep.subr.mxu0 0.0
        %443 = vmatpush2.msra.mxu0 0.0
        %444 = vmatprep.subr.mxu0 0.0
        %445 = vmatpush2.msra.mxu0 0.0
        %446 = vmatprep.subr.mxu0 0.0
        %447 = vmatpush2.msra.mxu0 0.0
        %448 = vmatprep.subr.mxu0 0.0
        %449 = vmatpush2.msra.mxu0 0.0
        %450 = vmatprep.subr.mxu0 0.0
        %451 = vmatpush2.msra.mxu0 0.0
        %452 = vmatprep.subr.mxu0 0.0
        %453 = vmatpush2.msra.mxu0 0.0
        %454 = vmatprep.subr.mxu0 0.0
        %455 = vmatpush2.msra.mxu0 0.0
        %456 = vmatprep.subr.mxu0 0.0
        %457 = vmatpush2.msra.mxu0 0.0
        %458 = vmatprep.subr.mxu0 0.0
        %459 = vmatpush2.msra.mxu0 0.0
        %460 = vmatprep.subr.mxu0 0.0
        %461 = vmatpush2.msra.mxu0 0.0
        %462 = vmatprep.subr.mxu0 0.0
        %463 = vmatpush2.msra.mxu0 0.0
        %464 = vmatprep.subr.mxu0 0.0
        %465 = vmatpush2.msra.mxu0 0.0
        %466 = vmatprep.subr.mxu0 0.0
        %467 = vmatpush2.msra.mxu0 0.0
        %468 = vmatprep.subr.mxu0 0.0
        %469 = vmatpush2.msra.mxu0 0.0
        %470 = vmatprep.mubr.f32.mxu0 0.0
        %471 = vmatmul.mubr.f32.gmra.mxu0 %v266
        %v472 = vpop.f32.mrf.mxu0
        %v473 = vadd.f32 0.0, %v472
        %v474 = vpop.f32.mrf.mxu0
        %475 = vmatprep.mubr.f32.mxu0 0.0
        %476 = vmatmul.mubr.f32.gmra.mxu0 %v269
        %v477 = vpop.f32.mrf.mxu0
        %v478 = vadd.f32 0.0, %v477
        %v479 = vpop.f32.mrf.mxu0
        %480 = vmatprep.mubr.f32.mxu0 0.0
        %481 = vmatmul.mubr.f32.gmra.mxu0 %v272
        %v482 = vpop.f32.mrf.mxu0
        %v483 = vadd.f32 0.0, %v482
        %v484 = vpop.f32.mrf.mxu0
        %485 = vmatprep.mubr.f32.mxu0 0.0
        %486 = vmatmul.mubr.f32.gmra.mxu0 %v275
        %v487 = vpop.f32.mrf.mxu0
        %v488 = vadd.f32 0.0, %v487
        %v489 = vpop.f32.mrf.mxu0
        %490 = vmatprep.mubr.f32.mxu0 0.0
        %491 = vmatmul.mubr.f32.gmra.mxu0 %v278
        %v492 = vpop.f32.mrf.mxu0
        %v493 = vadd.f32 0.0, %v492
        %v494 = vpop.f32.mrf.mxu0
        %495 = vmatprep.mubr.f32.mxu0 0.0
        %496 = vmatmul.mubr.f32.gmra.mxu0 %v281
        %v497 = vpop.f32.mrf.mxu0
        %v498 = vadd.f32 0.0, %v497
        %v499 = vpop.f32.mrf.mxu0
        %500 = vmatprep.mubr.f32.mxu0 0.0
        %501 = vmatmul.mubr.f32.gmra.mxu0 %v284
        %v502 = vpop.f32.mrf.mxu0
        %v503 = vadd.f32 0.0, %v502
        %v504 = vpop.f32.mrf.mxu0
        %505 = vmatprep.mubr.f32.mxu0 0.0
        %506 = vmatmul.mubr.f32.gmra.mxu0 %v287
        %v507 = vpop.f32.mrf.mxu0
        %v508 = vadd.f32 0.0, %v507
        %v509 = vpop.f32.mrf.mxu0
        %510 = vdwg.mxu0
        %511 = vst.msk [vmem:[#allocation3] sm:$0xff] %vm264, %v473
        %512 = vst.msk [vmem:[#allocation3 + $0x8] sm:$0xff] %vm264, %v478
        %513 = vst.msk [vmem:[#allocation3 + $0x10] sm:$0xff] %vm264, %v483
        %514 = vst.msk [vmem:[#allocation3 + $0x18] sm:$0xff] %vm264, %v488
        %515 = vst.msk [vmem:[#allocation3 + $0x20] sm:$0xff] %vm264, %v493
        %516 = vst.msk [vmem:[#allocation3 + $0x28] sm:$0xff] %vm264, %v498
        %517 = vst.msk [vmem:[#allocation3 + $0x30] sm:$0xff] %vm264, %v503
        %518 = vst.msk [vmem:[#allocation3 + $0x38] sm:$0xff] %vm264, %v508
      $region44: #{tpu_custom_call.1} parent=39 // pred_fallthru
        _
      %s519 = smul.u32 %s21, 64
      %s520 = scalar_lea.vmem %s237, %s519
      %v521 = vld [vmem:[%s520] sm:$0xff]
      %v522 = vld [vmem:[%s520 + $0x8] sm:$0xff]
      %v523 = vld [vmem:[%s520 + $0x10] sm:$0xff]
      %v524 = vld [vmem:[%s520 + $0x18] sm:$0xff]
      %v525 = vld [vmem:[%s520 + $0x20] sm:$0xff]
      %v526 = vld [vmem:[%s520 + $0x28] sm:$0xff]
      %v527 = vld [vmem:[%s520 + $0x30] sm:$0xff]
      %v528 = vld [vmem:[%s520 + $0x38] sm:$0xff]
      %v529 = vld [vmem:[%s1] sm:$0xff]
      %v530 = vld [vmem:[%s1 + $0x8] sm:$0xff]
      %v531 = vld [vmem:[%s1 + $0x10] sm:$0xff]
      %v532 = vld [vmem:[%s1 + $0x18] sm:$0xff]
      %vm533 = vcmask 261120
      %v535 = vsel %vm533, %v521, 0
      %v538 = vsel %vm533, %v522, 0
      %v541 = vsel %vm533, %v523, 0
      %v544 = vsel %vm533, %v524, 0
      %v547 = vsel %vm533, %v525, 0
      %v550 = vsel %vm533, %v526, 0
      %v553 = vsel %vm533, %v527, 0
      %v556 = vsel %vm533, %v528, 0
      %558 = vmatprep.subr.mxu0 0.0
      %559 = vmatpush1.msra.mxu0 0.0
      %560 = vmatprep.subr.mxu0 0.0
      %561 = vmatpush1.msra.mxu0 0.0
      %562 = vmatprep.subr.mxu0 0.0
      %563 = vmatpush1.msra.mxu0 0.0
      %564 = vmatprep.subr.mxu0 0.0
      %565 = vmatpush1.msra.mxu0 0.0
      %566 = vmatprep.subr.mxu0 0.0
      %567 = vmatpush1.msra.mxu0 0.0
      %568 = vmatprep.subr.mxu0 0.0
      %569 = vmatpush1.msra.mxu0 0.0
      %570 = vmatprep.subr.mxu0 0.0
      %571 = vmatpush1.msra.mxu0 0.0
      %572 = vmatprep.subr.mxu0 0.0
      %573 = vmatpush1.msra.mxu0 0.0
      %574 = vmatprep.subr.mxu0 0.0
      %575 = vmatpush1.msra.mxu0 0.0
      %576 = vmatprep.subr.mxu0 0.0
      %577 = vmatpush1.msra.mxu0 0.0
      %578 = vmatprep.subr.mxu0 0.0
      %579 = vmatpush1.msra.mxu0 0.0
      %580 = vmatprep.subr.mxu0 0.0
      %581 = vmatpush1.msra.mxu0 0.0
      %582 = vmatprep.subr.mxu0 0.0
      %583 = vmatpush1.msra.mxu0 %v532
      %584 = vmatprep.subr.mxu0 0.0
      %585 = vmatpush1.msra.mxu0 %v531
      %586 = vmatprep.subr.mxu0 0.0
      %587 = vmatpush1.msra.mxu0 %v530
      %588 = vmatprep.subr.mxu0 0.0
      %589 = vmatpush1.msra.mxu0 %v529
      %590 = vmatprep.subr.mxu0 0.0
      %591 = vmatpush2.msra.mxu0 0.0
      %592 = vmatprep.subr.mxu0 0.0
      %593 = vmatpush2.msra.mxu0 0.0
      %594 = vmatprep.subr.mxu0 0.0
      %595 = vmatpush2.msra.mxu0 0.0
      %596 = vmatprep.subr.mxu0 0.0
      %597 = vmatpush2.msra.mxu0 0.0
      %598 = vmatprep.subr.mxu0 0.0
      %599 = vmatpush2.msra.mxu0 0.0
      %600 = vmatprep.subr.mxu0 0.0
      %601 = vmatpush2.msra.mxu0 0.0
      %602 = vmatprep.subr.mxu0 0.0
      %603 = vmatpush2.msra.mxu0 0.0
      %604 = vmatprep.subr.mxu0 0.0
      %605 = vmatpush2.msra.mxu0 0.0
      %606 = vmatprep.subr.mxu0 0.0
      %607 = vmatpush2.msra.mxu0 0.0
      %608 = vmatprep.subr.mxu0 0.0
      %609 = vmatpush2.msra.mxu0 0.0
      %610 = vmatprep.subr.mxu0 0.0
      %611 = vmatpush2.msra.mxu0 0.0
      %612 = vmatprep.subr.mxu0 0.0
      %613 = vmatpush2.msra.mxu0 0.0
      %614 = vmatprep.subr.mxu0 0.0
      %615 = vmatpush2.msra.mxu0 0.0
      %616 = vmatprep.subr.mxu0 0.0
      %617 = vmatpush2.msra.mxu0 0.0
      %618 = vmatprep.subr.mxu0 0.0
      %619 = vmatpush2.msra.mxu0 0.0
      %620 = vmatprep.subr.mxu0 0.0
      %621 = vmatpush2.msra.mxu0 0.0
      %622 = vmatprep.mubr.f32.mxu0 0.0
      %623 = vmatmul.mubr.f32.gmra.mxu0 %v535
      %v624 = vpop.f32.mrf.mxu0
      %v625 = vadd.f32 0.0, %v624
      %v626 = vpop.f32.mrf.mxu0
      %627 = vmatprep.mubr.f32.mxu0 0.0
      %628 = vmatmul.mubr.f32.gmra.mxu0 %v538
      %v629 = vpop.f32.mrf.mxu0
      %v630 = vadd.f32 0.0, %v629
      %v631 = vpop.f32.mrf.mxu0
      %632 = vmatprep.mubr.f32.mxu0 0.0
      %633 = vmatmul.mubr.f32.gmra.mxu0 %v541
      %v634 = vpop.f32.mrf.mxu0
      %v635 = vadd.f32 0.0, %v634
      %v636 = vpop.f32.mrf.mxu0
      %637 = vmatprep.mubr.f32.mxu0 0.0
      %638 = vmatmul.mubr.f32.gmra.mxu0 %v544
      %v639 = vpop.f32.mrf.mxu0
      %v640 = vadd.f32 0.0, %v639
      %v641 = vpop.f32.mrf.mxu0
      %642 = vmatprep.mubr.f32.mxu0 0.0
      %643 = vmatmul.mubr.f32.gmra.mxu0 %v547
      %v644 = vpop.f32.mrf.mxu0
      %v645 = vadd.f32 0.0, %v644
      %v646 = vpop.f32.mrf.mxu0
      %647 = vmatprep.mubr.f32.mxu0 0.0
      %648 = vmatmul.mubr.f32.gmra.mxu0 %v550
      %v649 = vpop.f32.mrf.mxu0
      %v650 = vadd.f32 0.0, %v649
      %v651 = vpop.f32.mrf.mxu0
      %652 = vmatprep.mubr.f32.mxu0 0.0
      %653 = vmatmul.mubr.f32.gmra.mxu0 %v553
      %v654 = vpop.f32.mrf.mxu0
      %v655 = vadd.f32 0.0, %v654
      %v656 = vpop.f32.mrf.mxu0
      %657 = vmatprep.mubr.f32.mxu0 0.0
      %658 = vmatmul.mubr.f32.gmra.mxu0 %v556
      %v659 = vpop.f32.mrf.mxu0
      %v660 = vadd.f32 0.0, %v659
      %v661 = vpop.f32.mrf.mxu0
      %662 = vdwg.mxu0
      %v663 = vmul.f32 %v625, 0.35355338
      %v664 = vmul.f32 %v630, 0.35355338
      %v665 = vmul.f32 %v635, 0.35355338
      %v666 = vmul.f32 %v640, 0.35355338
      %v667 = vmul.f32 %v645, 0.35355338
      %v668 = vmul.f32 %v650, 0.35355338
      %v669 = vmul.f32 %v655, 0.35355338
      %v670 = vmul.f32 %v660, 0.35355338
      %v671 = vld [vmem:[#allocation2] sm:$0xff]
      %v672 = vld [vmem:[#allocation2 + $0x8] sm:$0xff]
      %v673 = vld [vmem:[#allocation2 + $0x10] sm:$0xff]
      %v674 = vld [vmem:[#allocation2 + $0x18] sm:$0xff]
      %v675 = vld [vmem:[#allocation2 + $0x20] sm:$0xff]
      %v676 = vld [vmem:[#allocation2 + $0x28] sm:$0xff]
      %v677 = vld [vmem:[#allocation2 + $0x30] sm:$0xff]
      %v678 = vld [vmem:[#allocation2 + $0x38] sm:$0xff]
      %vm679 = vcmask 64512
      %v681 = vsel %vm679, %v663, 0
      %v684 = vsel %vm679, %v664, 0
      %v687 = vsel %vm679, %v665, 0
      %v690 = vsel %vm679, %v666, 0
      %v693 = vsel %vm679, %v667, 0
      %v696 = vsel %vm679, %v668, 0
      %v699 = vsel %vm679, %v669, 0
      %v702 = vsel %vm679, %v670, 0
      %v705 = vsel %vm679, %v671, 0
      %v708 = vsel %vm679, %v672, 0
      %v711 = vsel %vm679, %v673, 0
      %v714 = vsel %vm679, %v674, 0
      %v717 = vsel %vm679, %v675, 0
      %v720 = vsel %vm679, %v676, 0
      %v723 = vsel %vm679, %v677, 0
      %v726 = vsel %vm679, %v678, 0
      %728 = vmatprep.subr.mxu0 0.0
      %729 = vmatpush1.xpose.msra.mxu0 0.0
      %730 = vmatprep.subr.mxu0 0.0
      %731 = vmatpush1.xpose.msra.mxu0 0.0
      %732 = vmatprep.subr.mxu0 0.0
      %733 = vmatpush1.xpose.msra.mxu0 0.0
      %734 = vmatprep.subr.mxu0 0.0
      %735 = vmatpush1.xpose.msra.mxu0 0.0
      %736 = vmatprep.subr.mxu0 0.0
      %737 = vmatpush1.xpose.msra.mxu0 0.0
      %738 = vmatprep.subr.mxu0 0.0
      %739 = vmatpush1.xpose.msra.mxu0 0.0
      %740 = vmatprep.subr.mxu0 0.0
      %741 = vmatpush1.xpose.msra.mxu0 0.0
      %742 = vmatprep.subr.mxu0 0.0
      %743 = vmatpush1.xpose.msra.mxu0 0.0
      %744 = vmatprep.subr.mxu0 0.0
      %745 = vmatpush1.xpose.msra.mxu0 %v726
      %746 = vmatprep.subr.mxu0 0.0
      %747 = vmatpush1.xpose.msra.mxu0 %v723
      %748 = vmatprep.subr.mxu0 0.0
      %749 = vmatpush1.xpose.msra.mxu0 %v720
      %750 = vmatprep.subr.mxu0 0.0
      %751 = vmatpush1.xpose.msra.mxu0 %v717
      %752 = vmatprep.subr.mxu0 0.0
      %753 = vmatpush1.xpose.msra.mxu0 %v714
      %754 = vmatprep.subr.mxu0 0.0
      %755 = vmatpush1.xpose.msra.mxu0 %v711
      %756 = vmatprep.subr.mxu0 0.0
      %757 = vmatpush1.xpose.msra.mxu0 %v708
      %758 = vmatprep.subr.mxu0 0.0
      %759 = vmatpush1.xpose.msra.mxu0 %v705
      %760 = vmatprep.subr.mxu0 0.0
      %761 = vmatpush2.xpose.msra.mxu0 0.0
      %762 = vmatprep.subr.mxu0 0.0
      %763 = vmatpush2.xpose.msra.mxu0 0.0
      %764 = vmatprep.subr.mxu0 0.0
      %765 = vmatpush2.xpose.msra.mxu0 0.0
      %766 = vmatprep.subr.mxu0 0.0
      %767 = vmatpush2.xpose.msra.mxu0 0.0
      %768 = vmatprep.subr.mxu0 0.0
      %769 = vmatpush2.xpose.msra.mxu0 0.0
      %770 = vmatprep.subr.mxu0 0.0
      %771 = vmatpush2.xpose.msra.mxu0 0.0
      %772 = vmatprep.subr.mxu0 0.0
      %773 = vmatpush2.xpose.msra.mxu0 0.0
      %774 = vmatprep.subr.mxu0 0.0
      %775 = vmatpush2.xpose.msra.mxu0 0.0
      %776 = vmatprep.subr.mxu0 0.0
      %777 = vmatpush2.xpose.msra.mxu0 0.0
      %778 = vmatprep.subr.mxu0 0.0
      %779 = vmatpush2.xpose.msra.mxu0 0.0
      %780 = vmatprep.subr.mxu0 0.0
      %781 = vmatpush2.xpose.msra.mxu0 0.0
      %782 = vmatprep.subr.mxu0 0.0
      %783 = vmatpush2.xpose.msra.mxu0 0.0
      %784 = vmatprep.subr.mxu0 0.0
      %785 = vmatpush2.xpose.msra.mxu0 0.0
      %786 = vmatprep.subr.mxu0 0.0
      %787 = vmatpush2.xpose.msra.mxu0 0.0
      %788 = vmatprep.subr.mxu0 0.0
      %789 = vmatpush2.xpose.msra.mxu0 0.0
      %790 = vmatprep.subr.mxu0 0.0
      %791 = vmatpush2.xpose.msra.mxu0 0.0
      %792 = vmatprep.mubr.f32.mxu0 0.0
      %793 = vmatmul.mubr.f32.gmra.mxu0 %v681
      %v794 = vpop.f32.mrf.mxu0
      %v795 = vadd.f32 0.0, %v794
      %v796 = vpop.f32.mrf.mxu0
      %797 = vmatprep.mubr.f32.mxu0 0.0
      %798 = vmatmul.mubr.f32.gmra.mxu0 %v684
      %v799 = vpop.f32.mrf.mxu0
      %v800 = vadd.f32 0.0, %v799
      %v801 = vpop.f32.mrf.mxu0
      %802 = vmatprep.mubr.f32.mxu0 0.0
      %803 = vmatmul.mubr.f32.gmra.mxu0 %v687
      %v804 = vpop.f32.mrf.mxu0
      %v805 = vadd.f32 0.0, %v804
      %v806 = vpop.f32.mrf.mxu0
      %807 = vmatprep.mubr.f32.mxu0 0.0
      %808 = vmatmul.mubr.f32.gmra.mxu0 %v690
      %v809 = vpop.f32.mrf.mxu0
      %v810 = vadd.f32 0.0, %v809
      %v811 = vpop.f32.mrf.mxu0
      %812 = vmatprep.mubr.f32.mxu0 0.0
      %813 = vmatmul.mubr.f32.gmra.mxu0 %v693
      %v814 = vpop.f32.mrf.mxu0
      %v815 = vadd.f32 0.0, %v814
      %v816 = vpop.f32.mrf.mxu0
      %817 = vmatprep.mubr.f32.mxu0 0.0
      %818 = vmatmul.mubr.f32.gmra.mxu0 %v696
      %v819 = vpop.f32.mrf.mxu0
      %v820 = vadd.f32 0.0, %v819
      %v821 = vpop.f32.mrf.mxu0
      %822 = vmatprep.mubr.f32.mxu0 0.0
      %823 = vmatmul.mubr.f32.gmra.mxu0 %v699
      %v824 = vpop.f32.mrf.mxu0
      %v825 = vadd.f32 0.0, %v824
      %v826 = vpop.f32.mrf.mxu0
      %827 = vmatprep.mubr.f32.mxu0 0.0
      %828 = vmatmul.mubr.f32.gmra.mxu0 %v702
      %v829 = vpop.f32.mrf.mxu0
      %v830 = vadd.f32 0.0, %v829
      %v831 = vpop.f32.mrf.mxu0
      %832 = vdwg.mxu0
      %vm833 = vcmask 523264
      %v834 = vsel %vm833, %v795, -inf
      %835 = vmax.xlane.f32.xlu0 %v834
      %v836 = vpop.xlane.xlu0 %835
      %v837 = vsel %vm833, %v800, -inf
      %838 = vmax.xlane.f32.xlu0 %v837
      %v839 = vpop.xlane.xlu0 %838
      %v840 = vsel %vm833, %v805, -inf
      %841 = vmax.xlane.f32.xlu0 %v840
      %v842 = vpop.xlane.xlu0 %841
      %v843 = vsel %vm833, %v810, -inf
      %844 = vmax.xlane.f32.xlu0 %v843
      %v845 = vpop.xlane.xlu0 %844
      %v846 = vsel %vm833, %v815, -inf
      %847 = vmax.xlane.f32.xlu0 %v846
      %v848 = vpop.xlane.xlu0 %847
      %v849 = vsel %vm833, %v820, -inf
      %850 = vmax.xlane.f32.xlu0 %v849
      %v851 = vpop.xlane.xlu0 %850
      %v852 = vsel %vm833, %v825, -inf
      %853 = vmax.xlane.f32.xlu0 %v852
      %v854 = vpop.xlane.xlu0 %853
      %v855 = vsel %vm833, %v830, -inf
      %856 = vmax.xlane.f32.xlu0 %v855
      %v857 = vpop.xlane.xlu0 %856
      %v858 = vsub.f32 %v795, %v836
      %v859 = vsub.f32 %v800, %v839
      %v860 = vsub.f32 %v805, %v842
      %v861 = vsub.f32 %v810, %v845
      %v862 = vsub.f32 %v815, %v848
      %v863 = vsub.f32 %v820, %v851
      %v864 = vsub.f32 %v825, %v854
      %v865 = vsub.f32 %v830, %v857
      %v866 = vmul.f32 %v858, 1.442695
      %v867 = vpow.pop %v866
      %v868 = vmul.f32 %v859, 1.442695
      %v869 = vpow.pop %v868
      %v870 = vmul.f32 %v860, 1.442695
      %v871 = vpow.pop %v870
      %v872 = vmul.f32 %v861, 1.442695
      %v873 = vpow.pop %v872
      %v874 = vmul.f32 %v862, 1.442695
      %v875 = vpow.pop %v874
      %v876 = vmul.f32 %v863, 1.442695
      %v877 = vpow.pop %v876
      %v878 = vmul.f32 %v864, 1.442695
      %v879 = vpow.pop %v878
      %v880 = vmul.f32 %v865, 1.442695
      %v881 = vpow.pop %v880
      %v882 = vsel %vm833, %v867, 0.0
      %883 = vadd.xlane.f32.xlu0 %v882
      %v884 = vpop.xlane.xlu0 %883
      %v885 = vsel %vm833, %v869, 0.0
      %886 = vadd.xlane.f32.xlu0 %v885
      %v887 = vpop.xlane.xlu0 %886
      %v888 = vsel %vm833, %v871, 0.0
      %889 = vadd.xlane.f32.xlu0 %v888
      %v890 = vpop.xlane.xlu0 %889
      %v891 = vsel %vm833, %v873, 0.0
      %892 = vadd.xlane.f32.xlu0 %v891
      %v893 = vpop.xlane.xlu0 %892
      %v894 = vsel %vm833, %v875, 0.0
      %895 = vadd.xlane.f32.xlu0 %v894
      %v896 = vpop.xlane.xlu0 %895
      %v897 = vsel %vm833, %v877, 0.0
      %898 = vadd.xlane.f32.xlu0 %v897
      %v899 = vpop.xlane.xlu0 %898
      %v900 = vsel %vm833, %v879, 0.0
      %901 = vadd.xlane.f32.xlu0 %v900
      %v902 = vpop.xlane.xlu0 %901
      %v903 = vsel %vm833, %v881, 0.0
      %904 = vadd.xlane.f32.xlu0 %v903
      %v905 = vpop.xlane.xlu0 %904
      %v906 = vld [vmem:[#allocation3] sm:$0xff]
      %v907 = vld [vmem:[#allocation3 + $0x8] sm:$0xff]
      %v908 = vld [vmem:[#allocation3 + $0x10] sm:$0xff]
      %v909 = vld [vmem:[#allocation3 + $0x18] sm:$0xff]
      %v910 = vld [vmem:[#allocation3 + $0x20] sm:$0xff]
      %v911 = vld [vmem:[#allocation3 + $0x28] sm:$0xff]
      %v912 = vld [vmem:[#allocation3 + $0x30] sm:$0xff]
      %v913 = vld [vmem:[#allocation3 + $0x38] sm:$0xff]
      %v915 = vsel %vm833, %v867, 0
      %v918 = vsel %vm833, %v869, 0
      %v921 = vsel %vm833, %v871, 0
      %v924 = vsel %vm833, %v873, 0
      %v927 = vsel %vm833, %v875, 0
      %v930 = vsel %vm833, %v877, 0
      %v933 = vsel %vm833, %v879, 0
      %v936 = vsel %vm833, %v881, 0
      %938 = vmatprep.subr.mxu0 0.0
      %939 = vmatpush1.msra.mxu0 0.0
      %940 = vmatprep.subr.mxu0 0.0
      %941 = vmatpush1.msra.mxu0 0.0
      %942 = vmatprep.subr.mxu0 0.0
      %943 = vmatpush1.msra.mxu0 0.0
      %944 = vmatprep.subr.mxu0 0.0
      %945 = vmatpush1.msra.mxu0 0.0
      %946 = vmatprep.subr.mxu0 0.0
      %947 = vmatpush1.msra.mxu0 0.0
      %948 = vmatprep.subr.mxu0 0.0
      %949 = vmatpush1.msra.mxu0 0.0
      %950 = vmatprep.subr.mxu0 0.0
      %951 = vmatpush1.msra.mxu0 0.0
      %952 = vmatprep.subr.mxu0 0.0
      %953 = vmatpush1.msra.mxu0 0.0
      %954 = vmatprep.subr.mxu0 0.0
      %955 = vmatpush1.msra.mxu0 %v913
      %956 = vmatprep.subr.mxu0 0.0
      %957 = vmatpush1.msra.mxu0 %v912
      %958 = vmatprep.subr.mxu0 0.0
      %959 = vmatpush1.msra.mxu0 %v911
      %960 = vmatprep.subr.mxu0 0.0
      %961 = vmatpush1.msra.mxu0 %v910
      %962 = vmatprep.subr.mxu0 0.0
      %963 = vmatpush1.msra.mxu0 %v909
      %964 = vmatprep.subr.mxu0 0.0
      %965 = vmatpush1.msra.mxu0 %v908
      %966 = vmatprep.subr.mxu0 0.0
      %967 = vmatpush1.msra.mxu0 %v907
      %968 = vmatprep.subr.mxu0 0.0
      %969 = vmatpush1.msra.mxu0 %v906
      %970 = vmatprep.subr.mxu0 0.0
      %971 = vmatpush2.msra.mxu0 0.0
      %972 = vmatprep.subr.mxu0 0.0
      %973 = vmatpush2.msra.mxu0 0.0
      %974 = vmatprep.subr.mxu0 0.0
      %975 = vmatpush2.msra.mxu0 0.0
      %976 = vmatprep.subr.mxu0 0.0
      %977 = vmatpush2.msra.mxu0 0.0
      %978 = vmatprep.subr.mxu0 0.0
      %979 = vmatpush2.msra.mxu0 0.0
      %980 = vmatprep.subr.mxu0 0.0
      %981 = vmatpush2.msra.mxu0 0.0
      %982 = vmatprep.subr.mxu0 0.0
      %983 = vmatpush2.msra.mxu0 0.0
      %984 = vmatprep.subr.mxu0 0.0
      %985 = vmatpush2.msra.mxu0 0.0
      %986 = vmatprep.subr.mxu0 0.0
      %987 = vmatpush2.msra.mxu0 0.0
      %988 = vmatprep.subr.mxu0 0.0
      %989 = vmatpush2.msra.mxu0 0.0
      %990 = vmatprep.subr.mxu0 0.0
      %991 = vmatpush2.msra.mxu0 0.0
      %992 = vmatprep.subr.mxu0 0.0
      %993 = vmatpush2.msra.mxu0 0.0
      %994 = vmatprep.subr.mxu0 0.0
      %995 = vmatpush2.msra.mxu0 0.0
      %996 = vmatprep.subr.mxu0 0.0
      %997 = vmatpush2.msra.mxu0 0.0
      %998 = vmatprep.subr.mxu0 0.0
      %999 = vmatpush2.msra.mxu0 0.0
      %1000 = vmatprep.subr.mxu0 0.0
      %1001 = vmatpush2.msra.mxu0 0.0
      %1002 = vmatprep.mubr.f32.mxu0 0.0
      %1003 = vmatmul.mubr.f32.gmra.mxu0 %v915
      %v1004 = vpop.f32.mrf.mxu0
      %v1005 = vadd.f32 0.0, %v1004
      %v1006 = vpop.f32.mrf.mxu0
      %1007 = vmatprep.mubr.f32.mxu0 0.0
      %1008 = vmatmul.mubr.f32.gmra.mxu0 %v918
      %v1009 = vpop.f32.mrf.mxu0
      %v1010 = vadd.f32 0.0, %v1009
      %v1011 = vpop.f32.mrf.mxu0
      %1012 = vmatprep.mubr.f32.mxu0 0.0
      %1013 = vmatmul.mubr.f32.gmra.mxu0 %v921
      %v1014 = vpop.f32.mrf.mxu0
      %v1015 = vadd.f32 0.0, %v1014
      %v1016 = vpop.f32.mrf.mxu0
      %1017 = vmatprep.mubr.f32.mxu0 0.0
      %1018 = vmatmul.mubr.f32.gmra.mxu0 %v924
      %v1019 = vpop.f32.mrf.mxu0
      %v1020 = vadd.f32 0.0, %v1019
      %v1021 = vpop.f32.mrf.mxu0
      %1022 = vmatprep.mubr.f32.mxu0 0.0
      %1023 = vmatmul.mubr.f32.gmra.mxu0 %v927
      %v1024 = vpop.f32.mrf.mxu0
      %v1025 = vadd.f32 0.0, %v1024
      %v1026 = vpop.f32.mrf.mxu0
      %1027 = vmatprep.mubr.f32.mxu0 0.0
      %1028 = vmatmul.mubr.f32.gmra.mxu0 %v930
      %v1029 = vpop.f32.mrf.mxu0
      %v1030 = vadd.f32 0.0, %v1029
      %v1031 = vpop.f32.mrf.mxu0
      %1032 = vmatprep.mubr.f32.mxu0 0.0
      %1033 = vmatmul.mubr.f32.gmra.mxu0 %v933
      %v1034 = vpop.f32.mrf.mxu0
      %v1035 = vadd.f32 0.0, %v1034
      %v1036 = vpop.f32.mrf.mxu0
      %1037 = vmatprep.mubr.f32.mxu0 0.0
      %1038 = vmatmul.mubr.f32.gmra.mxu0 %v936
      %v1039 = vpop.f32.mrf.mxu0
      %v1040 = vadd.f32 0.0, %v1039
      %v1041 = vpop.f32.mrf.mxu0
      %1042 = vdwg.mxu0
      %v1043 = vrcp.pop %v884
      %v1044 = vrcp.pop %v887
      %v1045 = vrcp.pop %v890
      %v1046 = vrcp.pop %v893
      %v1047 = vrcp.pop %v896
      %v1048 = vrcp.pop %v899
      %v1049 = vrcp.pop %v902
      %v1050 = vrcp.pop %v905
      %v1051 = vmul.f32 %v1005, %v1043
      %v1052 = vmul.f32 %v1010, %v1044
      %v1053 = vmul.f32 %v1015, %v1045
      %v1054 = vmul.f32 %v1020, %v1046
      %v1055 = vmul.f32 %v1025, %v1047
      %v1056 = vmul.f32 %v1030, %v1048
      %v1057 = vmul.f32 %v1035, %v1049
      %v1058 = vmul.f32 %v1040, %v1050
      %v1059 = vld [vmem:[%s4] sm:$0xff]
      %1060 = vrot.lane.b32.xlu0 %v663, 120
      %v1061 = vpop.permute.xlu0 %1060
      %1062 = vrot.lane.b32.xlu0 %v664, 120
      %v1063 = vpop.permute.xlu0 %1062
      %1064 = vrot.lane.b32.xlu0 %v665, 120
      %v1065 = vpop.permute.xlu0 %1064
      %1066 = vrot.lane.b32.xlu0 %v666, 120
      %v1067 = vpop.permute.xlu0 %1066
      %1068 = vrot.lane.b32.xlu0 %v667, 120
      %v1069 = vpop.permute.xlu0 %1068
      %1070 = vrot.lane.b32.xlu0 %v668, 120
      %v1071 = vpop.permute.xlu0 %1070
      %1072 = vrot.lane.b32.xlu0 %v669, 120
      %v1073 = vpop.permute.xlu0 %1072
      %1074 = vrot.lane.b32.xlu0 %v670, 120
      %v1075 = vpop.permute.xlu0 %1074
      %1076 = vrot.lane.b32.xlu0 %v671, 120
      %v1077 = vpop.permute.xlu0 %1076
      %1078 = vrot.lane.b32.xlu0 %v672, 120
      %v1079 = vpop.permute.xlu0 %1078
      %1080 = vrot.lane.b32.xlu0 %v673, 120
      %v1081 = vpop.permute.xlu0 %1080
      %1082 = vrot.lane.b32.xlu0 %v674, 120
      %v1083 = vpop.permute.xlu0 %1082
      %1084 = vrot.lane.b32.xlu0 %v675, 120
      %v1085 = vpop.permute.xlu0 %1084
      %1086 = vrot.lane.b32.xlu0 %v676, 120
      %v1087 = vpop.permute.xlu0 %1086
      %1088 = vrot.lane.b32.xlu0 %v677, 120
      %v1089 = vpop.permute.xlu0 %1088
      %1090 = vrot.lane.b32.xlu0 %v678, 120
      %v1091 = vpop.permute.xlu0 %1090
      %v1092 = vsel %vm679, %v1061, 0
      %v1094 = vsel %vm679, %v1063, 0
      %v1096 = vsel %vm679, %v1065, 0
      %v1098 = vsel %vm679, %v1067, 0
      %v1100 = vsel %vm679, %v1069, 0
      %v1102 = vsel %vm679, %v1071, 0
      %v1104 = vsel %vm679, %v1073, 0
      %v1106 = vsel %vm679, %v1075, 0
      %v1108 = vsel %vm679, %v1077, 0
      %v1110 = vsel %vm679, %v1079, 0
      %v1112 = vsel %vm679, %v1081, 0
      %v1114 = vsel %vm679, %v1083, 0
      %v1116 = vsel %vm679, %v1085, 0
      %v1118 = vsel %vm679, %v1087, 0
      %v1120 = vsel %vm679, %v1089, 0
      %v1122 = vsel %vm679, %v1091, 0
      %1124 = vmatprep.subr.mxu0 0.0
      %1125 = vmatpush1.xpose.msra.mxu0 0.0
      %1126 = vmatprep.subr.mxu0 0.0
      %1127 = vmatpush1.xpose.msra.mxu0 0.0
      %1128 = vmatprep.subr.mxu0 0.0
      %1129 = vmatpush1.xpose.msra.mxu0 0.0
      %1130 = vmatprep.subr.mxu0 0.0
      %1131 = vmatpush1.xpose.msra.mxu0 0.0
      %1132 = vmatprep.subr.mxu0 0.0
      %1133 = vmatpush1.xpose.msra.mxu0 0.0
      %1134 = vmatprep.subr.mxu0 0.0
      %1135 = vmatpush1.xpose.msra.mxu0 0.0
      %1136 = vmatprep.subr.mxu0 0.0
      %1137 = vmatpush1.xpose.msra.mxu0 0.0
      %1138 = vmatprep.subr.mxu0 0.0
      %1139 = vmatpush1.xpose.msra.mxu0 0.0
      %1140 = vmatprep.subr.mxu0 0.0
      %1141 = vmatpush1.xpose.msra.mxu0 %v1122
      %1142 = vmatprep.subr.mxu0 0.0
      %1143 = vmatpush1.xpose.msra.mxu0 %v1120
      %1144 = vmatprep.subr.mxu0 0.0
      %1145 = vmatpush1.xpose.msra.mxu0 %v1118
      %1146 = vmatprep.subr.mxu0 0.0
      %1147 = vmatpush1.xpose.msra.mxu0 %v1116
      %1148 = vmatprep.subr.mxu0 0.0
      %1149 = vmatpush1.xpose.msra.mxu0 %v1114
      %1150 = vmatprep.subr.mxu0 0.0
      %1151 = vmatpush1.xpose.msra.mxu0 %v1112
      %1152 = vmatprep.subr.mxu0 0.0
      %1153 = vmatpush1.xpose.msra.mxu0 %v1110
      %1154 = vmatprep.subr.mxu0 0.0
      %1155 = vmatpush1.xpose.msra.mxu0 %v1108
      %1156 = vmatprep.subr.mxu0 0.0
      %1157 = vmatpush2.xpose.msra.mxu0 0.0
      %1158 = vmatprep.subr.mxu0 0.0
      %1159 = vmatpush2.xpose.msra.mxu0 0.0
      %1160 = vmatprep.subr.mxu0 0.0
      %1161 = vmatpush2.xpose.msra.mxu0 0.0
      %1162 = vmatprep.subr.mxu0 0.0
      %1163 = vmatpush2.xpose.msra.mxu0 0.0
      %1164 = vmatprep.subr.mxu0 0.0
      %1165 = vmatpush2.xpose.msra.mxu0 0.0
      %1166 = vmatprep.subr.mxu0 0.0
      %1167 = vmatpush2.xpose.msra.mxu0 0.0
      %1168 = vmatprep.subr.mxu0 0.0
      %1169 = vmatpush2.xpose.msra.mxu0 0.0
      %1170 = vmatprep.subr.mxu0 0.0
      %1171 = vmatpush2.xpose.msra.mxu0 0.0
      %1172 = vmatprep.subr.mxu0 0.0
      %1173 = vmatpush2.xpose.msra.mxu0 0.0
      %1174 = vmatprep.subr.mxu0 0.0
      %1175 = vmatpush2.xpose.msra.mxu0 0.0
      %1176 = vmatprep.subr.mxu0 0.0
      %1177 = vmatpush2.xpose.msra.mxu0 0.0
      %1178 = vmatprep.subr.mxu0 0.0
      %1179 = vmatpush2.xpose.msra.mxu0 0.0
      %1180 = vmatprep.subr.mxu0 0.0
      %1181 = vmatpush2.xpose.msra.mxu0 0.0
      %1182 = vmatprep.subr.mxu0 0.0
      %1183 = vmatpush2.xpose.msra.mxu0 0.0
      %1184 = vmatprep.subr.mxu0 0.0
      %1185 = vmatpush2.xpose.msra.mxu0 0.0
      %1186 = vmatprep.subr.mxu0 0.0
      %1187 = vmatpush2.xpose.msra.mxu0 0.0
      %1188 = vmatprep.mubr.f32.mxu0 0.0
      %1189 = vmatmul.mubr.f32.gmra.mxu0 %v1092
      %v1190 = vpop.f32.mrf.mxu0
      %v1191 = vadd.f32 0.0, %v1190
      %v1192 = vpop.f32.mrf.mxu0
      %1193 = vmatprep.mubr.f32.mxu0 0.0
      %1194 = vmatmul.mubr.f32.gmra.mxu0 %v1094
      %v1195 = vpop.f32.mrf.mxu0
      %v1196 = vadd.f32 0.0, %v1195
      %v1197 = vpop.f32.mrf.mxu0
      %1198 = vmatprep.mubr.f32.mxu0 0.0
      %1199 = vmatmul.mubr.f32.gmra.mxu0 %v1096
      %v1200 = vpop.f32.mrf.mxu0
      %v1201 = vadd.f32 0.0, %v1200
      %v1202 = vpop.f32.mrf.mxu0
      %1203 = vmatprep.mubr.f32.mxu0 0.0
      %1204 = vmatmul.mubr.f32.gmra.mxu0 %v1098
      %v1205 = vpop.f32.mrf.mxu0
      %v1206 = vadd.f32 0.0, %v1205
      %v1207 = vpop.f32.mrf.mxu0
      %1208 = vmatprep.mubr.f32.mxu0 0.0
      %1209 = vmatmul.mubr.f32.gmra.mxu0 %v1100
      %v1210 = vpop.f32.mrf.mxu0
      %v1211 = vadd.f32 0.0, %v1210
      %v1212 = vpop.f32.mrf.mxu0
      %1213 = vmatprep.mubr.f32.mxu0 0.0
      %1214 = vmatmul.mubr.f32.gmra.mxu0 %v1102
      %v1215 = vpop.f32.mrf.mxu0
      %v1216 = vadd.f32 0.0, %v1215
      %v1217 = vpop.f32.mrf.mxu0
      %1218 = vmatprep.mubr.f32.mxu0 0.0
      %1219 = vmatmul.mubr.f32.gmra.mxu0 %v1104
      %v1220 = vpop.f32.mrf.mxu0
      %v1221 = vadd.f32 0.0, %v1220
      %v1222 = vpop.f32.mrf.mxu0
      %1223 = vmatprep.mubr.f32.mxu0 0.0
      %1224 = vmatmul.mubr.f32.gmra.mxu0 %v1106
      %v1225 = vpop.f32.mrf.mxu0
      %v1226 = vadd.f32 0.0, %v1225
      %v1227 = vpop.f32.mrf.mxu0
      %1228 = vdwg.mxu0
      %v1229 = vsel %vm833, %v1191, -inf
      %1230 = vmax.xlane.f32.xlu0 %v1229
      %v1231 = vpop.xlane.xlu0 %1230
      %v1232 = vsel %vm833, %v1196, -inf
      %1233 = vmax.xlane.f32.xlu0 %v1232
      %v1234 = vpop.xlane.xlu0 %1233
      %v1235 = vsel %vm833, %v1201, -inf
      %1236 = vmax.xlane.f32.xlu0 %v1235
      %v1237 = vpop.xlane.xlu0 %1236
      %v1238 = vsel %vm833, %v1206, -inf
      %1239 = vmax.xlane.f32.xlu0 %v1238
      %v1240 = vpop.xlane.xlu0 %1239
      %v1241 = vsel %vm833, %v1211, -inf
      %1242 = vmax.xlane.f32.xlu0 %v1241
      %v1243 = vpop.xlane.xlu0 %1242
      %v1244 = vsel %vm833, %v1216, -inf
      %1245 = vmax.xlane.f32.xlu0 %v1244
      %v1246 = vpop.xlane.xlu0 %1245
      %v1247 = vsel %vm833, %v1221, -inf
      %1248 = vmax.xlane.f32.xlu0 %v1247
      %v1249 = vpop.xlane.xlu0 %1248
      %v1250 = vsel %vm833, %v1226, -inf
      %1251 = vmax.xlane.f32.xlu0 %v1250
      %v1252 = vpop.xlane.xlu0 %1251
      %v1253 = vsub.f32 %v1191, %v1231
      %v1254 = vsub.f32 %v1196, %v1234
      %v1255 = vsub.f32 %v1201, %v1237
      %v1256 = vsub.f32 %v1206, %v1240
      %v1257 = vsub.f32 %v1211, %v1243
      %v1258 = vsub.f32 %v1216, %v1246
      %v1259 = vsub.f32 %v1221, %v1249
      %v1260 = vsub.f32 %v1226, %v1252
      %v1261 = vmul.f32 %v1253, 1.442695
      %v1262 = vpow.pop %v1261
      %v1263 = vmul.f32 %v1254, 1.442695
      %v1264 = vpow.pop %v1263
      %v1265 = vmul.f32 %v1255, 1.442695
      %v1266 = vpow.pop %v1265
      %v1267 = vmul.f32 %v1256, 1.442695
      %v1268 = vpow.pop %v1267
      %v1269 = vmul.f32 %v1257, 1.442695
      %v1270 = vpow.pop %v1269
      %v1271 = vmul.f32 %v1258, 1.442695
      %v1272 = vpow.pop %v1271
      %v1273 = vmul.f32 %v1259, 1.442695
      %v1274 = vpow.pop %v1273
      %v1275 = vmul.f32 %v1260, 1.442695
      %v1276 = vpow.pop %v1275
      %v1277 = vsel %vm833, %v1262, 0.0
      %1278 = vadd.xlane.f32.xlu0 %v1277
      %v1279 = vpop.xlane.xlu0 %1278
      %v1280 = vsel %vm833, %v1264, 0.0
      %1281 = vadd.xlane.f32.xlu0 %v1280
      %v1282 = vpop.xlane.xlu0 %1281
      %v1283 = vsel %vm833, %v1266, 0.0
      %1284 = vadd.xlane.f32.xlu0 %v1283
      %v1285 = vpop.xlane.xlu0 %1284
      %v1286 = vsel %vm833, %v1268, 0.0
      %1287 = vadd.xlane.f32.xlu0 %v1286
      %v1288 = vpop.xlane.xlu0 %1287
      %v1289 = vsel %vm833, %v1270, 0.0
      %1290 = vadd.xlane.f32.xlu0 %v1289
      %v1291 = vpop.xlane.xlu0 %1290
      %v1292 = vsel %vm833, %v1272, 0.0
      %1293 = vadd.xlane.f32.xlu0 %v1292
      %v1294 = vpop.xlane.xlu0 %1293
      %v1295 = vsel %vm833, %v1274, 0.0
      %1296 = vadd.xlane.f32.xlu0 %v1295
      %v1297 = vpop.xlane.xlu0 %1296
      %v1298 = vsel %vm833, %v1276, 0.0
      %1299 = vadd.xlane.f32.xlu0 %v1298
      %v1300 = vpop.xlane.xlu0 %1299
      %1309 = vrot.lane.b32.xlu0 %v906, 120
      %v1310 = vpop.permute.xlu0 %1309
      %1311 = vrot.lane.b32.xlu0 %v907, 120
      %v1312 = vpop.permute.xlu0 %1311
      %1313 = vrot.lane.b32.xlu0 %v908, 120
      %v1314 = vpop.permute.xlu0 %1313
      %1315 = vrot.lane.b32.xlu0 %v909, 120
      %v1316 = vpop.permute.xlu0 %1315
      %1317 = vrot.lane.b32.xlu0 %v910, 120
      %v1318 = vpop.permute.xlu0 %1317
      %1319 = vrot.lane.b32.xlu0 %v911, 120
      %v1320 = vpop.permute.xlu0 %1319
      %1321 = vrot.lane.b32.xlu0 %v912, 120
      %v1322 = vpop.permute.xlu0 %1321
      %1323 = vrot.lane.b32.xlu0 %v913, 120
      %v1324 = vpop.permute.xlu0 %1323
      %v1334 = vsel %vm833, %v1262, 0
      %v1337 = vsel %vm833, %v1264, 0
      %v1340 = vsel %vm833, %v1266, 0
      %v1343 = vsel %vm833, %v1268, 0
      %v1346 = vsel %vm833, %v1270, 0
      %v1349 = vsel %vm833, %v1272, 0
      %v1352 = vsel %vm833, %v1274, 0
      %v1355 = vsel %vm833, %v1276, 0
      %1357 = vmatprep.subr.mxu0 0.0
      %1358 = vmatpush1.msra.mxu0 0.0
      %1359 = vmatprep.subr.mxu0 0.0
      %1360 = vmatpush1.msra.mxu0 0.0
      %1361 = vmatprep.subr.mxu0 0.0
      %1362 = vmatpush1.msra.mxu0 0.0
      %1363 = vmatprep.subr.mxu0 0.0
      %1364 = vmatpush1.msra.mxu0 0.0
      %1365 = vmatprep.subr.mxu0 0.0
      %1366 = vmatpush1.msra.mxu0 0.0
      %1367 = vmatprep.subr.mxu0 0.0
      %1368 = vmatpush1.msra.mxu0 0.0
      %1369 = vmatprep.subr.mxu0 0.0
      %1370 = vmatpush1.msra.mxu0 0.0
      %1371 = vmatprep.subr.mxu0 0.0
      %1372 = vmatpush1.msra.mxu0 0.0
      %1373 = vmatprep.subr.mxu0 0.0
      %1374 = vmatpush1.msra.mxu0 %v1324
      %1375 = vmatprep.subr.mxu0 0.0
      %1376 = vmatpush1.msra.mxu0 %v1322
      %1377 = vmatprep.subr.mxu0 0.0
      %1378 = vmatpush1.msra.mxu0 %v1320
      %1379 = vmatprep.subr.mxu0 0.0
      %1380 = vmatpush1.msra.mxu0 %v1318
      %1381 = vmatprep.subr.mxu0 0.0
      %1382 = vmatpush1.msra.mxu0 %v1316
      %1383 = vmatprep.subr.mxu0 0.0
      %1384 = vmatpush1.msra.mxu0 %v1314
      %1385 = vmatprep.subr.mxu0 0.0
      %1386 = vmatpush1.msra.mxu0 %v1312
      %1387 = vmatprep.subr.mxu0 0.0
      %1388 = vmatpush1.msra.mxu0 %v1310
      %1389 = vmatprep.subr.mxu0 0.0
      %1390 = vmatpush2.msra.mxu0 0.0
      %1391 = vmatprep.subr.mxu0 0.0
      %1392 = vmatpush2.msra.mxu0 0.0
      %1393 = vmatprep.subr.mxu0 0.0
      %1394 = vmatpush2.msra.mxu0 0.0
      %1395 = vmatprep.subr.mxu0 0.0
      %1396 = vmatpush2.msra.mxu0 0.0
      %1397 = vmatprep.subr.mxu0 0.0
      %1398 = vmatpush2.msra.mxu0 0.0
      %1399 = vmatprep.subr.mxu0 0.0
      %1400 = vmatpush2.msra.mxu0 0.0
      %1401 = vmatprep.subr.mxu0 0.0
      %1402 = vmatpush2.msra.mxu0 0.0
      %1403 = vmatprep.subr.mxu0 0.0
      %1404 = vmatpush2.msra.mxu0 0.0
      %1405 = vmatprep.subr.mxu0 0.0
      %1406 = vmatpush2.msra.mxu0 0.0
      %1407 = vmatprep.subr.mxu0 0.0
      %1408 = vmatpush2.msra.mxu0 0.0
      %1409 = vmatprep.subr.mxu0 0.0
      %1410 = vmatpush2.msra.mxu0 0.0
      %1411 = vmatprep.subr.mxu0 0.0
      %1412 = vmatpush2.msra.mxu0 0.0
      %1413 = vmatprep.subr.mxu0 0.0
      %1414 = vmatpush2.msra.mxu0 0.0
      %1415 = vmatprep.subr.mxu0 0.0
      %1416 = vmatpush2.msra.mxu0 0.0
      %1417 = vmatprep.subr.mxu0 0.0
      %1418 = vmatpush2.msra.mxu0 0.0
      %1419 = vmatprep.subr.mxu0 0.0
      %1420 = vmatpush2.msra.mxu0 0.0
      %1421 = vmatprep.mubr.f32.mxu0 0.0
      %1422 = vmatmul.mubr.f32.gmra.mxu0 %v1334
      %v1423 = vpop.f32.mrf.mxu0
      %v1424 = vadd.f32 0.0, %v1423
      %v1425 = vpop.f32.mrf.mxu0
      %1426 = vmatprep.mubr.f32.mxu0 0.0
      %1427 = vmatmul.mubr.f32.gmra.mxu0 %v1337
      %v1428 = vpop.f32.mrf.mxu0
      %v1429 = vadd.f32 0.0, %v1428
      %v1430 = vpop.f32.mrf.mxu0
      %1431 = vmatprep.mubr.f32.mxu0 0.0
      %1432 = vmatmul.mubr.f32.gmra.mxu0 %v1340
      %v1433 = vpop.f32.mrf.mxu0
      %v1434 = vadd.f32 0.0, %v1433
      %v1435 = vpop.f32.mrf.mxu0
      %1436 = vmatprep.mubr.f32.mxu0 0.0
      %1437 = vmatmul.mubr.f32.gmra.mxu0 %v1343
      %v1438 = vpop.f32.mrf.mxu0
      %v1439 = vadd.f32 0.0, %v1438
      %v1440 = vpop.f32.mrf.mxu0
      %1441 = vmatprep.mubr.f32.mxu0 0.0
      %1442 = vmatmul.mubr.f32.gmra.mxu0 %v1346
      %v1443 = vpop.f32.mrf.mxu0
      %v1444 = vadd.f32 0.0, %v1443
      %v1445 = vpop.f32.mrf.mxu0
      %1446 = vmatprep.mubr.f32.mxu0 0.0
      %1447 = vmatmul.mubr.f32.gmra.mxu0 %v1349
      %v1448 = vpop.f32.mrf.mxu0
      %v1449 = vadd.f32 0.0, %v1448
      %v1450 = vpop.f32.mrf.mxu0
      %1451 = vmatprep.mubr.f32.mxu0 0.0
      %1452 = vmatmul.mubr.f32.gmra.mxu0 %v1352
      %v1453 = vpop.f32.mrf.mxu0
      %v1454 = vadd.f32 0.0, %v1453
      %v1455 = vpop.f32.mrf.mxu0
      %1456 = vmatprep.mubr.f32.mxu0 0.0
      %1457 = vmatmul.mubr.f32.gmra.mxu0 %v1355
      %v1458 = vpop.f32.mrf.mxu0
      %v1459 = vadd.f32 0.0, %v1458
      %v1460 = vpop.f32.mrf.mxu0
      %1461 = vdwg.mxu0
      %v1462 = vrcp.pop %v1279
      %v1463 = vrcp.pop %v1282
      %v1464 = vrcp.pop %v1285
      %v1465 = vrcp.pop %v1288
      %v1466 = vrcp.pop %v1291
      %v1467 = vrcp.pop %v1294
      %v1468 = vrcp.pop %v1297
      %v1469 = vrcp.pop %v1300
      %v1470 = vmul.f32 %v1424, %v1462
      %v1471 = vmul.f32 %v1429, %v1463
      %v1472 = vmul.f32 %v1434, %v1464
      %v1473 = vmul.f32 %v1439, %v1465
      %v1474 = vmul.f32 %v1444, %v1466
      %v1475 = vmul.f32 %v1449, %v1467
      %v1476 = vmul.f32 %v1454, %v1468
      %v1477 = vmul.f32 %v1459, %v1469
      %v1478 = vld [vmem:[%s4 + $0x8] sm:$0xff]
      %v1480 = vsel %vm679, %v1470, 0
      %v1483 = vsel %vm679, %v1471, 0
      %v1486 = vsel %vm679, %v1472, 0
      %v1489 = vsel %vm679, %v1473, 0
      %v1492 = vsel %vm679, %v1474, 0
      %v1495 = vsel %vm679, %v1475, 0
      %v1498 = vsel %vm679, %v1476, 0
      %v1501 = vsel %vm679, %v1477, 0
      %1503 = vmatprep.subr.mxu0 0.0
      %1504 = vmatpush1.msra.mxu0 0.0
      %1505 = vmatprep.subr.mxu0 0.0
      %1506 = vmatpush1.msra.mxu0 0.0
      %1507 = vmatprep.subr.mxu0 0.0
      %1508 = vmatpush1.msra.mxu0 0.0
      %1509 = vmatprep.subr.mxu0 0.0
      %1510 = vmatpush1.msra.mxu0 0.0
      %1511 = vmatprep.subr.mxu0 0.0
      %1512 = vmatpush1.msra.mxu0 0.0
      %1513 = vmatprep.subr.mxu0 0.0
      %1514 = vmatpush1.msra.mxu0 0.0
      %1515 = vmatprep.subr.mxu0 0.0
      %1516 = vmatpush1.msra.mxu0 0.0
      %1517 = vmatprep.subr.mxu0 0.0
      %1518 = vmatpush1.msra.mxu0 0.0
      %1519 = vmatprep.subr.mxu0 0.0
      %1520 = vmatpush1.msra.mxu0 0.0
      %1521 = vmatprep.subr.mxu0 0.0
      %1522 = vmatpush1.msra.mxu0 0.0
      %1523 = vmatprep.subr.mxu0 0.0
      %1524 = vmatpush1.msra.mxu0 0.0
      %1525 = vmatprep.subr.mxu0 0.0
      %1526 = vmatpush1.msra.mxu0 0.0
      %1527 = vmatprep.subr.mxu0 0.0
      %1528 = vmatpush1.msra.mxu0 0.0
      %1529 = vmatprep.subr.mxu0 0.0
      %1530 = vmatpush1.msra.mxu0 0.0
      %1531 = vmatprep.subr.mxu0 0.0
      %1532 = vmatpush1.msra.mxu0 0.0
      %1533 = vmatprep.subr.mxu0 0.0
      %1534 = vmatpush1.msra.mxu0 %v1478
      %1535 = vmatprep.subr.mxu0 0.0
      %1536 = vmatpush2.msra.mxu0 0.0
      %1537 = vmatprep.subr.mxu0 0.0
      %1538 = vmatpush2.msra.mxu0 0.0
      %1539 = vmatprep.subr.mxu0 0.0
      %1540 = vmatpush2.msra.mxu0 0.0
      %1541 = vmatprep.subr.mxu0 0.0
      %1542 = vmatpush2.msra.mxu0 0.0
      %1543 = vmatprep.subr.mxu0 0.0
      %1544 = vmatpush2.msra.mxu0 0.0
      %1545 = vmatprep.subr.mxu0 0.0
      %1546 = vmatpush2.msra.mxu0 0.0
      %1547 = vmatprep.subr.mxu0 0.0
      %1548 = vmatpush2.msra.mxu0 0.0
      %1549 = vmatprep.subr.mxu0 0.0
      %1550 = vmatpush2.msra.mxu0 0.0
      %1551 = vmatprep.subr.mxu0 0.0
      %1552 = vmatpush2.msra.mxu0 0.0
      %1553 = vmatprep.subr.mxu0 0.0
      %1554 = vmatpush2.msra.mxu0 0.0
      %1555 = vmatprep.subr.mxu0 0.0
      %1556 = vmatpush2.msra.mxu0 0.0
      %1557 = vmatprep.subr.mxu0 0.0
      %1558 = vmatpush2.msra.mxu0 0.0
      %1559 = vmatprep.subr.mxu0 0.0
      %1560 = vmatpush2.msra.mxu0 0.0
      %1561 = vmatprep.subr.mxu0 0.0
      %1562 = vmatpush2.msra.mxu0 0.0
      %1563 = vmatprep.subr.mxu0 0.0
      %1564 = vmatpush2.msra.mxu0 0.0
      %1565 = vmatprep.subr.mxu0 0.0
      %1566 = vmatpush2.msra.mxu0 0.0
      %1567 = vmatprep.mubr.f32.mxu0 0.0
      %1568 = vmatmul.mubr.f32.gmra.mxu0 %v1480
      %v1569 = vpop.f32.mrf.mxu0
      %v1570 = vadd.f32 0.0, %v1569
      %v1571 = vpop.f32.mrf.mxu0
      %1572 = vmatprep.mubr.f32.mxu0 0.0
      %1573 = vmatmul.mubr.f32.gmra.mxu0 %v1483
      %v1574 = vpop.f32.mrf.mxu0
      %v1575 = vadd.f32 0.0, %v1574
      %v1576 = vpop.f32.mrf.mxu0
      %1577 = vmatprep.mubr.f32.mxu0 0.0
      %1578 = vmatmul.mubr.f32.gmra.mxu0 %v1486
      %v1579 = vpop.f32.mrf.mxu0
      %v1580 = vadd.f32 0.0, %v1579
      %v1581 = vpop.f32.mrf.mxu0
      %1582 = vmatprep.mubr.f32.mxu0 0.0
      %1583 = vmatmul.mubr.f32.gmra.mxu0 %v1489
      %v1584 = vpop.f32.mrf.mxu0
      %v1585 = vadd.f32 0.0, %v1584
      %v1586 = vpop.f32.mrf.mxu0
      %1587 = vmatprep.mubr.f32.mxu0 0.0
      %1588 = vmatmul.mubr.f32.gmra.mxu0 %v1492
      %v1589 = vpop.f32.mrf.mxu0
      %v1590 = vadd.f32 0.0, %v1589
      %v1591 = vpop.f32.mrf.mxu0
      %1592 = vmatprep.mubr.f32.mxu0 0.0
      %1593 = vmatmul.mubr.f32.gmra.mxu0 %v1495
      %v1594 = vpop.f32.mrf.mxu0
      %v1595 = vadd.f32 0.0, %v1594
      %v1596 = vpop.f32.mrf.mxu0
      %1597 = vmatprep.mubr.f32.mxu0 0.0
      %1598 = vmatmul.mubr.f32.gmra.mxu0 %v1498
      %v1599 = vpop.f32.mrf.mxu0
      %v1600 = vadd.f32 0.0, %v1599
      %v1601 = vpop.f32.mrf.mxu0
      %1602 = vmatprep.mubr.f32.mxu0 0.0
      %1603 = vmatmul.mubr.f32.gmra.mxu0 %v1501
      %v1604 = vpop.f32.mrf.mxu0
      %v1605 = vadd.f32 0.0, %v1604
      %v1606 = vpop.f32.mrf.mxu0
      %1607 = vdwg.mxu0
      %v1609 = vsel %vm679, %v1051, 0
      %v1612 = vsel %vm679, %v1052, 0
      %v1615 = vsel %vm679, %v1053, 0
      %v1618 = vsel %vm679, %v1054, 0
      %v1621 = vsel %vm679, %v1055, 0
      %v1624 = vsel %vm679, %v1056, 0
      %v1627 = vsel %vm679, %v1057, 0
      %v1630 = vsel %vm679, %v1058, 0
      %1632 = vmatprep.subr.mxu0 0.0
      %1633 = vmatpush1.msra.mxu0 0.0
      %1634 = vmatprep.subr.mxu0 0.0
      %1635 = vmatpush1.msra.mxu0 0.0
      %1636 = vmatprep.subr.mxu0 0.0
      %1637 = vmatpush1.msra.mxu0 0.0
      %1638 = vmatprep.subr.mxu0 0.0
      %1639 = vmatpush1.msra.mxu0 0.0
      %1640 = vmatprep.subr.mxu0 0.0
      %1641 = vmatpush1.msra.mxu0 0.0
      %1642 = vmatprep.subr.mxu0 0.0
      %1643 = vmatpush1.msra.mxu0 0.0
      %1644 = vmatprep.subr.mxu0 0.0
      %1645 = vmatpush1.msra.mxu0 0.0
      %1646 = vmatprep.subr.mxu0 0.0
      %1647 = vmatpush1.msra.mxu0 0.0
      %1648 = vmatprep.subr.mxu0 0.0
      %1649 = vmatpush1.msra.mxu0 0.0
      %1650 = vmatprep.subr.mxu0 0.0
      %1651 = vmatpush1.msra.mxu0 0.0
      %1652 = vmatprep.subr.mxu0 0.0
      %1653 = vmatpush1.msra.mxu0 0.0
      %1654 = vmatprep.subr.mxu0 0.0
      %1655 = vmatpush1.msra.mxu0 0.0
      %1656 = vmatprep.subr.mxu0 0.0
      %1657 = vmatpush1.msra.mxu0 0.0
      %1658 = vmatprep.subr.mxu0 0.0
      %1659 = vmatpush1.msra.mxu0 0.0
      %1660 = vmatprep.subr.mxu0 0.0
      %1661 = vmatpush1.msra.mxu0 0.0
      %1662 = vmatprep.subr.mxu0 0.0
      %1663 = vmatpush1.msra.mxu0 %v1059
      %1664 = vmatprep.subr.mxu0 0.0
      %1665 = vmatpush2.msra.mxu0 0.0
      %1666 = vmatprep.subr.mxu0 0.0
      %1667 = vmatpush2.msra.mxu0 0.0
      %1668 = vmatprep.subr.mxu0 0.0
      %1669 = vmatpush2.msra.mxu0 0.0
      %1670 = vmatprep.subr.mxu0 0.0
      %1671 = vmatpush2.msra.mxu0 0.0
      %1672 = vmatprep.subr.mxu0 0.0
      %1673 = vmatpush2.msra.mxu0 0.0
      %1674 = vmatprep.subr.mxu0 0.0
      %1675 = vmatpush2.msra.mxu0 0.0
      %1676 = vmatprep.subr.mxu0 0.0
      %1677 = vmatpush2.msra.mxu0 0.0
      %1678 = vmatprep.subr.mxu0 0.0
      %1679 = vmatpush2.msra.mxu0 0.0
      %1680 = vmatprep.subr.mxu0 0.0
      %1681 = vmatpush2.msra.mxu0 0.0
      %1682 = vmatprep.subr.mxu0 0.0
      %1683 = vmatpush2.msra.mxu0 0.0
      %1684 = vmatprep.subr.mxu0 0.0
      %1685 = vmatpush2.msra.mxu0 0.0
      %1686 = vmatprep.subr.mxu0 0.0
      %1687 = vmatpush2.msra.mxu0 0.0
      %1688 = vmatprep.subr.mxu0 0.0
      %1689 = vmatpush2.msra.mxu0 0.0
      %1690 = vmatprep.subr.mxu0 0.0
      %1691 = vmatpush2.msra.mxu0 0.0
      %1692 = vmatprep.subr.mxu0 0.0
      %1693 = vmatpush2.msra.mxu0 0.0
      %1694 = vmatprep.subr.mxu0 0.0
      %1695 = vmatpush2.msra.mxu0 0.0
      %1696 = vmatprep.mubr.f32.mxu0 0.0
      %1697 = vmatmul.mubr.f32.gmra.mxu0 %v1609
      %v1698 = vpop.f32.mrf.mxu0
      %v1699 = vadd.f32 %v1570, %v1698
      %v1700 = vpop.f32.mrf.mxu0
      %1701 = vmatprep.mubr.f32.mxu0 0.0
      %1702 = vmatmul.mubr.f32.gmra.mxu0 %v1612
      %v1703 = vpop.f32.mrf.mxu0
      %v1704 = vadd.f32 %v1575, %v1703
      %v1705 = vpop.f32.mrf.mxu0
      %1706 = vmatprep.mubr.f32.mxu0 0.0
      %1707 = vmatmul.mubr.f32.gmra.mxu0 %v1615
      %v1708 = vpop.f32.mrf.mxu0
      %v1709 = vadd.f32 %v1580, %v1708
      %v1710 = vpop.f32.mrf.mxu0
      %1711 = vmatprep.mubr.f32.mxu0 0.0
      %1712 = vmatmul.mubr.f32.gmra.mxu0 %v1618
      %v1713 = vpop.f32.mrf.mxu0
      %v1714 = vadd.f32 %v1585, %v1713
      %v1715 = vpop.f32.mrf.mxu0
      %1716 = vmatprep.mubr.f32.mxu0 0.0
      %1717 = vmatmul.mubr.f32.gmra.mxu0 %v1621
      %v1718 = vpop.f32.mrf.mxu0
      %v1719 = vadd.f32 %v1590, %v1718
      %v1720 = vpop.f32.mrf.mxu0
      %1721 = vmatprep.mubr.f32.mxu0 0.0
      %1722 = vmatmul.mubr.f32.gmra.mxu0 %v1624
      %v1723 = vpop.f32.mrf.mxu0
      %v1724 = vadd.f32 %v1595, %v1723
      %v1725 = vpop.f32.mrf.mxu0
      %1726 = vmatprep.mubr.f32.mxu0 0.0
      %1727 = vmatmul.mubr.f32.gmra.mxu0 %v1627
      %v1728 = vpop.f32.mrf.mxu0
      %v1729 = vadd.f32 %v1600, %v1728
      %v1730 = vpop.f32.mrf.mxu0
      %1731 = vmatprep.mubr.f32.mxu0 0.0
      %1732 = vmatmul.mubr.f32.gmra.mxu0 %v1630
      %v1733 = vpop.f32.mrf.mxu0
      %v1734 = vadd.f32 %v1605, %v1733
      %v1735 = vpop.f32.mrf.mxu0
      %1736 = vdwg.mxu0
      %1737 = vrot.lane.b32.xlu0 %v663, 112
      %v1738 = vpop.permute.xlu0 %1737
      %1739 = vrot.lane.b32.xlu0 %v664, 112
      %v1740 = vpop.permute.xlu0 %1739
      %1741 = vrot.lane.b32.xlu0 %v665, 112
      %v1742 = vpop.permute.xlu0 %1741
      %1743 = vrot.lane.b32.xlu0 %v666, 112
      %v1744 = vpop.permute.xlu0 %1743
      %1745 = vrot.lane.b32.xlu0 %v667, 112
      %v1746 = vpop.permute.xlu0 %1745
      %1747 = vrot.lane.b32.xlu0 %v668, 112
      %v1748 = vpop.permute.xlu0 %1747
      %1749 = vrot.lane.b32.xlu0 %v669, 112
      %v1750 = vpop.permute.xlu0 %1749
      %1751 = vrot.lane.b32.xlu0 %v670, 112
      %v1752 = vpop.permute.xlu0 %1751
      %1753 = vrot.lane.b32.xlu0 %v671, 112
      %v1754 = vpop.permute.xlu0 %1753
      %1755 = vrot.lane.b32.xlu0 %v672, 112
      %v1756 = vpop.permute.xlu0 %1755
      %1757 = vrot.lane.b32.xlu0 %v673, 112
      %v1758 = vpop.permute.xlu0 %1757
      %1759 = vrot.lane.b32.xlu0 %v674, 112
      %v1760 = vpop.permute.xlu0 %1759
      %1761 = vrot.lane.b32.xlu0 %v675, 112
      %v1762 = vpop.permute.xlu0 %1761
      %1763 = vrot.lane.b32.xlu0 %v676, 112
      %v1764 = vpop.permute.xlu0 %1763
      %1765 = vrot.lane.b32.xlu0 %v677, 112
      %v1766 = vpop.permute.xlu0 %1765
      %1767 = vrot.lane.b32.xlu0 %v678, 112
      %v1768 = vpop.permute.xlu0 %1767
      %v1769 = vsel %vm679, %v1738, 0
      %v1771 = vsel %vm679, %v1740, 0
      %v1773 = vsel %vm679, %v1742, 0
      %v1775 = vsel %vm679, %v1744, 0
      %v1777 = vsel %vm679, %v1746, 0
      %v1779 = vsel %vm679, %v1748, 0
      %v1781 = vsel %vm679, %v1750, 0
      %v1783 = vsel %vm679, %v1752, 0
      %v1785 = vsel %vm679, %v1754, 0
      %v1787 = vsel %vm679, %v1756, 0
      %v1789 = vsel %vm679, %v1758, 0
      %v1791 = vsel %vm679, %v1760, 0
      %v1793 = vsel %vm679, %v1762, 0
      %v1795 = vsel %vm679, %v1764, 0
      %v1797 = vsel %vm679, %v1766, 0
      %v1799 = vsel %vm679, %v1768, 0
      %1801 = vmatprep.subr.mxu0 0.0
      %1802 = vmatpush1.xpose.msra.mxu0 0.0
      %1803 = vmatprep.subr.mxu0 0.0
      %1804 = vmatpush1.xpose.msra.mxu0 0.0
      %1805 = vmatprep.subr.mxu0 0.0
      %1806 = vmatpush1.xpose.msra.mxu0 0.0
      %1807 = vmatprep.subr.mxu0 0.0
      %1808 = vmatpush1.xpose.msra.mxu0 0.0
      %1809 = vmatprep.subr.mxu0 0.0
      %1810 = vmatpush1.xpose.msra.mxu0 0.0
      %1811 = vmatprep.subr.mxu0 0.0
      %1812 = vmatpush1.xpose.msra.mxu0 0.0
      %1813 = vmatprep.subr.mxu0 0.0
      %1814 = vmatpush1.xpose.msra.mxu0 0.0
      %1815 = vmatprep.subr.mxu0 0.0
      %1816 = vmatpush1.xpose.msra.mxu0 0.0
      %1817 = vmatprep.subr.mxu0 0.0
      %1818 = vmatpush1.xpose.msra.mxu0 %v1799
      %1819 = vmatprep.subr.mxu0 0.0
      %1820 = vmatpush1.xpose.msra.mxu0 %v1797
      %1821 = vmatprep.subr.mxu0 0.0
      %1822 = vmatpush1.xpose.msra.mxu0 %v1795
      %1823 = vmatprep.subr.mxu0 0.0
      %1824 = vmatpush1.xpose.msra.mxu0 %v1793
      %1825 = vmatprep.subr.mxu0 0.0
      %1826 = vmatpush1.xpose.msra.mxu0 %v1791
      %1827 = vmatprep.subr.mxu0 0.0
      %1828 = vmatpush1.xpose.msra.mxu0 %v1789
      %1829 = vmatprep.subr.mxu0 0.0
      %1830 = vmatpush1.xpose.msra.mxu0 %v1787
      %1831 = vmatprep.subr.mxu0 0.0
      %1832 = vmatpush1.xpose.msra.mxu0 %v1785
      %1833 = vmatprep.subr.mxu0 0.0
      %1834 = vmatpush2.xpose.msra.mxu0 0.0
      %1835 = vmatprep.subr.mxu0 0.0
      %1836 = vmatpush2.xpose.msra.mxu0 0.0
      %1837 = vmatprep.subr.mxu0 0.0
      %1838 = vmatpush2.xpose.msra.mxu0 0.0
      %1839 = vmatprep.subr.mxu0 0.0
      %1840 = vmatpush2.xpose.msra.mxu0 0.0
      %1841 = vmatprep.subr.mxu0 0.0
      %1842 = vmatpush2.xpose.msra.mxu0 0.0
      %1843 = vmatprep.subr.mxu0 0.0
      %1844 = vmatpush2.xpose.msra.mxu0 0.0
      %1845 = vmatprep.subr.mxu0 0.0
      %1846 = vmatpush2.xpose.msra.mxu0 0.0
      %1847 = vmatprep.subr.mxu0 0.0
      %1848 = vmatpush2.xpose.msra.mxu0 0.0
      %1849 = vmatprep.subr.mxu0 0.0
      %1850 = vmatpush2.xpose.msra.mxu0 0.0
      %1851 = vmatprep.subr.mxu0 0.0
      %1852 = vmatpush2.xpose.msra.mxu0 0.0
      %1853 = vmatprep.subr.mxu0 0.0
      %1854 = vmatpush2.xpose.msra.mxu0 0.0
      %1855 = vmatprep.subr.mxu0 0.0
      %1856 = vmatpush2.xpose.msra.mxu0 0.0
      %1857 = vmatprep.subr.mxu0 0.0
      %1858 = vmatpush2.xpose.msra.mxu0 0.0
      %1859 = vmatprep.subr.mxu0 0.0
      %1860 = vmatpush2.xpose.msra.mxu0 0.0
      %1861 = vmatprep.subr.mxu0 0.0
      %1862 = vmatpush2.xpose.msra.mxu0 0.0
      %1863 = vmatprep.subr.mxu0 0.0
      %1864 = vmatpush2.xpose.msra.mxu0 0.0
      %1865 = vmatprep.mubr.f32.mxu0 0.0
      %1866 = vmatmul.mubr.f32.gmra.mxu0 %v1769
      %v1867 = vpop.f32.mrf.mxu0
      %v1868 = vadd.f32 0.0, %v1867
      %v1869 = vpop.f32.mrf.mxu0
      %1870 = vmatprep.mubr.f32.mxu0 0.0
      %1871 = vmatmul.mubr.f32.gmra.mxu0 %v1771
      %v1872 = vpop.f32.mrf.mxu0
      %v1873 = vadd.f32 0.0, %v1872
      %v1874 = vpop.f32.mrf.mxu0
      %1875 = vmatprep.mubr.f32.mxu0 0.0
      %1876 = vmatmul.mubr.f32.gmra.mxu0 %v1773
      %v1877 = vpop.f32.mrf.mxu0
      %v1878 = vadd.f32 0.0, %v1877
      %v1879 = vpop.f32.mrf.mxu0
      %1880 = vmatprep.mubr.f32.mxu0 0.0
      %1881 = vmatmul.mubr.f32.gmra.mxu0 %v1775
      %v1882 = vpop.f32.mrf.mxu0
      %v1883 = vadd.f32 0.0, %v1882
      %v1884 = vpop.f32.mrf.mxu0
      %1885 = vmatprep.mubr.f32.mxu0 0.0
      %1886 = vmatmul.mubr.f32.gmra.mxu0 %v1777
      %v1887 = vpop.f32.mrf.mxu0
      %v1888 = vadd.f32 0.0, %v1887
      %v1889 = vpop.f32.mrf.mxu0
      %1890 = vmatprep.mubr.f32.mxu0 0.0
      %1891 = vmatmul.mubr.f32.gmra.mxu0 %v1779
      %v1892 = vpop.f32.mrf.mxu0
      %v1893 = vadd.f32 0.0, %v1892
      %v1894 = vpop.f32.mrf.mxu0
      %1895 = vmatprep.mubr.f32.mxu0 0.0
      %1896 = vmatmul.mubr.f32.gmra.mxu0 %v1781
      %v1897 = vpop.f32.mrf.mxu0
      %v1898 = vadd.f32 0.0, %v1897
      %v1899 = vpop.f32.mrf.mxu0
      %1900 = vmatprep.mubr.f32.mxu0 0.0
      %1901 = vmatmul.mubr.f32.gmra.mxu0 %v1783
      %v1902 = vpop.f32.mrf.mxu0
      %v1903 = vadd.f32 0.0, %v1902
      %v1904 = vpop.f32.mrf.mxu0
      %1905 = vdwg.mxu0
      %v1906 = vsel %vm833, %v1868, -inf
      %1907 = vmax.xlane.f32.xlu0 %v1906
      %v1908 = vpop.xlane.xlu0 %1907
      %v1909 = vsel %vm833, %v1873, -inf
      %1910 = vmax.xlane.f32.xlu0 %v1909
      %v1911 = vpop.xlane.xlu0 %1910
      %v1912 = vsel %vm833, %v1878, -inf
      %1913 = vmax.xlane.f32.xlu0 %v1912
      %v1914 = vpop.xlane.xlu0 %1913
      %v1915 = vsel %vm833, %v1883, -inf
      %1916 = vmax.xlane.f32.xlu0 %v1915
      %v1917 = vpop.xlane.xlu0 %1916
      %v1918 = vsel %vm833, %v1888, -inf
      %1919 = vmax.xlane.f32.xlu0 %v1918
      %v1920 = vpop.xlane.xlu0 %1919
      %v1921 = vsel %vm833, %v1893, -inf
      %1922 = vmax.xlane.f32.xlu0 %v1921
      %v1923 = vpop.xlane.xlu0 %1922
      %v1924 = vsel %vm833, %v1898, -inf
      %1925 = vmax.xlane.f32.xlu0 %v1924
      %v1926 = vpop.xlane.xlu0 %1925
      %v1927 = vsel %vm833, %v1903, -inf
      %1928 = vmax.xlane.f32.xlu0 %v1927
      %v1929 = vpop.xlane.xlu0 %1928
      %v1930 = vsub.f32 %v1868, %v1908
      %v1931 = vsub.f32 %v1873, %v1911
      %v1932 = vsub.f32 %v1878, %v1914
      %v1933 = vsub.f32 %v1883, %v1917
      %v1934 = vsub.f32 %v1888, %v1920
      %v1935 = vsub.f32 %v1893, %v1923
      %v1936 = vsub.f32 %v1898, %v1926
      %v1937 = vsub.f32 %v1903, %v1929
      %v1938 = vmul.f32 %v1930, 1.442695
      %v1939 = vpow.pop %v1938
      %v1940 = vmul.f32 %v1931, 1.442695
      %v1941 = vpow.pop %v1940
      %v1942 = vmul.f32 %v1932, 1.442695
      %v1943 = vpow.pop %v1942
      %v1944 = vmul.f32 %v1933, 1.442695
      %v1945 = vpow.pop %v1944
      %v1946 = vmul.f32 %v1934, 1.442695
      %v1947 = vpow.pop %v1946
      %v1948 = vmul.f32 %v1935, 1.442695
      %v1949 = vpow.pop %v1948
      %v1950 = vmul.f32 %v1936, 1.442695
      %v1951 = vpow.pop %v1950
      %v1952 = vmul.f32 %v1937, 1.442695
      %v1953 = vpow.pop %v1952
      %v1954 = vsel %vm833, %v1939, 0.0
      %1955 = vadd.xlane.f32.xlu0 %v1954
      %v1956 = vpop.xlane.xlu0 %1955
      %v1957 = vsel %vm833, %v1941, 0.0
      %1958 = vadd.xlane.f32.xlu0 %v1957
      %v1959 = vpop.xlane.xlu0 %1958
      %v1960 = vsel %vm833, %v1943, 0.0
      %1961 = vadd.xlane.f32.xlu0 %v1960
      %v1962 = vpop.xlane.xlu0 %1961
      %v1963 = vsel %vm833, %v1945, 0.0
      %1964 = vadd.xlane.f32.xlu0 %v1963
      %v1965 = vpop.xlane.xlu0 %1964
      %v1966 = vsel %vm833, %v1947, 0.0
      %1967 = vadd.xlane.f32.xlu0 %v1966
      %v1968 = vpop.xlane.xlu0 %1967
      %v1969 = vsel %vm833, %v1949, 0.0
      %1970 = vadd.xlane.f32.xlu0 %v1969
      %v1971 = vpop.xlane.xlu0 %1970
      %v1972 = vsel %vm833, %v1951, 0.0
      %1973 = vadd.xlane.f32.xlu0 %v1972
      %v1974 = vpop.xlane.xlu0 %1973
      %v1975 = vsel %vm833, %v1953, 0.0
      %1976 = vadd.xlane.f32.xlu0 %v1975
      %v1977 = vpop.xlane.xlu0 %1976
      %1978 = vrot.lane.b32.xlu0 %v906, 112
      %v1979 = vpop.permute.xlu0 %1978
      %1980 = vrot.lane.b32.xlu0 %v907, 112
      %v1981 = vpop.permute.xlu0 %1980
      %1982 = vrot.lane.b32.xlu0 %v908, 112
      %v1983 = vpop.permute.xlu0 %1982
      %1984 = vrot.lane.b32.xlu0 %v909, 112
      %v1985 = vpop.permute.xlu0 %1984
      %1986 = vrot.lane.b32.xlu0 %v910, 112
      %v1987 = vpop.permute.xlu0 %1986
      %1988 = vrot.lane.b32.xlu0 %v911, 112
      %v1989 = vpop.permute.xlu0 %1988
      %1990 = vrot.lane.b32.xlu0 %v912, 112
      %v1991 = vpop.permute.xlu0 %1990
      %1992 = vrot.lane.b32.xlu0 %v913, 112
      %v1993 = vpop.permute.xlu0 %1992
      %v2003 = vsel %vm833, %v1939, 0
      %v2006 = vsel %vm833, %v1941, 0
      %v2009 = vsel %vm833, %v1943, 0
      %v2012 = vsel %vm833, %v1945, 0
      %v2015 = vsel %vm833, %v1947, 0
      %v2018 = vsel %vm833, %v1949, 0
      %v2021 = vsel %vm833, %v1951, 0
      %v2024 = vsel %vm833, %v1953, 0
      %2026 = vmatprep.subr.mxu0 0.0
      %2027 = vmatpush1.msra.mxu0 0.0
      %2028 = vmatprep.subr.mxu0 0.0
      %2029 = vmatpush1.msra.mxu0 0.0
      %2030 = vmatprep.subr.mxu0 0.0
      %2031 = vmatpush1.msra.mxu0 0.0
      %2032 = vmatprep.subr.mxu0 0.0
      %2033 = vmatpush1.msra.mxu0 0.0
      %2034 = vmatprep.subr.mxu0 0.0
      %2035 = vmatpush1.msra.mxu0 0.0
      %2036 = vmatprep.subr.mxu0 0.0
      %2037 = vmatpush1.msra.mxu0 0.0
      %2038 = vmatprep.subr.mxu0 0.0
      %2039 = vmatpush1.msra.mxu0 0.0
      %2040 = vmatprep.subr.mxu0 0.0
      %2041 = vmatpush1.msra.mxu0 0.0
      %2042 = vmatprep.subr.mxu0 0.0
      %2043 = vmatpush1.msra.mxu0 %v1993
      %2044 = vmatprep.subr.mxu0 0.0
      %2045 = vmatpush1.msra.mxu0 %v1991
      %2046 = vmatprep.subr.mxu0 0.0
      %2047 = vmatpush1.msra.mxu0 %v1989
      %2048 = vmatprep.subr.mxu0 0.0
      %2049 = vmatpush1.msra.mxu0 %v1987
      %2050 = vmatprep.subr.mxu0 0.0
      %2051 = vmatpush1.msra.mxu0 %v1985
      %2052 = vmatprep.subr.mxu0 0.0
      %2053 = vmatpush1.msra.mxu0 %v1983
      %2054 = vmatprep.subr.mxu0 0.0
      %2055 = vmatpush1.msra.mxu0 %v1981
      %2056 = vmatprep.subr.mxu0 0.0
      %2057 = vmatpush1.msra.mxu0 %v1979
      %2058 = vmatprep.subr.mxu0 0.0
      %2059 = vmatpush2.msra.mxu0 0.0
      %2060 = vmatprep.subr.mxu0 0.0
      %2061 = vmatpush2.msra.mxu0 0.0
      %2062 = vmatprep.subr.mxu0 0.0
      %2063 = vmatpush2.msra.mxu0 0.0
      %2064 = vmatprep.subr.mxu0 0.0
      %2065 = vmatpush2.msra.mxu0 0.0
      %2066 = vmatprep.subr.mxu0 0.0
      %2067 = vmatpush2.msra.mxu0 0.0
      %2068 = vmatprep.subr.mxu0 0.0
      %2069 = vmatpush2.msra.mxu0 0.0
      %2070 = vmatprep.subr.mxu0 0.0
      %2071 = vmatpush2.msra.mxu0 0.0
      %2072 = vmatprep.subr.mxu0 0.0
      %2073 = vmatpush2.msra.mxu0 0.0
      %2074 = vmatprep.subr.mxu0 0.0
      %2075 = vmatpush2.msra.mxu0 0.0
      %2076 = vmatprep.subr.mxu0 0.0
      %2077 = vmatpush2.msra.mxu0 0.0
      %2078 = vmatprep.subr.mxu0 0.0
      %2079 = vmatpush2.msra.mxu0 0.0
      %2080 = vmatprep.subr.mxu0 0.0
      %2081 = vmatpush2.msra.mxu0 0.0
      %2082 = vmatprep.subr.mxu0 0.0
      %2083 = vmatpush2.msra.mxu0 0.0
      %2084 = vmatprep.subr.mxu0 0.0
      %2085 = vmatpush2.msra.mxu0 0.0
      %2086 = vmatprep.subr.mxu0 0.0
      %2087 = vmatpush2.msra.mxu0 0.0
      %2088 = vmatprep.subr.mxu0 0.0
      %2089 = vmatpush2.msra.mxu0 0.0
      %2090 = vmatprep.mubr.f32.mxu0 0.0
      %2091 = vmatmul.mubr.f32.gmra.mxu0 %v2003
      %v2092 = vpop.f32.mrf.mxu0
      %v2093 = vadd.f32 0.0, %v2092
      %v2094 = vpop.f32.mrf.mxu0
      %2095 = vmatprep.mubr.f32.mxu0 0.0
      %2096 = vmatmul.mubr.f32.gmra.mxu0 %v2006
      %v2097 = vpop.f32.mrf.mxu0
      %v2098 = vadd.f32 0.0, %v2097
      %v2099 = vpop.f32.mrf.mxu0
      %2100 = vmatprep.mubr.f32.mxu0 0.0
      %2101 = vmatmul.mubr.f32.gmra.mxu0 %v2009
      %v2102 = vpop.f32.mrf.mxu0
      %v2103 = vadd.f32 0.0, %v2102
      %v2104 = vpop.f32.mrf.mxu0
      %2105 = vmatprep.mubr.f32.mxu0 0.0
      %2106 = vmatmul.mubr.f32.gmra.mxu0 %v2012
      %v2107 = vpop.f32.mrf.mxu0
      %v2108 = vadd.f32 0.0, %v2107
      %v2109 = vpop.f32.mrf.mxu0
      %2110 = vmatprep.mubr.f32.mxu0 0.0
      %2111 = vmatmul.mubr.f32.gmra.mxu0 %v2015
      %v2112 = vpop.f32.mrf.mxu0
      %v2113 = vadd.f32 0.0, %v2112
      %v2114 = vpop.f32.mrf.mxu0
      %2115 = vmatprep.mubr.f32.mxu0 0.0
      %2116 = vmatmul.mubr.f32.gmra.mxu0 %v2018
      %v2117 = vpop.f32.mrf.mxu0
      %v2118 = vadd.f32 0.0, %v2117
      %v2119 = vpop.f32.mrf.mxu0
      %2120 = vmatprep.mubr.f32.mxu0 0.0
      %2121 = vmatmul.mubr.f32.gmra.mxu0 %v2021
      %v2122 = vpop.f32.mrf.mxu0
      %v2123 = vadd.f32 0.0, %v2122
      %v2124 = vpop.f32.mrf.mxu0
      %2125 = vmatprep.mubr.f32.mxu0 0.0
      %2126 = vmatmul.mubr.f32.gmra.mxu0 %v2024
      %v2127 = vpop.f32.mrf.mxu0
      %v2128 = vadd.f32 0.0, %v2127
      %v2129 = vpop.f32.mrf.mxu0
      %2130 = vdwg.mxu0
      %v2131 = vrcp.pop %v1956
      %v2132 = vrcp.pop %v1959
      %v2133 = vrcp.pop %v1962
      %v2134 = vrcp.pop %v1965
      %v2135 = vrcp.pop %v1968
      %v2136 = vrcp.pop %v1971
      %v2137 = vrcp.pop %v1974
      %v2138 = vrcp.pop %v1977
      %v2139 = vmul.f32 %v2093, %v2131
      %v2140 = vmul.f32 %v2098, %v2132
      %v2141 = vmul.f32 %v2103, %v2133
      %v2142 = vmul.f32 %v2108, %v2134
      %v2143 = vmul.f32 %v2113, %v2135
      %v2144 = vmul.f32 %v2118, %v2136
      %v2145 = vmul.f32 %v2123, %v2137
      %v2146 = vmul.f32 %v2128, %v2138
      %v2147 = vld [vmem:[%s4 + $0x10] sm:$0xff]
      %v2149 = vsel %vm679, %v2139, 0
      %v2152 = vsel %vm679, %v2140, 0
      %v2155 = vsel %vm679, %v2141, 0
      %v2158 = vsel %vm679, %v2142, 0
      %v2161 = vsel %vm679, %v2143, 0
      %v2164 = vsel %vm679, %v2144, 0
      %v2167 = vsel %vm679, %v2145, 0
      %v2170 = vsel %vm679, %v2146, 0
      %2172 = vmatprep.subr.mxu0 0.0
      %2173 = vmatpush1.msra.mxu0 0.0
      %2174 = vmatprep.subr.mxu0 0.0
      %2175 = vmatpush1.msra.mxu0 0.0
      %2176 = vmatprep.subr.mxu0 0.0
      %2177 = vmatpush1.msra.mxu0 0.0
      %2178 = vmatprep.subr.mxu0 0.0
      %2179 = vmatpush1.msra.mxu0 0.0
      %2180 = vmatprep.subr.mxu0 0.0
      %2181 = vmatpush1.msra.mxu0 0.0
      %2182 = vmatprep.subr.mxu0 0.0
      %2183 = vmatpush1.msra.mxu0 0.0
      %2184 = vmatprep.subr.mxu0 0.0
      %2185 = vmatpush1.msra.mxu0 0.0
      %2186 = vmatprep.subr.mxu0 0.0
      %2187 = vmatpush1.msra.mxu0 0.0
      %2188 = vmatprep.subr.mxu0 0.0
      %2189 = vmatpush1.msra.mxu0 0.0
      %2190 = vmatprep.subr.mxu0 0.0
      %2191 = vmatpush1.msra.mxu0 0.0
      %2192 = vmatprep.subr.mxu0 0.0
      %2193 = vmatpush1.msra.mxu0 0.0
      %2194 = vmatprep.subr.mxu0 0.0
      %2195 = vmatpush1.msra.mxu0 0.0
      %2196 = vmatprep.subr.mxu0 0.0
      %2197 = vmatpush1.msra.mxu0 0.0
      %2198 = vmatprep.subr.mxu0 0.0
      %2199 = vmatpush1.msra.mxu0 0.0
      %2200 = vmatprep.subr.mxu0 0.0
      %2201 = vmatpush1.msra.mxu0 0.0
      %2202 = vmatprep.subr.mxu0 0.0
      %2203 = vmatpush1.msra.mxu0 %v2147
      %2204 = vmatprep.subr.mxu0 0.0
      %2205 = vmatpush2.msra.mxu0 0.0
      %2206 = vmatprep.subr.mxu0 0.0
      %2207 = vmatpush2.msra.mxu0 0.0
      %2208 = vmatprep.subr.mxu0 0.0
      %2209 = vmatpush2.msra.mxu0 0.0
      %2210 = vmatprep.subr.mxu0 0.0
      %2211 = vmatpush2.msra.mxu0 0.0
      %2212 = vmatprep.subr.mxu0 0.0
      %2213 = vmatpush2.msra.mxu0 0.0
      %2214 = vmatprep.subr.mxu0 0.0
      %2215 = vmatpush2.msra.mxu0 0.0
      %2216 = vmatprep.subr.mxu0 0.0
      %2217 = vmatpush2.msra.mxu0 0.0
      %2218 = vmatprep.subr.mxu0 0.0
      %2219 = vmatpush2.msra.mxu0 0.0
      %2220 = vmatprep.subr.mxu0 0.0
      %2221 = vmatpush2.msra.mxu0 0.0
      %2222 = vmatprep.subr.mxu0 0.0
      %2223 = vmatpush2.msra.mxu0 0.0
      %2224 = vmatprep.subr.mxu0 0.0
      %2225 = vmatpush2.msra.mxu0 0.0
      %2226 = vmatprep.subr.mxu0 0.0
      %2227 = vmatpush2.msra.mxu0 0.0
      %2228 = vmatprep.subr.mxu0 0.0
      %2229 = vmatpush2.msra.mxu0 0.0
      %2230 = vmatprep.subr.mxu0 0.0
      %2231 = vmatpush2.msra.mxu0 0.0
      %2232 = vmatprep.subr.mxu0 0.0
      %2233 = vmatpush2.msra.mxu0 0.0
      %2234 = vmatprep.subr.mxu0 0.0
      %2235 = vmatpush2.msra.mxu0 0.0
      %2236 = vmatprep.mubr.f32.mxu0 0.0
      %2237 = vmatmul.mubr.f32.gmra.mxu0 %v2149
      %v2238 = vpop.f32.mrf.mxu0
      %v2239 = vadd.f32 0.0, %v2238
      %v2240 = vpop.f32.mrf.mxu0
      %2241 = vmatprep.mubr.f32.mxu0 0.0
      %2242 = vmatmul.mubr.f32.gmra.mxu0 %v2152
      %v2243 = vpop.f32.mrf.mxu0
      %v2244 = vadd.f32 0.0, %v2243
      %v2245 = vpop.f32.mrf.mxu0
      %2246 = vmatprep.mubr.f32.mxu0 0.0
      %2247 = vmatmul.mubr.f32.gmra.mxu0 %v2155
      %v2248 = vpop.f32.mrf.mxu0
      %v2249 = vadd.f32 0.0, %v2248
      %v2250 = vpop.f32.mrf.mxu0
      %2251 = vmatprep.mubr.f32.mxu0 0.0
      %2252 = vmatmul.mubr.f32.gmra.mxu0 %v2158
      %v2253 = vpop.f32.mrf.mxu0
      %v2254 = vadd.f32 0.0, %v2253
      %v2255 = vpop.f32.mrf.mxu0
      %2256 = vmatprep.mubr.f32.mxu0 0.0
      %2257 = vmatmul.mubr.f32.gmra.mxu0 %v2161
      %v2258 = vpop.f32.mrf.mxu0
      %v2259 = vadd.f32 0.0, %v2258
      %v2260 = vpop.f32.mrf.mxu0
      %2261 = vmatprep.mubr.f32.mxu0 0.0
      %2262 = vmatmul.mubr.f32.gmra.mxu0 %v2164
      %v2263 = vpop.f32.mrf.mxu0
      %v2264 = vadd.f32 0.0, %v2263
      %v2265 = vpop.f32.mrf.mxu0
      %2266 = vmatprep.mubr.f32.mxu0 0.0
      %2267 = vmatmul.mubr.f32.gmra.mxu0 %v2167
      %v2268 = vpop.f32.mrf.mxu0
      %v2269 = vadd.f32 0.0, %v2268
      %v2270 = vpop.f32.mrf.mxu0
      %2271 = vmatprep.mubr.f32.mxu0 0.0
      %2272 = vmatmul.mubr.f32.gmra.mxu0 %v2170
      %v2273 = vpop.f32.mrf.mxu0
      %v2274 = vadd.f32 0.0, %v2273
      %v2275 = vpop.f32.mrf.mxu0
      %2276 = vdwg.mxu0
      %v2277 = vadd.f32 %v1699, %v2239
      %v2278 = vadd.f32 %v1704, %v2244
      %v2279 = vadd.f32 %v1709, %v2249
      %v2280 = vadd.f32 %v1714, %v2254
      %v2281 = vadd.f32 %v1719, %v2259
      %v2282 = vadd.f32 %v1724, %v2264
      %v2283 = vadd.f32 %v1729, %v2269
      %v2284 = vadd.f32 %v1734, %v2274
      %2285 = vrot.lane.b32.xlu0 %v663, 104
      %v2286 = vpop.permute.xlu0 %2285
      %2287 = vrot.lane.b32.xlu0 %v664, 104
      %v2288 = vpop.permute.xlu0 %2287
      %2289 = vrot.lane.b32.xlu0 %v665, 104
      %v2290 = vpop.permute.xlu0 %2289
      %2291 = vrot.lane.b32.xlu0 %v666, 104
      %v2292 = vpop.permute.xlu0 %2291
      %2293 = vrot.lane.b32.xlu0 %v667, 104
      %v2294 = vpop.permute.xlu0 %2293
      %2295 = vrot.lane.b32.xlu0 %v668, 104
      %v2296 = vpop.permute.xlu0 %2295
      %2297 = vrot.lane.b32.xlu0 %v669, 104
      %v2298 = vpop.permute.xlu0 %2297
      %2299 = vrot.lane.b32.xlu0 %v670, 104
      %v2300 = vpop.permute.xlu0 %2299
      %2301 = vrot.lane.b32.xlu0 %v671, 104
      %v2302 = vpop.permute.xlu0 %2301
      %2303 = vrot.lane.b32.xlu0 %v672, 104
      %v2304 = vpop.permute.xlu0 %2303
      %2305 = vrot.lane.b32.xlu0 %v673, 104
      %v2306 = vpop.permute.xlu0 %2305
      %2307 = vrot.lane.b32.xlu0 %v674, 104
      %v2308 = vpop.permute.xlu0 %2307
      %2309 = vrot.lane.b32.xlu0 %v675, 104
      %v2310 = vpop.permute.xlu0 %2309
      %2311 = vrot.lane.b32.xlu0 %v676, 104
      %v2312 = vpop.permute.xlu0 %2311
      %2313 = vrot.lane.b32.xlu0 %v677, 104
      %v2314 = vpop.permute.xlu0 %2313
      %2315 = vrot.lane.b32.xlu0 %v678, 104
      %v2316 = vpop.permute.xlu0 %2315
      %v2317 = vsel %vm679, %v2286, 0
      %v2319 = vsel %vm679, %v2288, 0
      %v2321 = vsel %vm679, %v2290, 0
      %v2323 = vsel %vm679, %v2292, 0
      %v2325 = vsel %vm679, %v2294, 0
      %v2327 = vsel %vm679, %v2296, 0
      %v2329 = vsel %vm679, %v2298, 0
      %v2331 = vsel %vm679, %v2300, 0
      %v2333 = vsel %vm679, %v2302, 0
      %v2335 = vsel %vm679, %v2304, 0
      %v2337 = vsel %vm679, %v2306, 0
      %v2339 = vsel %vm679, %v2308, 0
      %v2341 = vsel %vm679, %v2310, 0
      %v2343 = vsel %vm679, %v2312, 0
      %v2345 = vsel %vm679, %v2314, 0
      %v2347 = vsel %vm679, %v2316, 0
      %2349 = vmatprep.subr.mxu0 0.0
      %2350 = vmatpush1.xpose.msra.mxu0 0.0
      %2351 = vmatprep.subr.mxu0 0.0
      %2352 = vmatpush1.xpose.msra.mxu0 0.0
      %2353 = vmatprep.subr.mxu0 0.0
      %2354 = vmatpush1.xpose.msra.mxu0 0.0
      %2355 = vmatprep.subr.mxu0 0.0
      %2356 = vmatpush1.xpose.msra.mxu0 0.0
      %2357 = vmatprep.subr.mxu0 0.0
      %2358 = vmatpush1.xpose.msra.mxu0 0.0
      %2359 = vmatprep.subr.mxu0 0.0
      %2360 = vmatpush1.xpose.msra.mxu0 0.0
      %2361 = vmatprep.subr.mxu0 0.0
      %2362 = vmatpush1.xpose.msra.mxu0 0.0
      %2363 = vmatprep.subr.mxu0 0.0
      %2364 = vmatpush1.xpose.msra.mxu0 0.0
      %2365 = vmatprep.subr.mxu0 0.0
      %2366 = vmatpush1.xpose.msra.mxu0 %v2347
      %2367 = vmatprep.subr.mxu0 0.0
      %2368 = vmatpush1.xpose.msra.mxu0 %v2345
      %2369 = vmatprep.subr.mxu0 0.0
      %2370 = vmatpush1.xpose.msra.mxu0 %v2343
      %2371 = vmatprep.subr.mxu0 0.0
      %2372 = vmatpush1.xpose.msra.mxu0 %v2341
      %2373 = vmatprep.subr.mxu0 0.0
      %2374 = vmatpush1.xpose.msra.mxu0 %v2339
      %2375 = vmatprep.subr.mxu0 0.0
      %2376 = vmatpush1.xpose.msra.mxu0 %v2337
      %2377 = vmatprep.subr.mxu0 0.0
      %2378 = vmatpush1.xpose.msra.mxu0 %v2335
      %2379 = vmatprep.subr.mxu0 0.0
      %2380 = vmatpush1.xpose.msra.mxu0 %v2333
      %2381 = vmatprep.subr.mxu0 0.0
      %2382 = vmatpush2.xpose.msra.mxu0 0.0
      %2383 = vmatprep.subr.mxu0 0.0
      %2384 = vmatpush2.xpose.msra.mxu0 0.0
      %2385 = vmatprep.subr.mxu0 0.0
      %2386 = vmatpush2.xpose.msra.mxu0 0.0
      %2387 = vmatprep.subr.mxu0 0.0
      %2388 = vmatpush2.xpose.msra.mxu0 0.0
      %2389 = vmatprep.subr.mxu0 0.0
      %2390 = vmatpush2.xpose.msra.mxu0 0.0
      %2391 = vmatprep.subr.mxu0 0.0
      %2392 = vmatpush2.xpose.msra.mxu0 0.0
      %2393 = vmatprep.subr.mxu0 0.0
      %2394 = vmatpush2.xpose.msra.mxu0 0.0
      %2395 = vmatprep.subr.mxu0 0.0
      %2396 = vmatpush2.xpose.msra.mxu0 0.0
      %2397 = vmatprep.subr.mxu0 0.0
      %2398 = vmatpush2.xpose.msra.mxu0 0.0
      %2399 = vmatprep.subr.mxu0 0.0
      %2400 = vmatpush2.xpose.msra.mxu0 0.0
      %2401 = vmatprep.subr.mxu0 0.0
      %2402 = vmatpush2.xpose.msra.mxu0 0.0
      %2403 = vmatprep.subr.mxu0 0.0
      %2404 = vmatpush2.xpose.msra.mxu0 0.0
      %2405 = vmatprep.subr.mxu0 0.0
      %2406 = vmatpush2.xpose.msra.mxu0 0.0
      %2407 = vmatprep.subr.mxu0 0.0
      %2408 = vmatpush2.xpose.msra.mxu0 0.0
      %2409 = vmatprep.subr.mxu0 0.0
      %2410 = vmatpush2.xpose.msra.mxu0 0.0
      %2411 = vmatprep.subr.mxu0 0.0
      %2412 = vmatpush2.xpose.msra.mxu0 0.0
      %2413 = vmatprep.mubr.f32.mxu0 0.0
      %2414 = vmatmul.mubr.f32.gmra.mxu0 %v2317
      %v2415 = vpop.f32.mrf.mxu0
      %v2416 = vadd.f32 0.0, %v2415
      %v2417 = vpop.f32.mrf.mxu0
      %2418 = vmatprep.mubr.f32.mxu0 0.0
      %2419 = vmatmul.mubr.f32.gmra.mxu0 %v2319
      %v2420 = vpop.f32.mrf.mxu0
      %v2421 = vadd.f32 0.0, %v2420
      %v2422 = vpop.f32.mrf.mxu0
      %2423 = vmatprep.mubr.f32.mxu0 0.0
      %2424 = vmatmul.mubr.f32.gmra.mxu0 %v2321
      %v2425 = vpop.f32.mrf.mxu0
      %v2426 = vadd.f32 0.0, %v2425
      %v2427 = vpop.f32.mrf.mxu0
      %2428 = vmatprep.mubr.f32.mxu0 0.0
      %2429 = vmatmul.mubr.f32.gmra.mxu0 %v2323
      %v2430 = vpop.f32.mrf.mxu0
      %v2431 = vadd.f32 0.0, %v2430
      %v2432 = vpop.f32.mrf.mxu0
      %2433 = vmatprep.mubr.f32.mxu0 0.0
      %2434 = vmatmul.mubr.f32.gmra.mxu0 %v2325
      %v2435 = vpop.f32.mrf.mxu0
      %v2436 = vadd.f32 0.0, %v2435
      %v2437 = vpop.f32.mrf.mxu0
      %2438 = vmatprep.mubr.f32.mxu0 0.0
      %2439 = vmatmul.mubr.f32.gmra.mxu0 %v2327
      %v2440 = vpop.f32.mrf.mxu0
      %v2441 = vadd.f32 0.0, %v2440
      %v2442 = vpop.f32.mrf.mxu0
      %2443 = vmatprep.mubr.f32.mxu0 0.0
      %2444 = vmatmul.mubr.f32.gmra.mxu0 %v2329
      %v2445 = vpop.f32.mrf.mxu0
      %v2446 = vadd.f32 0.0, %v2445
      %v2447 = vpop.f32.mrf.mxu0
      %2448 = vmatprep.mubr.f32.mxu0 0.0
      %2449 = vmatmul.mubr.f32.gmra.mxu0 %v2331
      %v2450 = vpop.f32.mrf.mxu0
      %v2451 = vadd.f32 0.0, %v2450
      %v2452 = vpop.f32.mrf.mxu0
      %2453 = vdwg.mxu0
      %v2454 = vsel %vm833, %v2416, -inf
      %2455 = vmax.xlane.f32.xlu0 %v2454
      %v2456 = vpop.xlane.xlu0 %2455
      %v2457 = vsel %vm833, %v2421, -inf
      %2458 = vmax.xlane.f32.xlu0 %v2457
      %v2459 = vpop.xlane.xlu0 %2458
      %v2460 = vsel %vm833, %v2426, -inf
      %2461 = vmax.xlane.f32.xlu0 %v2460
      %v2462 = vpop.xlane.xlu0 %2461
      %v2463 = vsel %vm833, %v2431, -inf
      %2464 = vmax.xlane.f32.xlu0 %v2463
      %v2465 = vpop.xlane.xlu0 %2464
      %v2466 = vsel %vm833, %v2436, -inf
      %2467 = vmax.xlane.f32.xlu0 %v2466
      %v2468 = vpop.xlane.xlu0 %2467
      %v2469 = vsel %vm833, %v2441, -inf
      %2470 = vmax.xlane.f32.xlu0 %v2469
      %v2471 = vpop.xlane.xlu0 %2470
      %v2472 = vsel %vm833, %v2446, -inf
      %2473 = vmax.xlane.f32.xlu0 %v2472
      %v2474 = vpop.xlane.xlu0 %2473
      %v2475 = vsel %vm833, %v2451, -inf
      %2476 = vmax.xlane.f32.xlu0 %v2475
      %v2477 = vpop.xlane.xlu0 %2476
      %v2478 = vsub.f32 %v2416, %v2456
      %v2479 = vsub.f32 %v2421, %v2459
      %v2480 = vsub.f32 %v2426, %v2462
      %v2481 = vsub.f32 %v2431, %v2465
      %v2482 = vsub.f32 %v2436, %v2468
      %v2483 = vsub.f32 %v2441, %v2471
      %v2484 = vsub.f32 %v2446, %v2474
      %v2485 = vsub.f32 %v2451, %v2477
      %v2486 = vmul.f32 %v2478, 1.442695
      %v2487 = vpow.pop %v2486
      %v2488 = vmul.f32 %v2479, 1.442695
      %v2489 = vpow.pop %v2488
      %v2490 = vmul.f32 %v2480, 1.442695
      %v2491 = vpow.pop %v2490
      %v2492 = vmul.f32 %v2481, 1.442695
      %v2493 = vpow.pop %v2492
      %v2494 = vmul.f32 %v2482, 1.442695
      %v2495 = vpow.pop %v2494
      %v2496 = vmul.f32 %v2483, 1.442695
      %v2497 = vpow.pop %v2496
      %v2498 = vmul.f32 %v2484, 1.442695
      %v2499 = vpow.pop %v2498
      %v2500 = vmul.f32 %v2485, 1.442695
      %v2501 = vpow.pop %v2500
      %v2502 = vsel %vm833, %v2487, 0.0
      %2503 = vadd.xlane.f32.xlu0 %v2502
      %v2504 = vpop.xlane.xlu0 %2503
      %v2505 = vsel %vm833, %v2489, 0.0
      %2506 = vadd.xlane.f32.xlu0 %v2505
      %v2507 = vpop.xlane.xlu0 %2506
      %v2508 = vsel %vm833, %v2491, 0.0
      %2509 = vadd.xlane.f32.xlu0 %v2508
      %v2510 = vpop.xlane.xlu0 %2509
      %v2511 = vsel %vm833, %v2493, 0.0
      %2512 = vadd.xlane.f32.xlu0 %v2511
      %v2513 = vpop.xlane.xlu0 %2512
      %v2514 = vsel %vm833, %v2495, 0.0
      %2515 = vadd.xlane.f32.xlu0 %v2514
      %v2516 = vpop.xlane.xlu0 %2515
      %v2517 = vsel %vm833, %v2497, 0.0
      %2518 = vadd.xlane.f32.xlu0 %v2517
      %v2519 = vpop.xlane.xlu0 %2518
      %v2520 = vsel %vm833, %v2499, 0.0
      %2521 = vadd.xlane.f32.xlu0 %v2520
      %v2522 = vpop.xlane.xlu0 %2521
      %v2523 = vsel %vm833, %v2501, 0.0
      %2524 = vadd.xlane.f32.xlu0 %v2523
      %v2525 = vpop.xlane.xlu0 %2524
      %2526 = vrot.lane.b32.xlu0 %v906, 104
      %v2527 = vpop.permute.xlu0 %2526
      %2528 = vrot.lane.b32.xlu0 %v907, 104
      %v2529 = vpop.permute.xlu0 %2528
      %2530 = vrot.lane.b32.xlu0 %v908, 104
      %v2531 = vpop.permute.xlu0 %2530
      %2532 = vrot.lane.b32.xlu0 %v909, 104
      %v2533 = vpop.permute.xlu0 %2532
      %2534 = vrot.lane.b32.xlu0 %v910, 104
      %v2535 = vpop.permute.xlu0 %2534
      %2536 = vrot.lane.b32.xlu0 %v911, 104
      %v2537 = vpop.permute.xlu0 %2536
      %2538 = vrot.lane.b32.xlu0 %v912, 104
      %v2539 = vpop.permute.xlu0 %2538
      %2540 = vrot.lane.b32.xlu0 %v913, 104
      %v2541 = vpop.permute.xlu0 %2540
      %v2551 = vsel %vm833, %v2487, 0
      %v2554 = vsel %vm833, %v2489, 0
      %v2557 = vsel %vm833, %v2491, 0
      %v2560 = vsel %vm833, %v2493, 0
      %v2563 = vsel %vm833, %v2495, 0
      %v2566 = vsel %vm833, %v2497, 0
      %v2569 = vsel %vm833, %v2499, 0
      %v2572 = vsel %vm833, %v2501, 0
      %2574 = vmatprep.subr.mxu0 0.0
      %2575 = vmatpush1.msra.mxu0 0.0
      %2576 = vmatprep.subr.mxu0 0.0
      %2577 = vmatpush1.msra.mxu0 0.0
      %2578 = vmatprep.subr.mxu0 0.0
      %2579 = vmatpush1.msra.mxu0 0.0
      %2580 = vmatprep.subr.mxu0 0.0
      %2581 = vmatpush1.msra.mxu0 0.0
      %2582 = vmatprep.subr.mxu0 0.0
      %2583 = vmatpush1.msra.mxu0 0.0
      %2584 = vmatprep.subr.mxu0 0.0
      %2585 = vmatpush1.msra.mxu0 0.0
      %2586 = vmatprep.subr.mxu0 0.0
      %2587 = vmatpush1.msra.mxu0 0.0
      %2588 = vmatprep.subr.mxu0 0.0
      %2589 = vmatpush1.msra.mxu0 0.0
      %2590 = vmatprep.subr.mxu0 0.0
      %2591 = vmatpush1.msra.mxu0 %v2541
      %2592 = vmatprep.subr.mxu0 0.0
      %2593 = vmatpush1.msra.mxu0 %v2539
      %2594 = vmatprep.subr.mxu0 0.0
      %2595 = vmatpush1.msra.mxu0 %v2537
      %2596 = vmatprep.subr.mxu0 0.0
      %2597 = vmatpush1.msra.mxu0 %v2535
      %2598 = vmatprep.subr.mxu0 0.0
      %2599 = vmatpush1.msra.mxu0 %v2533
      %2600 = vmatprep.subr.mxu0 0.0
      %2601 = vmatpush1.msra.mxu0 %v2531
      %2602 = vmatprep.subr.mxu0 0.0
      %2603 = vmatpush1.msra.mxu0 %v2529
      %2604 = vmatprep.subr.mxu0 0.0
      %2605 = vmatpush1.msra.mxu0 %v2527
      %2606 = vmatprep.subr.mxu0 0.0
      %2607 = vmatpush2.msra.mxu0 0.0
      %2608 = vmatprep.subr.mxu0 0.0
      %2609 = vmatpush2.msra.mxu0 0.0
      %2610 = vmatprep.subr.mxu0 0.0
      %2611 = vmatpush2.msra.mxu0 0.0
      %2612 = vmatprep.subr.mxu0 0.0
      %2613 = vmatpush2.msra.mxu0 0.0
      %2614 = vmatprep.subr.mxu0 0.0
      %2615 = vmatpush2.msra.mxu0 0.0
      %2616 = vmatprep.subr.mxu0 0.0
      %2617 = vmatpush2.msra.mxu0 0.0
      %2618 = vmatprep.subr.mxu0 0.0
      %2619 = vmatpush2.msra.mxu0 0.0
      %2620 = vmatprep.subr.mxu0 0.0
      %2621 = vmatpush2.msra.mxu0 0.0
      %2622 = vmatprep.subr.mxu0 0.0
      %2623 = vmatpush2.msra.mxu0 0.0
      %2624 = vmatprep.subr.mxu0 0.0
      %2625 = vmatpush2.msra.mxu0 0.0
      %2626 = vmatprep.subr.mxu0 0.0
      %2627 = vmatpush2.msra.mxu0 0.0
      %2628 = vmatprep.subr.mxu0 0.0
      %2629 = vmatpush2.msra.mxu0 0.0
      %2630 = vmatprep.subr.mxu0 0.0
      %2631 = vmatpush2.msra.mxu0 0.0
      %2632 = vmatprep.subr.mxu0 0.0
      %2633 = vmatpush2.msra.mxu0 0.0
      %2634 = vmatprep.subr.mxu0 0.0
      %2635 = vmatpush2.msra.mxu0 0.0
      %2636 = vmatprep.subr.mxu0 0.0
      %2637 = vmatpush2.msra.mxu0 0.0
      %2638 = vmatprep.mubr.f32.mxu0 0.0
      %2639 = vmatmul.mubr.f32.gmra.mxu0 %v2551
      %v2640 = vpop.f32.mrf.mxu0
      %v2641 = vadd.f32 0.0, %v2640
      %v2642 = vpop.f32.mrf.mxu0
      %2643 = vmatprep.mubr.f32.mxu0 0.0
      %2644 = vmatmul.mubr.f32.gmra.mxu0 %v2554
      %v2645 = vpop.f32.mrf.mxu0
      %v2646 = vadd.f32 0.0, %v2645
      %v2647 = vpop.f32.mrf.mxu0
      %2648 = vmatprep.mubr.f32.mxu0 0.0
      %2649 = vmatmul.mubr.f32.gmra.mxu0 %v2557
      %v2650 = vpop.f32.mrf.mxu0
      %v2651 = vadd.f32 0.0, %v2650
      %v2652 = vpop.f32.mrf.mxu0
      %2653 = vmatprep.mubr.f32.mxu0 0.0
      %2654 = vmatmul.mubr.f32.gmra.mxu0 %v2560
      %v2655 = vpop.f32.mrf.mxu0
      %v2656 = vadd.f32 0.0, %v2655
      %v2657 = vpop.f32.mrf.mxu0
      %2658 = vmatprep.mubr.f32.mxu0 0.0
      %2659 = vmatmul.mubr.f32.gmra.mxu0 %v2563
      %v2660 = vpop.f32.mrf.mxu0
      %v2661 = vadd.f32 0.0, %v2660
      %v2662 = vpop.f32.mrf.mxu0
      %2663 = vmatprep.mubr.f32.mxu0 0.0
      %2664 = vmatmul.mubr.f32.gmra.mxu0 %v2566
      %v2665 = vpop.f32.mrf.mxu0
      %v2666 = vadd.f32 0.0, %v2665
      %v2667 = vpop.f32.mrf.mxu0
      %2668 = vmatprep.mubr.f32.mxu0 0.0
      %2669 = vmatmul.mubr.f32.gmra.mxu0 %v2569
      %v2670 = vpop.f32.mrf.mxu0
      %v2671 = vadd.f32 0.0, %v2670
      %v2672 = vpop.f32.mrf.mxu0
      %2673 = vmatprep.mubr.f32.mxu0 0.0
      %2674 = vmatmul.mubr.f32.gmra.mxu0 %v2572
      %v2675 = vpop.f32.mrf.mxu0
      %v2676 = vadd.f32 0.0, %v2675
      %v2677 = vpop.f32.mrf.mxu0
      %2678 = vdwg.mxu0
      %v2679 = vrcp.pop %v2504
      %v2680 = vrcp.pop %v2507
      %v2681 = vrcp.pop %v2510
      %v2682 = vrcp.pop %v2513
      %v2683 = vrcp.pop %v2516
      %v2684 = vrcp.pop %v2519
      %v2685 = vrcp.pop %v2522
      %v2686 = vrcp.pop %v2525
      %v2687 = vmul.f32 %v2641, %v2679
      %v2688 = vmul.f32 %v2646, %v2680
      %v2689 = vmul.f32 %v2651, %v2681
      %v2690 = vmul.f32 %v2656, %v2682
      %v2691 = vmul.f32 %v2661, %v2683
      %v2692 = vmul.f32 %v2666, %v2684
      %v2693 = vmul.f32 %v2671, %v2685
      %v2694 = vmul.f32 %v2676, %v2686
      %v2695 = vld [vmem:[%s4 + $0x18] sm:$0xff]
      %v2697 = vsel %vm679, %v2687, 0
      %v2700 = vsel %vm679, %v2688, 0
      %v2703 = vsel %vm679, %v2689, 0
      %v2706 = vsel %vm679, %v2690, 0
      %v2709 = vsel %vm679, %v2691, 0
      %v2712 = vsel %vm679, %v2692, 0
      %v2715 = vsel %vm679, %v2693, 0
      %v2718 = vsel %vm679, %v2694, 0
      %2720 = vmatprep.subr.mxu0 0.0
      %2721 = vmatpush1.msra.mxu0 0.0
      %2722 = vmatprep.subr.mxu0 0.0
      %2723 = vmatpush1.msra.mxu0 0.0
      %2724 = vmatprep.subr.mxu0 0.0
      %2725 = vmatpush1.msra.mxu0 0.0
      %2726 = vmatprep.subr.mxu0 0.0
      %2727 = vmatpush1.msra.mxu0 0.0
      %2728 = vmatprep.subr.mxu0 0.0
      %2729 = vmatpush1.msra.mxu0 0.0
      %2730 = vmatprep.subr.mxu0 0.0
      %2731 = vmatpush1.msra.mxu0 0.0
      %2732 = vmatprep.subr.mxu0 0.0
      %2733 = vmatpush1.msra.mxu0 0.0
      %2734 = vmatprep.subr.mxu0 0.0
      %2735 = vmatpush1.msra.mxu0 0.0
      %2736 = vmatprep.subr.mxu0 0.0
      %2737 = vmatpush1.msra.mxu0 0.0
      %2738 = vmatprep.subr.mxu0 0.0
      %2739 = vmatpush1.msra.mxu0 0.0
      %2740 = vmatprep.subr.mxu0 0.0
      %2741 = vmatpush1.msra.mxu0 0.0
      %2742 = vmatprep.subr.mxu0 0.0
      %2743 = vmatpush1.msra.mxu0 0.0
      %2744 = vmatprep.subr.mxu0 0.0
      %2745 = vmatpush1.msra.mxu0 0.0
      %2746 = vmatprep.subr.mxu0 0.0
      %2747 = vmatpush1.msra.mxu0 0.0
      %2748 = vmatprep.subr.mxu0 0.0
      %2749 = vmatpush1.msra.mxu0 0.0
      %2750 = vmatprep.subr.mxu0 0.0
      %2751 = vmatpush1.msra.mxu0 %v2695
      %2752 = vmatprep.subr.mxu0 0.0
      %2753 = vmatpush2.msra.mxu0 0.0
      %2754 = vmatprep.subr.mxu0 0.0
      %2755 = vmatpush2.msra.mxu0 0.0
      %2756 = vmatprep.subr.mxu0 0.0
      %2757 = vmatpush2.msra.mxu0 0.0
      %2758 = vmatprep.subr.mxu0 0.0
      %2759 = vmatpush2.msra.mxu0 0.0
      %2760 = vmatprep.subr.mxu0 0.0
      %2761 = vmatpush2.msra.mxu0 0.0
      %2762 = vmatprep.subr.mxu0 0.0
      %2763 = vmatpush2.msra.mxu0 0.0
      %2764 = vmatprep.subr.mxu0 0.0
      %2765 = vmatpush2.msra.mxu0 0.0
      %2766 = vmatprep.subr.mxu0 0.0
      %2767 = vmatpush2.msra.mxu0 0.0
      %2768 = vmatprep.subr.mxu0 0.0
      %2769 = vmatpush2.msra.mxu0 0.0
      %2770 = vmatprep.subr.mxu0 0.0
      %2771 = vmatpush2.msra.mxu0 0.0
      %2772 = vmatprep.subr.mxu0 0.0
      %2773 = vmatpush2.msra.mxu0 0.0
      %2774 = vmatprep.subr.mxu0 0.0
      %2775 = vmatpush2.msra.mxu0 0.0
      %2776 = vmatprep.subr.mxu0 0.0
      %2777 = vmatpush2.msra.mxu0 0.0
      %2778 = vmatprep.subr.mxu0 0.0
      %2779 = vmatpush2.msra.mxu0 0.0
      %2780 = vmatprep.subr.mxu0 0.0
      %2781 = vmatpush2.msra.mxu0 0.0
      %2782 = vmatprep.subr.mxu0 0.0
      %2783 = vmatpush2.msra.mxu0 0.0
      %2784 = vmatprep.mubr.f32.mxu0 0.0
      %2785 = vmatmul.mubr.f32.gmra.mxu0 %v2697
      %v2786 = vpop.f32.mrf.mxu0
      %v2787 = vadd.f32 0.0, %v2786
      %v2788 = vpop.f32.mrf.mxu0
      %2789 = vmatprep.mubr.f32.mxu0 0.0
      %2790 = vmatmul.mubr.f32.gmra.mxu0 %v2700
      %v2791 = vpop.f32.mrf.mxu0
      %v2792 = vadd.f32 0.0, %v2791
      %v2793 = vpop.f32.mrf.mxu0
      %2794 = vmatprep.mubr.f32.mxu0 0.0
      %2795 = vmatmul.mubr.f32.gmra.mxu0 %v2703
      %v2796 = vpop.f32.mrf.mxu0
      %v2797 = vadd.f32 0.0, %v2796
      %v2798 = vpop.f32.mrf.mxu0
      %2799 = vmatprep.mubr.f32.mxu0 0.0
      %2800 = vmatmul.mubr.f32.gmra.mxu0 %v2706
      %v2801 = vpop.f32.mrf.mxu0
      %v2802 = vadd.f32 0.0, %v2801
      %v2803 = vpop.f32.mrf.mxu0
      %2804 = vmatprep.mubr.f32.mxu0 0.0
      %2805 = vmatmul.mubr.f32.gmra.mxu0 %v2709
      %v2806 = vpop.f32.mrf.mxu0
      %v2807 = vadd.f32 0.0, %v2806
      %v2808 = vpop.f32.mrf.mxu0
      %2809 = vmatprep.mubr.f32.mxu0 0.0
      %2810 = vmatmul.mubr.f32.gmra.mxu0 %v2712
      %v2811 = vpop.f32.mrf.mxu0
      %v2812 = vadd.f32 0.0, %v2811
      %v2813 = vpop.f32.mrf.mxu0
      %2814 = vmatprep.mubr.f32.mxu0 0.0
      %2815 = vmatmul.mubr.f32.gmra.mxu0 %v2715
      %v2816 = vpop.f32.mrf.mxu0
      %v2817 = vadd.f32 0.0, %v2816
      %v2818 = vpop.f32.mrf.mxu0
      %2819 = vmatprep.mubr.f32.mxu0 0.0
      %2820 = vmatmul.mubr.f32.gmra.mxu0 %v2718
      %v2821 = vpop.f32.mrf.mxu0
      %v2822 = vadd.f32 0.0, %v2821
      %v2823 = vpop.f32.mrf.mxu0
      %2824 = vdwg.mxu0
      %v2825 = vadd.f32 %v2277, %v2787
      %v2826 = vadd.f32 %v2278, %v2792
      %v2827 = vadd.f32 %v2279, %v2797
      %v2828 = vadd.f32 %v2280, %v2802
      %v2829 = vadd.f32 %v2281, %v2807
      %v2830 = vadd.f32 %v2282, %v2812
      %v2831 = vadd.f32 %v2283, %v2817
      %v2832 = vadd.f32 %v2284, %v2822
      %v2833 = vmul.f32 %v521, 0.7
      %v2834 = vmul.f32 %v522, 0.7
      %v2835 = vmul.f32 %v523, 0.7
      %v2836 = vmul.f32 %v524, 0.7
      %v2837 = vmul.f32 %v525, 0.7
      %v2838 = vmul.f32 %v526, 0.7
      %v2839 = vmul.f32 %v527, 0.7
      %v2840 = vmul.f32 %v528, 0.7
      %v2841 = vmul.f32 %v2825, 0.3
      %v2842 = vmul.f32 %v2826, 0.3
      %v2843 = vmul.f32 %v2827, 0.3
      %v2844 = vmul.f32 %v2828, 0.3
      %v2845 = vmul.f32 %v2829, 0.3
      %v2846 = vmul.f32 %v2830, 0.3
      %v2847 = vmul.f32 %v2831, 0.3
      %v2848 = vmul.f32 %v2832, 0.3
      %v2849 = vadd.f32 %v2833, %v2841
      %v2850 = vadd.f32 %v2834, %v2842
      %v2851 = vadd.f32 %v2835, %v2843
      %v2852 = vadd.f32 %v2836, %v2844
      %v2853 = vadd.f32 %v2837, %v2845
      %v2854 = vadd.f32 %v2838, %v2846
      %v2855 = vadd.f32 %v2839, %v2847
      %v2856 = vadd.f32 %v2840, %v2848
      %v2857 = vmul.f32 %v2849, 1.3130643
      %v2858 = vmul.f32 %v2850, 1.3130643
      %v2859 = vmul.f32 %v2851, 1.3130643
      %v2860 = vmul.f32 %v2852, 1.3130643
      %v2861 = vmul.f32 %v2853, 1.3130643
      %v2862 = vmul.f32 %v2854, 1.3130643
      %v2863 = vmul.f32 %v2855, 1.3130643
      %v2864 = vmul.f32 %v2856, 1.3130643
      %2865 = vst.msk [vmem:[%s246] sm:$0xff] %vm533, %v2857
      %2866 = vst.msk [vmem:[%s246 + $0x8] sm:$0xff] %vm533, %v2858
      %2867 = vst.msk [vmem:[%s246 + $0x10] sm:$0xff] %vm533, %v2859
      %2868 = vst.msk [vmem:[%s246 + $0x18] sm:$0xff] %vm533, %v2860
      %2869 = vst.msk [vmem:[%s246 + $0x20] sm:$0xff] %vm533, %v2861
      %2870 = vst.msk [vmem:[%s246 + $0x28] sm:$0xff] %vm533, %v2862
      %2871 = vst.msk [vmem:[%s246 + $0x30] sm:$0xff] %vm533, %v2863
      %2872 = vst.msk [vmem:[%s246 + $0x38] sm:$0xff] %vm533, %v2864
      %s2873 = smul.u32 8, %s21
      %p2874 = scmp.lt.s32.totalorder %s20, 1
      %s2875 = scalar_select %p2874, %s20, 1
      %p2876 = scmp.lt.s32.totalorder %s2873, 7
      %s2877 = scalar_select %p2876, %s2873, 7
      %s2878 = smul.addr %s2875, 8
      %s2879 = sadd.s32 %s2877, %s2878
      %s2880 = smul.addr %s2879, 8
      %s2881 = scalar_lea.vmem %s5, %s2880
      // Predicated region
      $region45: #{tpu_custom_call.1} parent=39 // pred_check
        %p2882 = pneg %p158
      $region46: #{tpu_custom_call.1} parent=39 // pred_check_branch
        %2884 = sbr.rel (%p2882) target = $region48
      $region47: #{tpu_custom_call.1} parent=39 // pred_region
        %s2885 = smul.u32 8, %s21
      $region48: #{tpu_custom_call.1} parent=39 // pred_fallthru
        _
    $region40: #{tpu_custom_call.1} parent=5 // pred_fallthru
      _
    %p2886 = scmp.le.s32.totalorder 2, %s11
    // Predicated region
    $region49: #{tpu_custom_call.1} parent=5 // pred_check
      %p2887 = pneg %p2886
    $region50: #{tpu_custom_call.1} parent=5 // pred_check_branch
      %2889 = sbr.rel (%p2887) target = $region52
    $region51: #{tpu_custom_call.1} parent=5 // pred_region
      %s2890 = ssub.s32 %s11, 2
      // Predicated region
      $region53: #{tpu_custom_call.1} parent=51 // pred_check
        %p2891 = pneg %p164
      $region54: #{tpu_custom_call.1} parent=51 // pred_check_branch
        %2893 = sbr.rel (%p2891) target = $region56
      $region55: #{tpu_custom_call.1} parent=51 // pred_region
        %s2894 = smul.u32 8, %s23
        %p2895 = scmp.lt.s32.totalorder %s22, 1
        %s2896 = scalar_select %p2895, %s22, 1
        %p2897 = scmp.lt.s32.totalorder %s2894, 7
        %s2898 = scalar_select %p2897, %s2894, 7
        %s2899 = smul.addr %s2896, 8
        %s2900 = sadd.s32 %s2898, %s2899
        %s2901 = smul.addr %s2900, 8
        %s2902 = scalar_lea.vmem %s5, %s2901
      $region56: #{tpu_custom_call.1} parent=51 // pred_fallthru
        _
    $region52: #{tpu_custom_call.1} parent=5 // pred_fallthru
      _
  $region6: #{tpu_custom_call.1} parent=0 // loop_footer
    %s15 = sadd.s32 1, %s11
  $region7: #{tpu_custom_call.1} parent=0 // loop_footer_branch
    %10 = sbr.rel target = $region3
  $region8: #{tpu_custom_call.1} parent=0 // loop_exit
    _

// kernel: tpu_custom_call.1
$region0: #{tpu_custom_call.1}
  #allocation0 [shape = 'u32[]', space=smem, size = 0x4, offset = 0x4, fixed_abs, tag = 'smem constant byte address 0x4 - core index']
  #allocation1 [shape = 'u32[144,128]{1,0:T(1,128)}', space=vmem, size = 0x12000, scoped, tag = 'internal scratch']
  #allocation2 [shape = 'f32[64,32]{1,0:T(8,128)}', space=vmem, size = 0x8000, scoped, tag = 'scratch operand']
  #allocation3 [shape = 'f32[64,32]{1,0:T(8,128)}', space=vmem, size = 0x8000, scoped, tag = 'scratch operand']
  %s0 = inlined_call_operand.vmem [shape: f32[2,64,32], index: 0, kind: input, shape index: {}]
  %s1 = inlined_call_operand.vmem [shape: f32[32,32], index: 1, kind: input, shape index: {}]
  %s2 = inlined_call_operand.vmem [shape: f32[32,32], index: 2, kind: input, shape index: {}]
  %s3 = inlined_call_operand.vmem [shape: f32[32,32], index: 3, kind: input, shape index: {}]
  %s4 = inlined_call_operand.vmem [shape: f32[32,32], index: 4, kind: input, shape index: {}]
  %s5 = inlined_call_operand.vmem [shape: f32[2,64,32], index: 5, kind: output, shape index: {}]
  %s6 = sld [smem:[#allocation0]]
  $region57: #{tpu_custom_call.1} parent=0
    _
  %s8 = ssub.s32 1, %s6
  %s9 = scalar_select 0, %s8, %s6
  loop: start=0, step=1, limit=4
  $region2: #{tpu_custom_call.1} parent=0 // loop_pre_header
    _
  $region3: #{tpu_custom_call.1} parent=0 // loop_header
    %s11 = sphi 0, %s15
    %p12 = scmp.ge.s32.totalorder %s11, 4
    %s18 = sphi 0, %s30
    %s19 = sphi 0, %s26
    %s20 = sphi 0, %s18
    %s21 = sphi 0, %s19
    %s22 = sphi 0, %s20
    %s23 = sphi 0, %s21
    %s33 = sphi 0, %s35
    %s36 = sphi 0, %s33
    %s37 = sphi 0, %s36
    %s53 = sphi 0, %s37
    %s57 = sphi 0, %s57
    %s59 = sphi 0, %s57
    %s60 = sphi 0, %s59
    %s74 = sphi 0, %s60
    %s78 = sphi 0, %s78
    %s80 = sphi 0, %s78
    %s81 = sphi 0, %s80
    %s95 = sphi 0, %s81
    %s99 = sphi 0, %s99
    %s101 = sphi 0, %s99
    %s102 = sphi 0, %s101
    %s116 = sphi 0, %s102
    %s120 = sphi 0, %s120
    %s122 = sphi 0, %s120
    %s123 = sphi 0, %s122
    %s137 = sphi 0, %s123
    %s145 = sphi 0, %s147
    %s148 = sphi 0, %s145
    %s149 = sphi 0, %s148
    %s165 = sphi 0, %s149
  $region4: #{tpu_custom_call.1} parent=0 // loop_header_branch
    %14 = sbr.rel (%p12) target = $region8
  $region5: #{tpu_custom_call.1} parent=0 // loop_body
    %s16 = ssub.s32 %s11, 1
    %s17 = ssub.s32 %s11, 2
    %s24 = sadd.s32 1, %s19
    %p25 = scmp.ge.s32.totalorder %s24, 1
    %s26 = scalar_select %p25, 0, %s24
    %s27 = sadd.s32 1, %s18
    %s28 = scalar_select %p25, %s27, %s18
    %p29 = scmp.ge.s32.totalorder %s28, 2
    %s30 = scalar_select %p29, 0, %s28
    %s31 = ssub.s32 %s18, %s30
    %p32 = scmp.eq.s32.totalorder %s31, 0
    %s34 = sadd.s32 %s33, 1
    %s35 = scalar_select %p32, %s33, %s34
    %p38 = pneg %p32
    %p39 = scmp.eq.s32.totalorder %s11, 1
    %p40 = por %p38, %p39
    %p41 = scmp.ne.s32.totalorder %s33, %s36
    %p42 = scmp.eq.s32.totalorder %s11, 0
    %p43 = por %p41, %p42
    %p44 = scmp.ne.s32.totalorder %s33, %s36
    %p45 = scmp.eq.s32.totalorder %s16, 1
    %p46 = por %p44, %p45
    %p47 = scmp.ne.s32.totalorder %s36, %s37
    %p48 = scmp.eq.s32.totalorder %s16, 0
    %p49 = por %p47, %p48
    %p50 = scmp.ne.s32.totalorder %s36, %s37
    %p51 = scmp.eq.s32.totalorder %s17, 1
    %p52 = por %p50, %p51
    %p54 = scmp.ne.s32.totalorder %s37, %s53
    %p55 = scmp.eq.s32.totalorder %s17, 0
    %p56 = por %p54, %p55
    %s58 = sadd.s32 %s57, 1
    %p61 = scmp.eq.s32.totalorder %s11, 1
    %p62 = scmp.ne.s32.totalorder %s57, %s59
    %p63 = scmp.eq.s32.totalorder %s11, 0
    %p64 = por %p62, %p63
    %p65 = scmp.ne.s32.totalorder %s57, %s59
    %p66 = scmp.eq.s32.totalorder %s16, 1
    %p67 = por %p65, %p66
    %p68 = scmp.ne.s32.totalorder %s59, %s60
    %p69 = scmp.eq.s32.totalorder %s16, 0
    %p70 = por %p68, %p69
    %p71 = scmp.ne.s32.totalorder %s59, %s60
    %p72 = scmp.eq.s32.totalorder %s17, 1
    %p73 = por %p71, %p72
    %p75 = scmp.ne.s32.totalorder %s60, %s74
    %p76 = scmp.eq.s32.totalorder %s17, 0
    %p77 = por %p75, %p76
    %s79 = sadd.s32 %s78, 1
    %p82 = scmp.eq.s32.totalorder %s11, 1
    %p83 = scmp.ne.s32.totalorder %s78, %s80
    %p84 = scmp.eq.s32.totalorder %s11, 0
    %p85 = por %p83, %p84
    %p86 = scmp.ne.s32.totalorder %s78, %s80
    %p87 = scmp.eq.s32.totalorder %s16, 1
    %p88 = por %p86, %p87
    %p89 = scmp.ne.s32.totalorder %s80, %s81
    %p90 = scmp.eq.s32.totalorder %s16, 0
    %p91 = por %p89, %p90
    %p92 = scmp.ne.s32.totalorder %s80, %s81
    %p93 = scmp.eq.s32.totalorder %s17, 1
    %p94 = por %p92, %p93
    %p96 = scmp.ne.s32.totalorder %s81, %s95
    %p97 = scmp.eq.s32.totalorder %s17, 0
    %p98 = por %p96, %p97
    %s100 = sadd.s32 %s99, 1
    %p103 = scmp.eq.s32.totalorder %s11, 1
    %p104 = scmp.ne.s32.totalorder %s99, %s101
    %p105 = scmp.eq.s32.totalorder %s11, 0
    %p106 = por %p104, %p105
    %p107 = scmp.ne.s32.totalorder %s99, %s101
    %p108 = scmp.eq.s32.totalorder %s16, 1
    %p109 = por %p107, %p108
    %p110 = scmp.ne.s32.totalorder %s101, %s102
    %p111 = scmp.eq.s32.totalorder %s16, 0
    %p112 = por %p110, %p111
    %p113 = scmp.ne.s32.totalorder %s101, %s102
    %p114 = scmp.eq.s32.totalorder %s17, 1
    %p115 = por %p113, %p114
    %p117 = scmp.ne.s32.totalorder %s102, %s116
    %p118 = scmp.eq.s32.totalorder %s17, 0
    %p119 = por %p117, %p118
    %s121 = sadd.s32 %s120, 1
    %p124 = scmp.eq.s32.totalorder %s11, 1
    %p125 = scmp.ne.s32.totalorder %s120, %s122
    %p126 = scmp.eq.s32.totalorder %s11, 0
    %p127 = por %p125, %p126
    %p128 = scmp.ne.s32.totalorder %s120, %s122
    %p129 = scmp.eq.s32.totalorder %s16, 1
    %p130 = por %p128, %p129
    %p131 = scmp.ne.s32.totalorder %s122, %s123
    %p132 = scmp.eq.s32.totalorder %s16, 0
    %p133 = por %p131, %p132
    %p134 = scmp.ne.s32.totalorder %s122, %s123
    %p135 = scmp.eq.s32.totalorder %s17, 1
    %p136 = por %p134, %p135
    %p138 = scmp.ne.s32.totalorder %s123, %s137
    %p139 = scmp.eq.s32.totalorder %s17, 0
    %p140 = por %p138, %p139
    %s141 = ssub.s32 %s18, %s30
    %s142 = ssub.s32 %s19, %s26
    %s143 = sor.u32 %s141, %s142
    %p144 = scmp.eq.s32.totalorder %s143, 0
    %s146 = sadd.s32 %s145, 1
    %s147 = scalar_select %p144, %s145, %s146
    %p150 = pneg %p144
    %p151 = scmp.eq.s32.totalorder %s11, 1
    %p152 = por %p150, %p151
    %p153 = scmp.ne.s32.totalorder %s145, %s148
    %p154 = scmp.eq.s32.totalorder %s11, 0
    %p155 = por %p153, %p154
    %p156 = scmp.ne.s32.totalorder %s145, %s148
    %p157 = scmp.eq.s32.totalorder %s16, 1
    %p158 = por %p156, %p157
    %p159 = scmp.ne.s32.totalorder %s148, %s149
    %p160 = scmp.eq.s32.totalorder %s16, 0
    %p161 = por %p159, %p160
    %p162 = scmp.ne.s32.totalorder %s148, %s149
    %p163 = scmp.eq.s32.totalorder %s17, 1
    %p164 = por %p162, %p163
    %p166 = scmp.ne.s32.totalorder %s149, %s165
    %p167 = scmp.eq.s32.totalorder %s17, 0
    %p168 = por %p166, %p167
    %p169 = scmp.le.s32.totalorder 1, %s11
    %p170 = scmp.lt.s32.totalorder %s11, 3
    %p171 = pnand %p169, %p170
    %p172 = pneg %p171
    // Predicated region
    $region9: #{tpu_custom_call.1} parent=5 // pred_check
      _
    $region10: #{tpu_custom_call.1} parent=5 // pred_check_branch
      %174 = sbr.rel (%p171) target = $region12
    $region11: #{tpu_custom_call.1} parent=5 // pred_region
      %s175 = ssub.s32 %s11, 1
      // Predicated region
      $region13: #{tpu_custom_call.1} parent=11 // pred_check
        %p176 = pneg %p70
      $region14: #{tpu_custom_call.1} parent=11 // pred_check_branch
        %178 = sbr.rel (%p176) target = $region16
      $region15: #{tpu_custom_call.1} parent=11 // pred_region
        _
      $region16: #{tpu_custom_call.1} parent=11 // pred_fallthru
        _
      // Predicated region
      $region17: #{tpu_custom_call.1} parent=11 // pred_check
        %p179 = pneg %p91
      $region18: #{tpu_custom_call.1} parent=11 // pred_check_branch
        %181 = sbr.rel (%p179) target = $region20
      $region19: #{tpu_custom_call.1} parent=11 // pred_region
        _
      $region20: #{tpu_custom_call.1} parent=11 // pred_fallthru
        _
      // Predicated region
      $region21: #{tpu_custom_call.1} parent=11 // pred_check
        %p182 = pneg %p112
      $region22: #{tpu_custom_call.1} parent=11 // pred_check_branch
        %184 = sbr.rel (%p182) target = $region24
      $region23: #{tpu_custom_call.1} parent=11 // pred_region
        _
      $region24: #{tpu_custom_call.1} parent=11 // pred_fallthru
        _
      // Predicated region
      $region25: #{tpu_custom_call.1} parent=11 // pred_check
        %p185 = pneg %p133
      $region26: #{tpu_custom_call.1} parent=11 // pred_check_branch
        %187 = sbr.rel (%p185) target = $region28
      $region27: #{tpu_custom_call.1} parent=11 // pred_region
        _
      $region28: #{tpu_custom_call.1} parent=11 // pred_fallthru
        _
    $region12: #{tpu_custom_call.1} parent=5 // pred_fallthru
      _
    %p188 = scmp.lt.s32.totalorder %s11, 2
    // Predicated region
    $region29: #{tpu_custom_call.1} parent=5 // pred_check
      %p189 = pneg %p188
    $region30: #{tpu_custom_call.1} parent=5 // pred_check_branch
      %191 = sbr.rel (%p189) target = $region32
    $region31: #{tpu_custom_call.1} parent=5 // pred_region
      // Predicated region
      $region33: #{tpu_custom_call.1} parent=31 // pred_check
        %p192 = pneg %p43
      $region34: #{tpu_custom_call.1} parent=31 // pred_check_branch
        %194 = sbr.rel (%p192) target = $region36
      $region35: #{tpu_custom_call.1} parent=31 // pred_region
        %p195 = scmp.lt.s32.totalorder %s18, 1
        %s196 = scalar_select %p195, %s18, 1
        %s197 = smul.addr %s196, 8
        %s198 = smul.addr %s197, 8
        %s199 = scalar_lea.vmem %s0, %s198
      $region36: #{tpu_custom_call.1} parent=31 // pred_fallthru
        _
    $region32: #{tpu_custom_call.1} parent=5 // pred_fallthru
      _
    %p200 = scmp.le.s32.totalorder 1, %s11
    %p201 = scmp.lt.s32.totalorder %s11, 3
    %p202 = pnand %p200, %p201
    %p203 = pneg %p202
    // Predicated region
    $region37: #{tpu_custom_call.1} parent=5 // pred_check
      _
    $region38: #{tpu_custom_call.1} parent=5 // pred_check_branch
      %205 = sbr.rel (%p202) target = $region40
    $region39: #{tpu_custom_call.1} parent=5 // pred_region
      %s206 = ssub.s32 %s11, 1
      %p207 = scmp.lt.s32.totalorder %s20, 1
      %s208 = scalar_select %p207, %s20, 1
      %s209 = smul.addr %s208, 8
      %s210 = smul.addr %s209, 8
      %s211 = scalar_lea.vmem %s0, %s210
      %p212 = pneg %p49
      %p213 = pneg %p46
      %p214 = pneg %p70
      %p215 = pneg %p67
      %p216 = pneg %p91
      %p217 = pneg %p88
      %p218 = pneg %p112
      %p219 = pneg %p109
      %p220 = pneg %p133
      %p221 = pneg %p130
      %p222 = pneg %p161
      %p223 = pneg %p158
      %s224 = smul.u32 8, %s21
      %p225 = scmp.lt.s32.totalorder %s20, 1
      %s226 = scalar_select %p225, %s20, 1
      %p227 = scmp.lt.s32.totalorder %s224, 7
      %s228 = scalar_select %p227, %s224, 7
      %s229 = smul.addr %s226, 8
      %s230 = sadd.s32 %s228, %s229
      %s231 = smul.addr %s230, 8
      %s232 = scalar_lea.vmem %s5, %s231
      %p233 = scmp.lt.s32.totalorder %s20, 1
      %s234 = scalar_select %p233, %s20, 1
      %s235 = smul.addr %s234, 8
      %s236 = smul.addr %s235, 8
      %s237 = scalar_lea.vmem %s0, %s236
      %s238 = smul.u32 8, %s21
      %p239 = scmp.lt.s32.totalorder %s20, 1
      %s240 = scalar_select %p239, %s20, 1
      %p241 = scmp.lt.s32.totalorder %s238, 7
      %s242 = scalar_select %p241, %s238, 7
      %s243 = smul.addr %s240, 8
      %s244 = sadd.s32 %s242, %s243
      %s245 = smul.addr %s244, 8
      %s246 = scalar_lea.vmem %s5, %s245
      %s247 = smul.u32 8, %s21
      %p248 = scmp.eq.s32.totalorder %s21, 0
      // Predicated region
      $region41: #{tpu_custom_call.1} parent=39 // pred_check
        %p249 = pneg %p248
      $region42: #{tpu_custom_call.1} parent=39 // pred_check_branch
        %251 = sbr.rel (%p249) target = $region44
      $region43: #{tpu_custom_call.1} parent=39 // pred_region
        %v252 = vld [vmem:[%s237] sm:$0xff]
        %v253 = vld [vmem:[%s237 + $0x8] sm:$0xff]
        %v254 = vld [vmem:[%s237 + $0x10] sm:$0xff]
        %v255 = vld [vmem:[%s237 + $0x18] sm:$0xff]
        %v256 = vld [vmem:[%s237 + $0x20] sm:$0xff]
        %v257 = vld [vmem:[%s237 + $0x28] sm:$0xff]
        %v258 = vld [vmem:[%s237 + $0x30] sm:$0xff]
        %v259 = vld [vmem:[%s237 + $0x38] sm:$0xff]
        %v260 = vld [vmem:[%s2] sm:$0xff]
        %v261 = vld [vmem:[%s2 + $0x8] sm:$0xff]
        %v262 = vld [vmem:[%s2 + $0x10] sm:$0xff]
        %v263 = vld [vmem:[%s2 + $0x18] sm:$0xff]
        %vm264 = vcmask 261120
        %v266 = vsel %vm264, %v252, 0
        %v269 = vsel %vm264, %v253, 0
        %v272 = vsel %vm264, %v254, 0
        %v275 = vsel %vm264, %v255, 0
        %v278 = vsel %vm264, %v256, 0
        %v281 = vsel %vm264, %v257, 0
        %v284 = vsel %vm264, %v258, 0
        %v287 = vsel %vm264, %v259, 0
        %289 = vmatprep.subr.mxu0 0.0
        %290 = vmatpush1.msra.mxu0 0.0
        %291 = vmatprep.subr.mxu0 0.0
        %292 = vmatpush1.msra.mxu0 0.0
        %293 = vmatprep.subr.mxu0 0.0
        %294 = vmatpush1.msra.mxu0 0.0
        %295 = vmatprep.subr.mxu0 0.0
        %296 = vmatpush1.msra.mxu0 0.0
        %297 = vmatprep.subr.mxu0 0.0
        %298 = vmatpush1.msra.mxu0 0.0
        %299 = vmatprep.subr.mxu0 0.0
        %300 = vmatpush1.msra.mxu0 0.0
        %301 = vmatprep.subr.mxu0 0.0
        %302 = vmatpush1.msra.mxu0 0.0
        %303 = vmatprep.subr.mxu0 0.0
        %304 = vmatpush1.msra.mxu0 0.0
        %305 = vmatprep.subr.mxu0 0.0
        %306 = vmatpush1.msra.mxu0 0.0
        %307 = vmatprep.subr.mxu0 0.0
        %308 = vmatpush1.msra.mxu0 0.0
        %309 = vmatprep.subr.mxu0 0.0
        %310 = vmatpush1.msra.mxu0 0.0
        %311 = vmatprep.subr.mxu0 0.0
        %312 = vmatpush1.msra.mxu0 0.0
        %313 = vmatprep.subr.mxu0 0.0
        %314 = vmatpush1.msra.mxu0 %v263
        %315 = vmatprep.subr.mxu0 0.0
        %316 = vmatpush1.msra.mxu0 %v262
        %317 = vmatprep.subr.mxu0 0.0
        %318 = vmatpush1.msra.mxu0 %v261
        %319 = vmatprep.subr.mxu0 0.0
        %320 = vmatpush1.msra.mxu0 %v260
        %321 = vmatprep.subr.mxu0 0.0
        %322 = vmatpush2.msra.mxu0 0.0
        %323 = vmatprep.subr.mxu0 0.0
        %324 = vmatpush2.msra.mxu0 0.0
        %325 = vmatprep.subr.mxu0 0.0
        %326 = vmatpush2.msra.mxu0 0.0
        %327 = vmatprep.subr.mxu0 0.0
        %328 = vmatpush2.msra.mxu0 0.0
        %329 = vmatprep.subr.mxu0 0.0
        %330 = vmatpush2.msra.mxu0 0.0
        %331 = vmatprep.subr.mxu0 0.0
        %332 = vmatpush2.msra.mxu0 0.0
        %333 = vmatprep.subr.mxu0 0.0
        %334 = vmatpush2.msra.mxu0 0.0
        %335 = vmatprep.subr.mxu0 0.0
        %336 = vmatpush2.msra.mxu0 0.0
        %337 = vmatprep.subr.mxu0 0.0
        %338 = vmatpush2.msra.mxu0 0.0
        %339 = vmatprep.subr.mxu0 0.0
        %340 = vmatpush2.msra.mxu0 0.0
        %341 = vmatprep.subr.mxu0 0.0
        %342 = vmatpush2.msra.mxu0 0.0
        %343 = vmatprep.subr.mxu0 0.0
        %344 = vmatpush2.msra.mxu0 0.0
        %345 = vmatprep.subr.mxu0 0.0
        %346 = vmatpush2.msra.mxu0 0.0
        %347 = vmatprep.subr.mxu0 0.0
        %348 = vmatpush2.msra.mxu0 0.0
        %349 = vmatprep.subr.mxu0 0.0
        %350 = vmatpush2.msra.mxu0 0.0
        %351 = vmatprep.subr.mxu0 0.0
        %352 = vmatpush2.msra.mxu0 0.0
        %353 = vmatprep.mubr.f32.mxu0 0.0
        %354 = vmatmul.mubr.f32.gmra.mxu0 %v266
        %v355 = vpop.f32.mrf.mxu0
        %v356 = vadd.f32 0.0, %v355
        %v357 = vpop.f32.mrf.mxu0
        %358 = vmatprep.mubr.f32.mxu0 0.0
        %359 = vmatmul.mubr.f32.gmra.mxu0 %v269
        %v360 = vpop.f32.mrf.mxu0
        %v361 = vadd.f32 0.0, %v360
        %v362 = vpop.f32.mrf.mxu0
        %363 = vmatprep.mubr.f32.mxu0 0.0
        %364 = vmatmul.mubr.f32.gmra.mxu0 %v272
        %v365 = vpop.f32.mrf.mxu0
        %v366 = vadd.f32 0.0, %v365
        %v367 = vpop.f32.mrf.mxu0
        %368 = vmatprep.mubr.f32.mxu0 0.0
        %369 = vmatmul.mubr.f32.gmra.mxu0 %v275
        %v370 = vpop.f32.mrf.mxu0
        %v371 = vadd.f32 0.0, %v370
        %v372 = vpop.f32.mrf.mxu0
        %373 = vmatprep.mubr.f32.mxu0 0.0
        %374 = vmatmul.mubr.f32.gmra.mxu0 %v278
        %v375 = vpop.f32.mrf.mxu0
        %v376 = vadd.f32 0.0, %v375
        %v377 = vpop.f32.mrf.mxu0
        %378 = vmatprep.mubr.f32.mxu0 0.0
        %379 = vmatmul.mubr.f32.gmra.mxu0 %v281
        %v380 = vpop.f32.mrf.mxu0
        %v381 = vadd.f32 0.0, %v380
        %v382 = vpop.f32.mrf.mxu0
        %383 = vmatprep.mubr.f32.mxu0 0.0
        %384 = vmatmul.mubr.f32.gmra.mxu0 %v284
        %v385 = vpop.f32.mrf.mxu0
        %v386 = vadd.f32 0.0, %v385
        %v387 = vpop.f32.mrf.mxu0
        %388 = vmatprep.mubr.f32.mxu0 0.0
        %389 = vmatmul.mubr.f32.gmra.mxu0 %v287
        %v390 = vpop.f32.mrf.mxu0
        %v391 = vadd.f32 0.0, %v390
        %v392 = vpop.f32.mrf.mxu0
        %393 = vdwg.mxu0
        %394 = vst.msk [vmem:[#allocation2] sm:$0xff] %vm264, %v356
        %395 = vst.msk [vmem:[#allocation2 + $0x8] sm:$0xff] %vm264, %v361
        %396 = vst.msk [vmem:[#allocation2 + $0x10] sm:$0xff] %vm264, %v366
        %397 = vst.msk [vmem:[#allocation2 + $0x18] sm:$0xff] %vm264, %v371
        %398 = vst.msk [vmem:[#allocation2 + $0x20] sm:$0xff] %vm264, %v376
        %399 = vst.msk [vmem:[#allocation2 + $0x28] sm:$0xff] %vm264, %v381
        %400 = vst.msk [vmem:[#allocation2 + $0x30] sm:$0xff] %vm264, %v386
        %401 = vst.msk [vmem:[#allocation2 + $0x38] sm:$0xff] %vm264, %v391
        %v402 = vld [vmem:[%s3] sm:$0xff]
        %v403 = vld [vmem:[%s3 + $0x8] sm:$0xff]
        %v404 = vld [vmem:[%s3 + $0x10] sm:$0xff]
        %v405 = vld [vmem:[%s3 + $0x18] sm:$0xff]
        %406 = vmatprep.subr.mxu0 0.0
        %407 = vmatpush1.msra.mxu0 0.0
        %408 = vmatprep.subr.mxu0 0.0
        %409 = vmatpush1.msra.mxu0 0.0
        %410 = vmatprep.subr.mxu0 0.0
        %411 = vmatpush1.msra.mxu0 0.0
        %412 = vmatprep.subr.mxu0 0.0
        %413 = vmatpush1.msra.mxu0 0.0
        %414 = vmatprep.subr.mxu0 0.0
        %415 = vmatpush1.msra.mxu0 0.0
        %416 = vmatprep.subr.mxu0 0.0
        %417 = vmatpush1.msra.mxu0 0.0
        %418 = vmatprep.subr.mxu0 0.0
        %419 = vmatpush1.msra.mxu0 0.0
        %420 = vmatprep.subr.mxu0 0.0
        %421 = vmatpush1.msra.mxu0 0.0
        %422 = vmatprep.subr.mxu0 0.0
        %423 = vmatpush1.msra.mxu0 0.0
        %424 = vmatprep.subr.mxu0 0.0
        %425 = vmatpush1.msra.mxu0 0.0
        %426 = vmatprep.subr.mxu0 0.0
        %427 = vmatpush1.msra.mxu0 0.0
        %428 = vmatprep.subr.mxu0 0.0
        %429 = vmatpush1.msra.mxu0 0.0
        %430 = vmatprep.subr.mxu0 0.0
        %431 = vmatpush1.msra.mxu0 %v405
        %432 = vmatprep.subr.mxu0 0.0
        %433 = vmatpush1.msra.mxu0 %v404
        %434 = vmatprep.subr.mxu0 0.0
        %435 = vmatpush1.msra.mxu0 %v403
        %436 = vmatprep.subr.mxu0 0.0
        %437 = vmatpush1.msra.mxu0 %v402
        %438 = vmatprep.subr.mxu0 0.0
        %439 = vmatpush2.msra.mxu0 0.0
        %440 = vmatprep.subr.mxu0 0.0
        %441 = vmatpush2.msra.mxu0 0.0
        %442 = vmatprep.subr.mxu0 0.0
        %443 = vmatpush2.msra.mxu0 0.0
        %444 = vmatprep.subr.mxu0 0.0
        %445 = vmatpush2.msra.mxu0 0.0
        %446 = vmatprep.subr.mxu0 0.0
        %447 = vmatpush2.msra.mxu0 0.0
        %448 = vmatprep.subr.mxu0 0.0
        %449 = vmatpush2.msra.mxu0 0.0
        %450 = vmatprep.subr.mxu0 0.0
        %451 = vmatpush2.msra.mxu0 0.0
        %452 = vmatprep.subr.mxu0 0.0
        %453 = vmatpush2.msra.mxu0 0.0
        %454 = vmatprep.subr.mxu0 0.0
        %455 = vmatpush2.msra.mxu0 0.0
        %456 = vmatprep.subr.mxu0 0.0
        %457 = vmatpush2.msra.mxu0 0.0
        %458 = vmatprep.subr.mxu0 0.0
        %459 = vmatpush2.msra.mxu0 0.0
        %460 = vmatprep.subr.mxu0 0.0
        %461 = vmatpush2.msra.mxu0 0.0
        %462 = vmatprep.subr.mxu0 0.0
        %463 = vmatpush2.msra.mxu0 0.0
        %464 = vmatprep.subr.mxu0 0.0
        %465 = vmatpush2.msra.mxu0 0.0
        %466 = vmatprep.subr.mxu0 0.0
        %467 = vmatpush2.msra.mxu0 0.0
        %468 = vmatprep.subr.mxu0 0.0
        %469 = vmatpush2.msra.mxu0 0.0
        %470 = vmatprep.mubr.f32.mxu0 0.0
        %471 = vmatmul.mubr.f32.gmra.mxu0 %v266
        %v472 = vpop.f32.mrf.mxu0
        %v473 = vadd.f32 0.0, %v472
        %v474 = vpop.f32.mrf.mxu0
        %475 = vmatprep.mubr.f32.mxu0 0.0
        %476 = vmatmul.mubr.f32.gmra.mxu0 %v269
        %v477 = vpop.f32.mrf.mxu0
        %v478 = vadd.f32 0.0, %v477
        %v479 = vpop.f32.mrf.mxu0
        %480 = vmatprep.mubr.f32.mxu0 0.0
        %481 = vmatmul.mubr.f32.gmra.mxu0 %v272
        %v482 = vpop.f32.mrf.mxu0
        %v483 = vadd.f32 0.0, %v482
        %v484 = vpop.f32.mrf.mxu0
        %485 = vmatprep.mubr.f32.mxu0 0.0
        %486 = vmatmul.mubr.f32.gmra.mxu0 %v275
        %v487 = vpop.f32.mrf.mxu0
        %v488 = vadd.f32 0.0, %v487
        %v489 = vpop.f32.mrf.mxu0
        %490 = vmatprep.mubr.f32.mxu0 0.0
        %491 = vmatmul.mubr.f32.gmra.mxu0 %v278
        %v492 = vpop.f32.mrf.mxu0
        %v493 = vadd.f32 0.0, %v492
        %v494 = vpop.f32.mrf.mxu0
        %495 = vmatprep.mubr.f32.mxu0 0.0
        %496 = vmatmul.mubr.f32.gmra.mxu0 %v281
        %v497 = vpop.f32.mrf.mxu0
        %v498 = vadd.f32 0.0, %v497
        %v499 = vpop.f32.mrf.mxu0
        %500 = vmatprep.mubr.f32.mxu0 0.0
        %501 = vmatmul.mubr.f32.gmra.mxu0 %v284
        %v502 = vpop.f32.mrf.mxu0
        %v503 = vadd.f32 0.0, %v502
        %v504 = vpop.f32.mrf.mxu0
        %505 = vmatprep.mubr.f32.mxu0 0.0
        %506 = vmatmul.mubr.f32.gmra.mxu0 %v287
        %v507 = vpop.f32.mrf.mxu0
        %v508 = vadd.f32 0.0, %v507
        %v509 = vpop.f32.mrf.mxu0
        %510 = vdwg.mxu0
        %511 = vst.msk [vmem:[#allocation3] sm:$0xff] %vm264, %v473
        %512 = vst.msk [vmem:[#allocation3 + $0x8] sm:$0xff] %vm264, %v478
        %513 = vst.msk [vmem:[#allocation3 + $0x10] sm:$0xff] %vm264, %v483
        %514 = vst.msk [vmem:[#allocation3 + $0x18] sm:$0xff] %vm264, %v488
        %515 = vst.msk [vmem:[#allocation3 + $0x20] sm:$0xff] %vm264, %v493
        %516 = vst.msk [vmem:[#allocation3 + $0x28] sm:$0xff] %vm264, %v498
        %517 = vst.msk [vmem:[#allocation3 + $0x30] sm:$0xff] %vm264, %v503
        %518 = vst.msk [vmem:[#allocation3 + $0x38] sm:$0xff] %vm264, %v508
      $region44: #{tpu_custom_call.1} parent=39 // pred_fallthru
        _
      %s519 = smul.u32 %s21, 64
      %s520 = scalar_lea.vmem %s237, %s519
      %v521 = vld [vmem:[%s520] sm:$0xff]
      %v522 = vld [vmem:[%s520 + $0x8] sm:$0xff]
      %v523 = vld [vmem:[%s520 + $0x10] sm:$0xff]
      %v524 = vld [vmem:[%s520 + $0x18] sm:$0xff]
      %v525 = vld [vmem:[%s520 + $0x20] sm:$0xff]
      %v526 = vld [vmem:[%s520 + $0x28] sm:$0xff]
      %v527 = vld [vmem:[%s520 + $0x30] sm:$0xff]
      %v528 = vld [vmem:[%s520 + $0x38] sm:$0xff]
      %v529 = vld [vmem:[%s1] sm:$0xff]
      %v530 = vld [vmem:[%s1 + $0x8] sm:$0xff]
      %v531 = vld [vmem:[%s1 + $0x10] sm:$0xff]
      %v532 = vld [vmem:[%s1 + $0x18] sm:$0xff]
      %vm533 = vcmask 261120
      %v535 = vsel %vm533, %v521, 0
      %v538 = vsel %vm533, %v522, 0
      %v541 = vsel %vm533, %v523, 0
      %v544 = vsel %vm533, %v524, 0
      %v547 = vsel %vm533, %v525, 0
      %v550 = vsel %vm533, %v526, 0
      %v553 = vsel %vm533, %v527, 0
      %v556 = vsel %vm533, %v528, 0
      %558 = vmatprep.subr.mxu0 0.0
      %559 = vmatpush1.msra.mxu0 0.0
      %560 = vmatprep.subr.mxu0 0.0
      %561 = vmatpush1.msra.mxu0 0.0
      %562 = vmatprep.subr.mxu0 0.0
      %563 = vmatpush1.msra.mxu0 0.0
      %564 = vmatprep.subr.mxu0 0.0
      %565 = vmatpush1.msra.mxu0 0.0
      %566 = vmatprep.subr.mxu0 0.0
      %567 = vmatpush1.msra.mxu0 0.0
      %568 = vmatprep.subr.mxu0 0.0
      %569 = vmatpush1.msra.mxu0 0.0
      %570 = vmatprep.subr.mxu0 0.0
      %571 = vmatpush1.msra.mxu0 0.0
      %572 = vmatprep.subr.mxu0 0.0
      %573 = vmatpush1.msra.mxu0 0.0
      %574 = vmatprep.subr.mxu0 0.0
      %575 = vmatpush1.msra.mxu0 0.0
      %576 = vmatprep.subr.mxu0 0.0
      %577 = vmatpush1.msra.mxu0 0.0
      %578 = vmatprep.subr.mxu0 0.0
      %579 = vmatpush1.msra.mxu0 0.0
      %580 = vmatprep.subr.mxu0 0.0
      %581 = vmatpush1.msra.mxu0 0.0
      %582 = vmatprep.subr.mxu0 0.0
      %583 = vmatpush1.msra.mxu0 %v532
      %584 = vmatprep.subr.mxu0 0.0
      %585 = vmatpush1.msra.mxu0 %v531
      %586 = vmatprep.subr.mxu0 0.0
      %587 = vmatpush1.msra.mxu0 %v530
      %588 = vmatprep.subr.mxu0 0.0
      %589 = vmatpush1.msra.mxu0 %v529
      %590 = vmatprep.subr.mxu0 0.0
      %591 = vmatpush2.msra.mxu0 0.0
      %592 = vmatprep.subr.mxu0 0.0
      %593 = vmatpush2.msra.mxu0 0.0
      %594 = vmatprep.subr.mxu0 0.0
      %595 = vmatpush2.msra.mxu0 0.0
      %596 = vmatprep.subr.mxu0 0.0
      %597 = vmatpush2.msra.mxu0 0.0
      %598 = vmatprep.subr.mxu0 0.0
      %599 = vmatpush2.msra.mxu0 0.0
      %600 = vmatprep.subr.mxu0 0.0
      %601 = vmatpush2.msra.mxu0 0.0
      %602 = vmatprep.subr.mxu0 0.0
      %603 = vmatpush2.msra.mxu0 0.0
      %604 = vmatprep.subr.mxu0 0.0
      %605 = vmatpush2.msra.mxu0 0.0
      %606 = vmatprep.subr.mxu0 0.0
      %607 = vmatpush2.msra.mxu0 0.0
      %608 = vmatprep.subr.mxu0 0.0
      %609 = vmatpush2.msra.mxu0 0.0
      %610 = vmatprep.subr.mxu0 0.0
      %611 = vmatpush2.msra.mxu0 0.0
      %612 = vmatprep.subr.mxu0 0.0
      %613 = vmatpush2.msra.mxu0 0.0
      %614 = vmatprep.subr.mxu0 0.0
      %615 = vmatpush2.msra.mxu0 0.0
      %616 = vmatprep.subr.mxu0 0.0
      %617 = vmatpush2.msra.mxu0 0.0
      %618 = vmatprep.subr.mxu0 0.0
      %619 = vmatpush2.msra.mxu0 0.0
      %620 = vmatprep.subr.mxu0 0.0
      %621 = vmatpush2.msra.mxu0 0.0
      %622 = vmatprep.mubr.f32.mxu0 0.0
      %623 = vmatmul.mubr.f32.gmra.mxu0 %v535
      %v624 = vpop.f32.mrf.mxu0
      %v625 = vadd.f32 0.0, %v624
      %v626 = vpop.f32.mrf.mxu0
      %627 = vmatprep.mubr.f32.mxu0 0.0
      %628 = vmatmul.mubr.f32.gmra.mxu0 %v538
      %v629 = vpop.f32.mrf.mxu0
      %v630 = vadd.f32 0.0, %v629
      %v631 = vpop.f32.mrf.mxu0
      %632 = vmatprep.mubr.f32.mxu0 0.0
      %633 = vmatmul.mubr.f32.gmra.mxu0 %v541
      %v634 = vpop.f32.mrf.mxu0
      %v635 = vadd.f32 0.0, %v634
      %v636 = vpop.f32.mrf.mxu0
      %637 = vmatprep.mubr.f32.mxu0 0.0
      %638 = vmatmul.mubr.f32.gmra.mxu0 %v544
      %v639 = vpop.f32.mrf.mxu0
      %v640 = vadd.f32 0.0, %v639
      %v641 = vpop.f32.mrf.mxu0
      %642 = vmatprep.mubr.f32.mxu0 0.0
      %643 = vmatmul.mubr.f32.gmra.mxu0 %v547
      %v644 = vpop.f32.mrf.mxu0
      %v645 = vadd.f32 0.0, %v644
      %v646 = vpop.f32.mrf.mxu0
      %647 = vmatprep.mubr.f32.mxu0 0.0
      %648 = vmatmul.mubr.f32.gmra.mxu0 %v550
      %v649 = vpop.f32.mrf.mxu0
      %v650 = vadd.f32 0.0, %v649
      %v651 = vpop.f32.mrf.mxu0
      %652 = vmatprep.mubr.f32.mxu0 0.0
      %653 = vmatmul.mubr.f32.gmra.mxu0 %v553
      %v654 = vpop.f32.mrf.mxu0
      %v655 = vadd.f32 0.0, %v654
      %v656 = vpop.f32.mrf.mxu0
      %657 = vmatprep.mubr.f32.mxu0 0.0
      %658 = vmatmul.mubr.f32.gmra.mxu0 %v556
      %v659 = vpop.f32.mrf.mxu0
      %v660 = vadd.f32 0.0, %v659
      %v661 = vpop.f32.mrf.mxu0
      %662 = vdwg.mxu0
      %v663 = vmul.f32 %v625, 0.35355338
      %v664 = vmul.f32 %v630, 0.35355338
      %v665 = vmul.f32 %v635, 0.35355338
      %v666 = vmul.f32 %v640, 0.35355338
      %v667 = vmul.f32 %v645, 0.35355338
      %v668 = vmul.f32 %v650, 0.35355338
      %v669 = vmul.f32 %v655, 0.35355338
      %v670 = vmul.f32 %v660, 0.35355338
      %v671 = vld [vmem:[#allocation2] sm:$0xff]
      %v672 = vld [vmem:[#allocation2 + $0x8] sm:$0xff]
      %v673 = vld [vmem:[#allocation2 + $0x10] sm:$0xff]
      %v674 = vld [vmem:[#allocation2 + $0x18] sm:$0xff]
      %v675 = vld [vmem:[#allocation2 + $0x20] sm:$0xff]
      %v676 = vld [vmem:[#allocation2 + $0x28] sm:$0xff]
      %v677 = vld [vmem:[#allocation2 + $0x30] sm:$0xff]
      %v678 = vld [vmem:[#allocation2 + $0x38] sm:$0xff]
      %vm679 = vcmask 64512
      %v681 = vsel %vm679, %v663, 0
      %v684 = vsel %vm679, %v664, 0
      %v687 = vsel %vm679, %v665, 0
      %v690 = vsel %vm679, %v666, 0
      %v693 = vsel %vm679, %v667, 0
      %v696 = vsel %vm679, %v668, 0
      %v699 = vsel %vm679, %v669, 0
      %v702 = vsel %vm679, %v670, 0
      %v705 = vsel %vm679, %v671, 0
      %v708 = vsel %vm679, %v672, 0
      %v711 = vsel %vm679, %v673, 0
      %v714 = vsel %vm679, %v674, 0
      %v717 = vsel %vm679, %v675, 0
      %v720 = vsel %vm679, %v676, 0
      %v723 = vsel %vm679, %v677, 0
      %v726 = vsel %vm679, %v678, 0
      %728 = vmatprep.subr.mxu0 0.0
      %729 = vmatpush1.xpose.msra.mxu0 0.0
      %730 = vmatprep.subr.mxu0 0.0
      %731 = vmatpush1.xpose.msra.mxu0 0.0
      %732 = vmatprep.subr.mxu0 0.0
      %733 = vmatpush1.xpose.msra.mxu0 0.0
      %734 = vmatprep.subr.mxu0 0.0
      %735 = vmatpush1.xpose.msra.mxu0 0.0
      %736 = vmatprep.subr.mxu0 0.0
      %737 = vmatpush1.xpose.msra.mxu0 0.0
      %738 = vmatprep.subr.mxu0 0.0
      %739 = vmatpush1.xpose.msra.mxu0 0.0
      %740 = vmatprep.subr.mxu0 0.0
      %741 = vmatpush1.xpose.msra.mxu0 0.0
      %742 = vmatprep.subr.mxu0 0.0
      %743 = vmatpush1.xpose.msra.mxu0 0.0
      %744 = vmatprep.subr.mxu0 0.0
      %745 = vmatpush1.xpose.msra.mxu0 %v726
      %746 = vmatprep.subr.mxu0 0.0
      %747 = vmatpush1.xpose.msra.mxu0 %v723
      %748 = vmatprep.subr.mxu0 0.0
      %749 = vmatpush1.xpose.msra.mxu0 %v720
      %750 = vmatprep.subr.mxu0 0.0
      %751 = vmatpush1.xpose.msra.mxu0 %v717
      %752 = vmatprep.subr.mxu0 0.0
      %753 = vmatpush1.xpose.msra.mxu0 %v714
      %754 = vmatprep.subr.mxu0 0.0
      %755 = vmatpush1.xpose.msra.mxu0 %v711
      %756 = vmatprep.subr.mxu0 0.0
      %757 = vmatpush1.xpose.msra.mxu0 %v708
      %758 = vmatprep.subr.mxu0 0.0
      %759 = vmatpush1.xpose.msra.mxu0 %v705
      %760 = vmatprep.subr.mxu0 0.0
      %761 = vmatpush2.xpose.msra.mxu0 0.0
      %762 = vmatprep.subr.mxu0 0.0
      %763 = vmatpush2.xpose.msra.mxu0 0.0
      %764 = vmatprep.subr.mxu0 0.0
      %765 = vmatpush2.xpose.msra.mxu0 0.0
      %766 = vmatprep.subr.mxu0 0.0
      %767 = vmatpush2.xpose.msra.mxu0 0.0
      %768 = vmatprep.subr.mxu0 0.0
      %769 = vmatpush2.xpose.msra.mxu0 0.0
      %770 = vmatprep.subr.mxu0 0.0
      %771 = vmatpush2.xpose.msra.mxu0 0.0
      %772 = vmatprep.subr.mxu0 0.0
      %773 = vmatpush2.xpose.msra.mxu0 0.0
      %774 = vmatprep.subr.mxu0 0.0
      %775 = vmatpush2.xpose.msra.mxu0 0.0
      %776 = vmatprep.subr.mxu0 0.0
      %777 = vmatpush2.xpose.msra.mxu0 0.0
      %778 = vmatprep.subr.mxu0 0.0
      %779 = vmatpush2.xpose.msra.mxu0 0.0
      %780 = vmatprep.subr.mxu0 0.0
      %781 = vmatpush2.xpose.msra.mxu0 0.0
      %782 = vmatprep.subr.mxu0 0.0
      %783 = vmatpush2.xpose.msra.mxu0 0.0
      %784 = vmatprep.subr.mxu0 0.0
      %785 = vmatpush2.xpose.msra.mxu0 0.0
      %786 = vmatprep.subr.mxu0 0.0
      %787 = vmatpush2.xpose.msra.mxu0 0.0
      %788 = vmatprep.subr.mxu0 0.0
      %789 = vmatpush2.xpose.msra.mxu0 0.0
      %790 = vmatprep.subr.mxu0 0.0
      %791 = vmatpush2.xpose.msra.mxu0 0.0
      %792 = vmatprep.mubr.f32.mxu0 0.0
      %793 = vmatmul.mubr.f32.gmra.mxu0 %v681
      %v794 = vpop.f32.mrf.mxu0
      %v795 = vadd.f32 0.0, %v794
      %v796 = vpop.f32.mrf.mxu0
      %797 = vmatprep.mubr.f32.mxu0 0.0
      %798 = vmatmul.mubr.f32.gmra.mxu0 %v684
      %v799 = vpop.f32.mrf.mxu0
      %v800 = vadd.f32 0.0, %v799
      %v801 = vpop.f32.mrf.mxu0
      %802 = vmatprep.mubr.f32.mxu0 0.0
      %803 = vmatmul.mubr.f32.gmra.mxu0 %v687
      %v804 = vpop.f32.mrf.mxu0
      %v805 = vadd.f32 0.0, %v804
      %v806 = vpop.f32.mrf.mxu0
      %807 = vmatprep.mubr.f32.mxu0 0.0
      %808 = vmatmul.mubr.f32.gmra.mxu0 %v690
      %v809 = vpop.f32.mrf.mxu0
      %v810 = vadd.f32 0.0, %v809
      %v811 = vpop.f32.mrf.mxu0
      %812 = vmatprep.mubr.f32.mxu0 0.0
      %813 = vmatmul.mubr.f32.gmra.mxu0 %v693
      %v814 = vpop.f32.mrf.mxu0
      %v815 = vadd.f32 0.0, %v814
      %v816 = vpop.f32.mrf.mxu0
      %817 = vmatprep.mubr.f32.mxu0 0.0
      %818 = vmatmul.mubr.f32.gmra.mxu0 %v696
      %v819 = vpop.f32.mrf.mxu0
      %v820 = vadd.f32 0.0, %v819
      %v821 = vpop.f32.mrf.mxu0
      %822 = vmatprep.mubr.f32.mxu0 0.0
      %823 = vmatmul.mubr.f32.gmra.mxu0 %v699
      %v824 = vpop.f32.mrf.mxu0
      %v825 = vadd.f32 0.0, %v824
      %v826 = vpop.f32.mrf.mxu0
      %827 = vmatprep.mubr.f32.mxu0 0.0
      %828 = vmatmul.mubr.f32.gmra.mxu0 %v702
      %v829 = vpop.f32.mrf.mxu0
      %v830 = vadd.f32 0.0, %v829
      %v831 = vpop.f32.mrf.mxu0
      %832 = vdwg.mxu0
      %vm833 = vcmask 523264
      %v834 = vsel %vm833, %v795, -inf
      %835 = vmax.xlane.f32.xlu0 %v834
      %v836 = vpop.xlane.xlu0 %835
      %v837 = vsel %vm833, %v800, -inf
      %838 = vmax.xlane.f32.xlu0 %v837
      %v839 = vpop.xlane.xlu0 %838
      %v840 = vsel %vm833, %v805, -inf
      %841 = vmax.xlane.f32.xlu0 %v840
      %v842 = vpop.xlane.xlu0 %841
      %v843 = vsel %vm833, %v810, -inf
      %844 = vmax.xlane.f32.xlu0 %v843
      %v845 = vpop.xlane.xlu0 %844
      %v846 = vsel %vm833, %v815, -inf
      %847 = vmax.xlane.f32.xlu0 %v846
      %v848 = vpop.xlane.xlu0 %847
      %v849 = vsel %vm833, %v820, -inf
      %850 = vmax.xlane.f32.xlu0 %v849
      %v851 = vpop.xlane.xlu0 %850
      %v852 = vsel %vm833, %v825, -inf
      %853 = vmax.xlane.f32.xlu0 %v852
      %v854 = vpop.xlane.xlu0 %853
      %v855 = vsel %vm833, %v830, -inf
      %856 = vmax.xlane.f32.xlu0 %v855
      %v857 = vpop.xlane.xlu0 %856
      %v858 = vsub.f32 %v795, %v836
      %v859 = vsub.f32 %v800, %v839
      %v860 = vsub.f32 %v805, %v842
      %v861 = vsub.f32 %v810, %v845
      %v862 = vsub.f32 %v815, %v848
      %v863 = vsub.f32 %v820, %v851
      %v864 = vsub.f32 %v825, %v854
      %v865 = vsub.f32 %v830, %v857
      %v866 = vmul.f32 %v858, 1.442695
      %v867 = vpow.pop %v866
      %v868 = vmul.f32 %v859, 1.442695
      %v869 = vpow.pop %v868
      %v870 = vmul.f32 %v860, 1.442695
      %v871 = vpow.pop %v870
      %v872 = vmul.f32 %v861, 1.442695
      %v873 = vpow.pop %v872
      %v874 = vmul.f32 %v862, 1.442695
      %v875 = vpow.pop %v874
      %v876 = vmul.f32 %v863, 1.442695
      %v877 = vpow.pop %v876
      %v878 = vmul.f32 %v864, 1.442695
      %v879 = vpow.pop %v878
      %v880 = vmul.f32 %v865, 1.442695
      %v881 = vpow.pop %v880
      %v882 = vsel %vm833, %v867, 0.0
      %883 = vadd.xlane.f32.xlu0 %v882
      %v884 = vpop.xlane.xlu0 %883
      %v885 = vsel %vm833, %v869, 0.0
      %886 = vadd.xlane.f32.xlu0 %v885
      %v887 = vpop.xlane.xlu0 %886
      %v888 = vsel %vm833, %v871, 0.0
      %889 = vadd.xlane.f32.xlu0 %v888
      %v890 = vpop.xlane.xlu0 %889
      %v891 = vsel %vm833, %v873, 0.0
      %892 = vadd.xlane.f32.xlu0 %v891
      %v893 = vpop.xlane.xlu0 %892
      %v894 = vsel %vm833, %v875, 0.0
      %895 = vadd.xlane.f32.xlu0 %v894
      %v896 = vpop.xlane.xlu0 %895
      %v897 = vsel %vm833, %v877, 0.0
      %898 = vadd.xlane.f32.xlu0 %v897
      %v899 = vpop.xlane.xlu0 %898
      %v900 = vsel %vm833, %v879, 0.0
      %901 = vadd.xlane.f32.xlu0 %v900
      %v902 = vpop.xlane.xlu0 %901
      %v903 = vsel %vm833, %v881, 0.0
      %904 = vadd.xlane.f32.xlu0 %v903
      %v905 = vpop.xlane.xlu0 %904
      %v906 = vld [vmem:[#allocation3] sm:$0xff]
      %v907 = vld [vmem:[#allocation3 + $0x8] sm:$0xff]
      %v908 = vld [vmem:[#allocation3 + $0x10] sm:$0xff]
      %v909 = vld [vmem:[#allocation3 + $0x18] sm:$0xff]
      %v910 = vld [vmem:[#allocation3 + $0x20] sm:$0xff]
      %v911 = vld [vmem:[#allocation3 + $0x28] sm:$0xff]
      %v912 = vld [vmem:[#allocation3 + $0x30] sm:$0xff]
      %v913 = vld [vmem:[#allocation3 + $0x38] sm:$0xff]
      %v915 = vsel %vm833, %v867, 0
      %v918 = vsel %vm833, %v869, 0
      %v921 = vsel %vm833, %v871, 0
      %v924 = vsel %vm833, %v873, 0
      %v927 = vsel %vm833, %v875, 0
      %v930 = vsel %vm833, %v877, 0
      %v933 = vsel %vm833, %v879, 0
      %v936 = vsel %vm833, %v881, 0
      %938 = vmatprep.subr.mxu0 0.0
      %939 = vmatpush1.msra.mxu0 0.0
      %940 = vmatprep.subr.mxu0 0.0
      %941 = vmatpush1.msra.mxu0 0.0
      %942 = vmatprep.subr.mxu0 0.0
      %943 = vmatpush1.msra.mxu0 0.0
      %944 = vmatprep.subr.mxu0 0.0
      %945 = vmatpush1.msra.mxu0 0.0
      %946 = vmatprep.subr.mxu0 0.0
      %947 = vmatpush1.msra.mxu0 0.0
      %948 = vmatprep.subr.mxu0 0.0
      %949 = vmatpush1.msra.mxu0 0.0
      %950 = vmatprep.subr.mxu0 0.0
      %951 = vmatpush1.msra.mxu0 0.0
      %952 = vmatprep.subr.mxu0 0.0
      %953 = vmatpush1.msra.mxu0 0.0
      %954 = vmatprep.subr.mxu0 0.0
      %955 = vmatpush1.msra.mxu0 %v913
      %956 = vmatprep.subr.mxu0 0.0
      %957 = vmatpush1.msra.mxu0 %v912
      %958 = vmatprep.subr.mxu0 0.0
      %959 = vmatpush1.msra.mxu0 %v911
      %960 = vmatprep.subr.mxu0 0.0
      %961 = vmatpush1.msra.mxu0 %v910
      %962 = vmatprep.subr.mxu0 0.0
      %963 = vmatpush1.msra.mxu0 %v909
      %964 = vmatprep.subr.mxu0 0.0
      %965 = vmatpush1.msra.mxu0 %v908
      %966 = vmatprep.subr.mxu0 0.0
      %967 = vmatpush1.msra.mxu0 %v907
      %968 = vmatprep.subr.mxu0 0.0
      %969 = vmatpush1.msra.mxu0 %v906
      %970 = vmatprep.subr.mxu0 0.0
      %971 = vmatpush2.msra.mxu0 0.0
      %972 = vmatprep.subr.mxu0 0.0
      %973 = vmatpush2.msra.mxu0 0.0
      %974 = vmatprep.subr.mxu0 0.0
      %975 = vmatpush2.msra.mxu0 0.0
      %976 = vmatprep.subr.mxu0 0.0
      %977 = vmatpush2.msra.mxu0 0.0
      %978 = vmatprep.subr.mxu0 0.0
      %979 = vmatpush2.msra.mxu0 0.0
      %980 = vmatprep.subr.mxu0 0.0
      %981 = vmatpush2.msra.mxu0 0.0
      %982 = vmatprep.subr.mxu0 0.0
      %983 = vmatpush2.msra.mxu0 0.0
      %984 = vmatprep.subr.mxu0 0.0
      %985 = vmatpush2.msra.mxu0 0.0
      %986 = vmatprep.subr.mxu0 0.0
      %987 = vmatpush2.msra.mxu0 0.0
      %988 = vmatprep.subr.mxu0 0.0
      %989 = vmatpush2.msra.mxu0 0.0
      %990 = vmatprep.subr.mxu0 0.0
      %991 = vmatpush2.msra.mxu0 0.0
      %992 = vmatprep.subr.mxu0 0.0
      %993 = vmatpush2.msra.mxu0 0.0
      %994 = vmatprep.subr.mxu0 0.0
      %995 = vmatpush2.msra.mxu0 0.0
      %996 = vmatprep.subr.mxu0 0.0
      %997 = vmatpush2.msra.mxu0 0.0
      %998 = vmatprep.subr.mxu0 0.0
      %999 = vmatpush2.msra.mxu0 0.0
      %1000 = vmatprep.subr.mxu0 0.0
      %1001 = vmatpush2.msra.mxu0 0.0
      %1002 = vmatprep.mubr.f32.mxu0 0.0
      %1003 = vmatmul.mubr.f32.gmra.mxu0 %v915
      %v1004 = vpop.f32.mrf.mxu0
      %v1005 = vadd.f32 0.0, %v1004
      %v1006 = vpop.f32.mrf.mxu0
      %1007 = vmatprep.mubr.f32.mxu0 0.0
      %1008 = vmatmul.mubr.f32.gmra.mxu0 %v918
      %v1009 = vpop.f32.mrf.mxu0
      %v1010 = vadd.f32 0.0, %v1009
      %v1011 = vpop.f32.mrf.mxu0
      %1012 = vmatprep.mubr.f32.mxu0 0.0
      %1013 = vmatmul.mubr.f32.gmra.mxu0 %v921
      %v1014 = vpop.f32.mrf.mxu0
      %v1015 = vadd.f32 0.0, %v1014
      %v1016 = vpop.f32.mrf.mxu0
      %1017 = vmatprep.mubr.f32.mxu0 0.0
      %1018 = vmatmul.mubr.f32.gmra.mxu0 %v924
      %v1019 = vpop.f32.mrf.mxu0
      %v1020 = vadd.f32 0.0, %v1019
      %v1021 = vpop.f32.mrf.mxu0
      %1022 = vmatprep.mubr.f32.mxu0 0.0
      %1023 = vmatmul.mubr.f32.gmra.mxu0 %v927
      %v1024 = vpop.f32.mrf.mxu0
      %v1025 = vadd.f32 0.0, %v1024
      %v1026 = vpop.f32.mrf.mxu0
      %1027 = vmatprep.mubr.f32.mxu0 0.0
      %1028 = vmatmul.mubr.f32.gmra.mxu0 %v930
      %v1029 = vpop.f32.mrf.mxu0
      %v1030 = vadd.f32 0.0, %v1029
      %v1031 = vpop.f32.mrf.mxu0
      %1032 = vmatprep.mubr.f32.mxu0 0.0
      %1033 = vmatmul.mubr.f32.gmra.mxu0 %v933
      %v1034 = vpop.f32.mrf.mxu0
      %v1035 = vadd.f32 0.0, %v1034
      %v1036 = vpop.f32.mrf.mxu0
      %1037 = vmatprep.mubr.f32.mxu0 0.0
      %1038 = vmatmul.mubr.f32.gmra.mxu0 %v936
      %v1039 = vpop.f32.mrf.mxu0
      %v1040 = vadd.f32 0.0, %v1039
      %v1041 = vpop.f32.mrf.mxu0
      %1042 = vdwg.mxu0
      %v1043 = vrcp.pop %v884
      %v1044 = vrcp.pop %v887
      %v1045 = vrcp.pop %v890
      %v1046 = vrcp.pop %v893
      %v1047 = vrcp.pop %v896
      %v1048 = vrcp.pop %v899
      %v1049 = vrcp.pop %v902
      %v1050 = vrcp.pop %v905
      %v1051 = vmul.f32 %v1005, %v1043
      %v1052 = vmul.f32 %v1010, %v1044
      %v1053 = vmul.f32 %v1015, %v1045
      %v1054 = vmul.f32 %v1020, %v1046
      %v1055 = vmul.f32 %v1025, %v1047
      %v1056 = vmul.f32 %v1030, %v1048
      %v1057 = vmul.f32 %v1035, %v1049
      %v1058 = vmul.f32 %v1040, %v1050
      %v1059 = vld [vmem:[%s4] sm:$0xff]
      %1060 = vrot.lane.b32.xlu0 %v663, 120
      %v1061 = vpop.permute.xlu0 %1060
      %1062 = vrot.lane.b32.xlu0 %v664, 120
      %v1063 = vpop.permute.xlu0 %1062
      %1064 = vrot.lane.b32.xlu0 %v665, 120
      %v1065 = vpop.permute.xlu0 %1064
      %1066 = vrot.lane.b32.xlu0 %v666, 120
      %v1067 = vpop.permute.xlu0 %1066
      %1068 = vrot.lane.b32.xlu0 %v667, 120
      %v1069 = vpop.permute.xlu0 %1068
      %1070 = vrot.lane.b32.xlu0 %v668, 120
      %v1071 = vpop.permute.xlu0 %1070
      %1072 = vrot.lane.b32.xlu0 %v669, 120
      %v1073 = vpop.permute.xlu0 %1072
      %1074 = vrot.lane.b32.xlu0 %v670, 120
      %v1075 = vpop.permute.xlu0 %1074
      %1076 = vrot.lane.b32.xlu0 %v671, 120
      %v1077 = vpop.permute.xlu0 %1076
      %1078 = vrot.lane.b32.xlu0 %v672, 120
      %v1079 = vpop.permute.xlu0 %1078
      %1080 = vrot.lane.b32.xlu0 %v673, 120
      %v1081 = vpop.permute.xlu0 %1080
      %1082 = vrot.lane.b32.xlu0 %v674, 120
      %v1083 = vpop.permute.xlu0 %1082
      %1084 = vrot.lane.b32.xlu0 %v675, 120
      %v1085 = vpop.permute.xlu0 %1084
      %1086 = vrot.lane.b32.xlu0 %v676, 120
      %v1087 = vpop.permute.xlu0 %1086
      %1088 = vrot.lane.b32.xlu0 %v677, 120
      %v1089 = vpop.permute.xlu0 %1088
      %1090 = vrot.lane.b32.xlu0 %v678, 120
      %v1091 = vpop.permute.xlu0 %1090
      %v1092 = vsel %vm679, %v1061, 0
      %v1094 = vsel %vm679, %v1063, 0
      %v1096 = vsel %vm679, %v1065, 0
      %v1098 = vsel %vm679, %v1067, 0
      %v1100 = vsel %vm679, %v1069, 0
      %v1102 = vsel %vm679, %v1071, 0
      %v1104 = vsel %vm679, %v1073, 0
      %v1106 = vsel %vm679, %v1075, 0
      %v1108 = vsel %vm679, %v1077, 0
      %v1110 = vsel %vm679, %v1079, 0
      %v1112 = vsel %vm679, %v1081, 0
      %v1114 = vsel %vm679, %v1083, 0
      %v1116 = vsel %vm679, %v1085, 0
      %v1118 = vsel %vm679, %v1087, 0
      %v1120 = vsel %vm679, %v1089, 0
      %v1122 = vsel %vm679, %v1091, 0
      %1124 = vmatprep.subr.mxu0 0.0
      %1125 = vmatpush1.xpose.msra.mxu0 0.0
      %1126 = vmatprep.subr.mxu0 0.0
      %1127 = vmatpush1.xpose.msra.mxu0 0.0
      %1128 = vmatprep.subr.mxu0 0.0
      %1129 = vmatpush1.xpose.msra.mxu0 0.0
      %1130 = vmatprep.subr.mxu0 0.0
      %1131 = vmatpush1.xpose.msra.mxu0 0.0
      %1132 = vmatprep.subr.mxu0 0.0
      %1133 = vmatpush1.xpose.msra.mxu0 0.0
      %1134 = vmatprep.subr.mxu0 0.0
      %1135 = vmatpush1.xpose.msra.mxu0 0.0
      %1136 = vmatprep.subr.mxu0 0.0
      %1137 = vmatpush1.xpose.msra.mxu0 0.0
      %1138 = vmatprep.subr.mxu0 0.0
      %1139 = vmatpush1.xpose.msra.mxu0 0.0
      %1140 = vmatprep.subr.mxu0 0.0
      %1141 = vmatpush1.xpose.msra.mxu0 %v1122
      %1142 = vmatprep.subr.mxu0 0.0
      %1143 = vmatpush1.xpose.msra.mxu0 %v1120
      %1144 = vmatprep.subr.mxu0 0.0
      %1145 = vmatpush1.xpose.msra.mxu0 %v1118
      %1146 = vmatprep.subr.mxu0 0.0
      %1147 = vmatpush1.xpose.msra.mxu0 %v1116
      %1148 = vmatprep.subr.mxu0 0.0
      %1149 = vmatpush1.xpose.msra.mxu0 %v1114
      %1150 = vmatprep.subr.mxu0 0.0
      %1151 = vmatpush1.xpose.msra.mxu0 %v1112
      %1152 = vmatprep.subr.mxu0 0.0
      %1153 = vmatpush1.xpose.msra.mxu0 %v1110
      %1154 = vmatprep.subr.mxu0 0.0
      %1155 = vmatpush1.xpose.msra.mxu0 %v1108
      %1156 = vmatprep.subr.mxu0 0.0
      %1157 = vmatpush2.xpose.msra.mxu0 0.0
      %1158 = vmatprep.subr.mxu0 0.0
      %1159 = vmatpush2.xpose.msra.mxu0 0.0
      %1160 = vmatprep.subr.mxu0 0.0
      %1161 = vmatpush2.xpose.msra.mxu0 0.0
      %1162 = vmatprep.subr.mxu0 0.0
      %1163 = vmatpush2.xpose.msra.mxu0 0.0
      %1164 = vmatprep.subr.mxu0 0.0
      %1165 = vmatpush2.xpose.msra.mxu0 0.0
      %1166 = vmatprep.subr.mxu0 0.0
      %1167 = vmatpush2.xpose.msra.mxu0 0.0
      %1168 = vmatprep.subr.mxu0 0.0
      %1169 = vmatpush2.xpose.msra.mxu0 0.0
      %1170 = vmatprep.subr.mxu0 0.0
      %1171 = vmatpush2.xpose.msra.mxu0 0.0
      %1172 = vmatprep.subr.mxu0 0.0
      %1173 = vmatpush2.xpose.msra.mxu0 0.0
      %1174 = vmatprep.subr.mxu0 0.0
      %1175 = vmatpush2.xpose.msra.mxu0 0.0
      %1176 = vmatprep.subr.mxu0 0.0
      %1177 = vmatpush2.xpose.msra.mxu0 0.0
      %1178 = vmatprep.subr.mxu0 0.0
      %1179 = vmatpush2.xpose.msra.mxu0 0.0
      %1180 = vmatprep.subr.mxu0 0.0
      %1181 = vmatpush2.xpose.msra.mxu0 0.0
      %1182 = vmatprep.subr.mxu0 0.0
      %1183 = vmatpush2.xpose.msra.mxu0 0.0
      %1184 = vmatprep.subr.mxu0 0.0
      %1185 = vmatpush2.xpose.msra.mxu0 0.0
      %1186 = vmatprep.subr.mxu0 0.0
      %1187 = vmatpush2.xpose.msra.mxu0 0.0
      %1188 = vmatprep.mubr.f32.mxu0 0.0
      %1189 = vmatmul.mubr.f32.gmra.mxu0 %v1092
      %v1190 = vpop.f32.mrf.mxu0
      %v1191 = vadd.f32 0.0, %v1190
      %v1192 = vpop.f32.mrf.mxu0
      %1193 = vmatprep.mubr.f32.mxu0 0.0
      %1194 = vmatmul.mubr.f32.gmra.mxu0 %v1094
      %v1195 = vpop.f32.mrf.mxu0
      %v1196 = vadd.f32 0.0, %v1195
      %v1197 = vpop.f32.mrf.mxu0
      %1198 = vmatprep.mubr.f32.mxu0 0.0
      %1199 = vmatmul.mubr.f32.gmra.mxu0 %v1096
      %v1200 = vpop.f32.mrf.mxu0
      %v1201 = vadd.f32 0.0, %v1200
      %v1202 = vpop.f32.mrf.mxu0
      %1203 = vmatprep.mubr.f32.mxu0 0.0
      %1204 = vmatmul.mubr.f32.gmra.mxu0 %v1098
      %v1205 = vpop.f32.mrf.mxu0
      %v1206 = vadd.f32 0.0, %v1205
      %v1207 = vpop.f32.mrf.mxu0
      %1208 = vmatprep.mubr.f32.mxu0 0.0
      %1209 = vmatmul.mubr.f32.gmra.mxu0 %v1100
      %v1210 = vpop.f32.mrf.mxu0
      %v1211 = vadd.f32 0.0, %v1210
      %v1212 = vpop.f32.mrf.mxu0
      %1213 = vmatprep.mubr.f32.mxu0 0.0
      %1214 = vmatmul.mubr.f32.gmra.mxu0 %v1102
      %v1215 = vpop.f32.mrf.mxu0
      %v1216 = vadd.f32 0.0, %v1215
      %v1217 = vpop.f32.mrf.mxu0
      %1218 = vmatprep.mubr.f32.mxu0 0.0
      %1219 = vmatmul.mubr.f32.gmra.mxu0 %v1104
      %v1220 = vpop.f32.mrf.mxu0
      %v1221 = vadd.f32 0.0, %v1220
      %v1222 = vpop.f32.mrf.mxu0
      %1223 = vmatprep.mubr.f32.mxu0 0.0
      %1224 = vmatmul.mubr.f32.gmra.mxu0 %v1106
      %v1225 = vpop.f32.mrf.mxu0
      %v1226 = vadd.f32 0.0, %v1225
      %v1227 = vpop.f32.mrf.mxu0
      %1228 = vdwg.mxu0
      %v1229 = vsel %vm833, %v1191, -inf
      %1230 = vmax.xlane.f32.xlu0 %v1229
      %v1231 = vpop.xlane.xlu0 %1230
      %v1232 = vsel %vm833, %v1196, -inf
      %1233 = vmax.xlane.f32.xlu0 %v1232
      %v1234 = vpop.xlane.xlu0 %1233
      %v1235 = vsel %vm833, %v1201, -inf
      %1236 = vmax.xlane.f32.xlu0 %v1235
      %v1237 = vpop.xlane.xlu0 %1236
      %v1238 = vsel %vm833, %v1206, -inf
      %1239 = vmax.xlane.f32.xlu0 %v1238
      %v1240 = vpop.xlane.xlu0 %1239
      %v1241 = vsel %vm833, %v1211, -inf
      %1242 = vmax.xlane.f32.xlu0 %v1241
      %v1243 = vpop.xlane.xlu0 %1242
      %v1244 = vsel %vm833, %v1216, -inf
      %1245 = vmax.xlane.f32.xlu0 %v1244
      %v1246 = vpop.xlane.xlu0 %1245
      %v1247 = vsel %vm833, %v1221, -inf
      %1248 = vmax.xlane.f32.xlu0 %v1247
      %v1249 = vpop.xlane.xlu0 %1248
      %v1250 = vsel %vm833, %v1226, -inf
      %1251 = vmax.xlane.f32.xlu0 %v1250
      %v1252 = vpop.xlane.xlu0 %1251
      %v1253 = vsub.f32 %v1191, %v1231
      %v1254 = vsub.f32 %v1196, %v1234
      %v1255 = vsub.f32 %v1201, %v1237
      %v1256 = vsub.f32 %v1206, %v1240
      %v1257 = vsub.f32 %v1211, %v1243
      %v1258 = vsub.f32 %v1216, %v1246
      %v1259 = vsub.f32 %v1221, %v1249
      %v1260 = vsub.f32 %v1226, %v1252
      %v1261 = vmul.f32 %v1253, 1.442695
      %v1262 = vpow.pop %v1261
      %v1263 = vmul.f32 %v1254, 1.442695
      %v1264 = vpow.pop %v1263
      %v1265 = vmul.f32 %v1255, 1.442695
      %v1266 = vpow.pop %v1265
      %v1267 = vmul.f32 %v1256, 1.442695
      %v1268 = vpow.pop %v1267
      %v1269 = vmul.f32 %v1257, 1.442695
      %v1270 = vpow.pop %v1269
      %v1271 = vmul.f32 %v1258, 1.442695
      %v1272 = vpow.pop %v1271
      %v1273 = vmul.f32 %v1259, 1.442695
      %v1274 = vpow.pop %v1273
      %v1275 = vmul.f32 %v1260, 1.442695
      %v1276 = vpow.pop %v1275
      %v1277 = vsel %vm833, %v1262, 0.0
      %1278 = vadd.xlane.f32.xlu0 %v1277
      %v1279 = vpop.xlane.xlu0 %1278
      %v1280 = vsel %vm833, %v1264, 0.0
      %1281 = vadd.xlane.f32.xlu0 %v1280
      %v1282 = vpop.xlane.xlu0 %1281
      %v1283 = vsel %vm833, %v1266, 0.0
      %1284 = vadd.xlane.f32.xlu0 %v1283
      %v1285 = vpop.xlane.xlu0 %1284
      %v1286 = vsel %vm833, %v1268, 0.0
      %1287 = vadd.xlane.f32.xlu0 %v1286
      %v1288 = vpop.xlane.xlu0 %1287
      %v1289 = vsel %vm833, %v1270, 0.0
      %1290 = vadd.xlane.f32.xlu0 %v1289
      %v1291 = vpop.xlane.xlu0 %1290
      %v1292 = vsel %vm833, %v1272, 0.0
      %1293 = vadd.xlane.f32.xlu0 %v1292
      %v1294 = vpop.xlane.xlu0 %1293
      %v1295 = vsel %vm833, %v1274, 0.0
      %1296 = vadd.xlane.f32.xlu0 %v1295
      %v1297 = vpop.xlane.xlu0 %1296
      %v1298 = vsel %vm833, %v1276, 0.0
      %1299 = vadd.xlane.f32.xlu0 %v1298
      %v1300 = vpop.xlane.xlu0 %1299
      %1309 = vrot.lane.b32.xlu0 %v906, 120
      %v1310 = vpop.permute.xlu0 %1309
      %1311 = vrot.lane.b32.xlu0 %v907, 120
      %v1312 = vpop.permute.xlu0 %1311
      %1313 = vrot.lane.b32.xlu0 %v908, 120
      %v1314 = vpop.permute.xlu0 %1313
      %1315 = vrot.lane.b32.xlu0 %v909, 120
      %v1316 = vpop.permute.xlu0 %1315
      %1317 = vrot.lane.b32.xlu0 %v910, 120
      %v1318 = vpop.permute.xlu0 %1317
      %1319 = vrot.lane.b32.xlu0 %v911, 120
      %v1320 = vpop.permute.xlu0 %1319
      %1321 = vrot.lane.b32.xlu0 %v912, 120
      %v1322 = vpop.permute.xlu0 %1321
      %1323 = vrot.lane.b32.xlu0 %v913, 120
      %v1324 = vpop.permute.xlu0 %1323
      %v1334 = vsel %vm833, %v1262, 0
      %v1337 = vsel %vm833, %v1264, 0
      %v1340 = vsel %vm833, %v1266, 0
      %v1343 = vsel %vm833, %v1268, 0
      %v1346 = vsel %vm833, %v1270, 0
      %v1349 = vsel %vm833, %v1272, 0
      %v1352 = vsel %vm833, %v1274, 0
      %v1355 = vsel %vm833, %v1276, 0
      %1357 = vmatprep.subr.mxu0 0.0
      %1358 = vmatpush1.msra.mxu0 0.0
      %1359 = vmatprep.subr.mxu0 0.0
      %1360 = vmatpush1.msra.mxu0 0.0
      %1361 = vmatprep.subr.mxu0 0.0
      %1362 = vmatpush1.msra.mxu0 0.0
      %1363 = vmatprep.subr.mxu0 0.0
      %1364 = vmatpush1.msra.mxu0 0.0
      %1365 = vmatprep.subr.mxu0 0.0
      %1366 = vmatpush1.msra.mxu0 0.0
      %1367 = vmatprep.subr.mxu0 0.0
      %1368 = vmatpush1.msra.mxu0 0.0
      %1369 = vmatprep.subr.mxu0 0.0
      %1370 = vmatpush1.msra.mxu0 0.0
      %1371 = vmatprep.subr.mxu0 0.0
      %1372 = vmatpush1.msra.mxu0 0.0
      %1373 = vmatprep.subr.mxu0 0.0
      %1374 = vmatpush1.msra.mxu0 %v1324
      %1375 = vmatprep.subr.mxu0 0.0
      %1376 = vmatpush1.msra.mxu0 %v1322
      %1377 = vmatprep.subr.mxu0 0.0
      %1378 = vmatpush1.msra.mxu0 %v1320
      %1379 = vmatprep.subr.mxu0 0.0
      %1380 = vmatpush1.msra.mxu0 %v1318
      %1381 = vmatprep.subr.mxu0 0.0
      %1382 = vmatpush1.msra.mxu0 %v1316
      %1383 = vmatprep.subr.mxu0 0.0
      %1384 = vmatpush1.msra.mxu0 %v1314
      %1385 = vmatprep.subr.mxu0 0.0
      %1386 = vmatpush1.msra.mxu0 %v1312
      %1387 = vmatprep.subr.mxu0 0.0
      %1388 = vmatpush1.msra.mxu0 %v1310
      %1389 = vmatprep.subr.mxu0 0.0
      %1390 = vmatpush2.msra.mxu0 0.0
      %1391 = vmatprep.subr.mxu0 0.0
      %1392 = vmatpush2.msra.mxu0 0.0
      %1393 = vmatprep.subr.mxu0 0.0
      %1394 = vmatpush2.msra.mxu0 0.0
      %1395 = vmatprep.subr.mxu0 0.0
      %1396 = vmatpush2.msra.mxu0 0.0
      %1397 = vmatprep.subr.mxu0 0.0
      %1398 = vmatpush2.msra.mxu0 0.0
      %1399 = vmatprep.subr.mxu0 0.0
      %1400 = vmatpush2.msra.mxu0 0.0
      %1401 = vmatprep.subr.mxu0 0.0
      %1402 = vmatpush2.msra.mxu0 0.0
      %1403 = vmatprep.subr.mxu0 0.0
      %1404 = vmatpush2.msra.mxu0 0.0
      %1405 = vmatprep.subr.mxu0 0.0
      %1406 = vmatpush2.msra.mxu0 0.0
      %1407 = vmatprep.subr.mxu0 0.0
      %1408 = vmatpush2.msra.mxu0 0.0
      %1409 = vmatprep.subr.mxu0 0.0
      %1410 = vmatpush2.msra.mxu0 0.0
      %1411 = vmatprep.subr.mxu0 0.0
      %1412 = vmatpush2.msra.mxu0 0.0
      %1413 = vmatprep.subr.mxu0 0.0
      %1414 = vmatpush2.msra.mxu0 0.0
      %1415 = vmatprep.subr.mxu0 0.0
      %1416 = vmatpush2.msra.mxu0 0.0
      %1417 = vmatprep.subr.mxu0 0.0
      %1418 = vmatpush2.msra.mxu0 0.0
      %1419 = vmatprep.subr.mxu0 0.0
      %1420 = vmatpush2.msra.mxu0 0.0
      %1421 = vmatprep.mubr.f32.mxu0 0.0
      %1422 = vmatmul.mubr.f32.gmra.mxu0 %v1334
      %v1423 = vpop.f32.mrf.mxu0
      %v1424 = vadd.f32 0.0, %v1423
      %v1425 = vpop.f32.mrf.mxu0
      %1426 = vmatprep.mubr.f32.mxu0 0.0
      %1427 = vmatmul.mubr.f32.gmra.mxu0 %v1337
      %v1428 = vpop.f32.mrf.mxu0
      %v1429 = vadd.f32 0.0, %v1428
      %v1430 = vpop.f32.mrf.mxu0
      %1431 = vmatprep.mubr.f32.mxu0 0.0
      %1432 = vmatmul.mubr.f32.gmra.mxu0 %v1340
      %v1433 = vpop.f32.mrf.mxu0
      %v1434 = vadd.f32 0.0, %v1433
      %v1435 = vpop.f32.mrf.mxu0
      %1436 = vmatprep.mubr.f32.mxu0 0.0
      %1437 = vmatmul.mubr.f32.gmra.mxu0 %v1343
      %v1438 = vpop.f32.mrf.mxu0
      %v1439 = vadd.f32 0.0, %v1438
      %v1440 = vpop.f32.mrf.mxu0
      %1441 = vmatprep.mubr.f32.mxu0 0.0
      %1442 = vmatmul.mubr.f32.gmra.mxu0 %v1346
      %v1443 = vpop.f32.mrf.mxu0
      %v1444 = vadd.f32 0.0, %v1443
      %v1445 = vpop.f32.mrf.mxu0
      %1446 = vmatprep.mubr.f32.mxu0 0.0
      %1447 = vmatmul.mubr.f32.gmra.mxu0 %v1349
      %v1448 = vpop.f32.mrf.mxu0
      %v1449 = vadd.f32 0.0, %v1448
      %v1450 = vpop.f32.mrf.mxu0
      %1451 = vmatprep.mubr.f32.mxu0 0.0
      %1452 = vmatmul.mubr.f32.gmra.mxu0 %v1352
      %v1453 = vpop.f32.mrf.mxu0
      %v1454 = vadd.f32 0.0, %v1453
      %v1455 = vpop.f32.mrf.mxu0
      %1456 = vmatprep.mubr.f32.mxu0 0.0
      %1457 = vmatmul.mubr.f32.gmra.mxu0 %v1355
      %v1458 = vpop.f32.mrf.mxu0
      %v1459 = vadd.f32 0.0, %v1458
      %v1460 = vpop.f32.mrf.mxu0
      %1461 = vdwg.mxu0
      %v1462 = vrcp.pop %v1279
      %v1463 = vrcp.pop %v1282
      %v1464 = vrcp.pop %v1285
      %v1465 = vrcp.pop %v1288
      %v1466 = vrcp.pop %v1291
      %v1467 = vrcp.pop %v1294
      %v1468 = vrcp.pop %v1297
      %v1469 = vrcp.pop %v1300
      %v1470 = vmul.f32 %v1424, %v1462
      %v1471 = vmul.f32 %v1429, %v1463
      %v1472 = vmul.f32 %v1434, %v1464
      %v1473 = vmul.f32 %v1439, %v1465
      %v1474 = vmul.f32 %v1444, %v1466
      %v1475 = vmul.f32 %v1449, %v1467
      %v1476 = vmul.f32 %v1454, %v1468
      %v1477 = vmul.f32 %v1459, %v1469
      %v1478 = vld [vmem:[%s4 + $0x8] sm:$0xff]
      %v1480 = vsel %vm679, %v1470, 0
      %v1483 = vsel %vm679, %v1471, 0
      %v1486 = vsel %vm679, %v1472, 0
      %v1489 = vsel %vm679, %v1473, 0
      %v1492 = vsel %vm679, %v1474, 0
      %v1495 = vsel %vm679, %v1475, 0
      %v1498 = vsel %vm679, %v1476, 0
      %v1501 = vsel %vm679, %v1477, 0
      %1503 = vmatprep.subr.mxu0 0.0
      %1504 = vmatpush1.msra.mxu0 0.0
      %1505 = vmatprep.subr.mxu0 0.0
      %1506 = vmatpush1.msra.mxu0 0.0
      %1507 = vmatprep.subr.mxu0 0.0
      %1508 = vmatpush1.msra.mxu0 0.0
      %1509 = vmatprep.subr.mxu0 0.0
      %1510 = vmatpush1.msra.mxu0 0.0
      %1511 = vmatprep.subr.mxu0 0.0
      %1512 = vmatpush1.msra.mxu0 0.0
      %1513 = vmatprep.subr.mxu0 0.0
      %1514 = vmatpush1.msra.mxu0 0.0
      %1515 = vmatprep.subr.mxu0 0.0
      %1516 = vmatpush1.msra.mxu0 0.0
      %1517 = vmatprep.subr.mxu0 0.0
      %1518 = vmatpush1.msra.mxu0 0.0
      %1519 = vmatprep.subr.mxu0 0.0
      %1520 = vmatpush1.msra.mxu0 0.0
      %1521 = vmatprep.subr.mxu0 0.0
      %1522 = vmatpush1.msra.mxu0 0.0
      %1523 = vmatprep.subr.mxu0 0.0
      %1524 = vmatpush1.msra.mxu0 0.0
      %1525 = vmatprep.subr.mxu0 0.0
      %1526 = vmatpush1.msra.mxu0 0.0
      %1527 = vmatprep.subr.mxu0 0.0
      %1528 = vmatpush1.msra.mxu0 0.0
      %1529 = vmatprep.subr.mxu0 0.0
      %1530 = vmatpush1.msra.mxu0 0.0
      %1531 = vmatprep.subr.mxu0 0.0
      %1532 = vmatpush1.msra.mxu0 0.0
      %1533 = vmatprep.subr.mxu0 0.0
      %1534 = vmatpush1.msra.mxu0 %v1478
      %1535 = vmatprep.subr.mxu0 0.0
      %1536 = vmatpush2.msra.mxu0 0.0
      %1537 = vmatprep.subr.mxu0 0.0
      %1538 = vmatpush2.msra.mxu0 0.0
      %1539 = vmatprep.subr.mxu0 0.0
      %1540 = vmatpush2.msra.mxu0 0.0
      %1541 = vmatprep.subr.mxu0 0.0
      %1542 = vmatpush2.msra.mxu0 0.0
      %1543 = vmatprep.subr.mxu0 0.0
      %1544 = vmatpush2.msra.mxu0 0.0
      %1545 = vmatprep.subr.mxu0 0.0
      %1546 = vmatpush2.msra.mxu0 0.0
      %1547 = vmatprep.subr.mxu0 0.0
      %1548 = vmatpush2.msra.mxu0 0.0
      %1549 = vmatprep.subr.mxu0 0.0
      %1550 = vmatpush2.msra.mxu0 0.0
      %1551 = vmatprep.subr.mxu0 0.0
      %1552 = vmatpush2.msra.mxu0 0.0
      %1553 = vmatprep.subr.mxu0 0.0
      %1554 = vmatpush2.msra.mxu0 0.0
      %1555 = vmatprep.subr.mxu0 0.0
      %1556 = vmatpush2.msra.mxu0 0.0
      %1557 = vmatprep.subr.mxu0 0.0
      %1558 = vmatpush2.msra.mxu0 0.0
      %1559 = vmatprep.subr.mxu0 0.0
      %1560 = vmatpush2.msra.mxu0 0.0
      %1561 = vmatprep.subr.mxu0 0.0
      %1562 = vmatpush2.msra.mxu0 0.0
      %1563 = vmatprep.subr.mxu0 0.0
      %1564 = vmatpush2.msra.mxu0 0.0
      %1565 = vmatprep.subr.mxu0 0.0
      %1566 = vmatpush2.msra.mxu0 0.0
      %1567 = vmatprep.mubr.f32.mxu0 0.0
      %1568 = vmatmul.mubr.f32.gmra.mxu0 %v1480
      %v1569 = vpop.f32.mrf.mxu0
      %v1570 = vadd.f32 0.0, %v1569
      %v1571 = vpop.f32.mrf.mxu0
      %1572 = vmatprep.mubr.f32.mxu0 0.0
      %1573 = vmatmul.mubr.f32.gmra.mxu0 %v1483
      %v1574 = vpop.f32.mrf.mxu0
      %v1575 = vadd.f32 0.0, %v1574
      %v1576 = vpop.f32.mrf.mxu0
      %1577 = vmatprep.mubr.f32.mxu0 0.0
      %1578 = vmatmul.mubr.f32.gmra.mxu0 %v1486
      %v1579 = vpop.f32.mrf.mxu0
      %v1580 = vadd.f32 0.0, %v1579
      %v1581 = vpop.f32.mrf.mxu0
      %1582 = vmatprep.mubr.f32.mxu0 0.0
      %1583 = vmatmul.mubr.f32.gmra.mxu0 %v1489
      %v1584 = vpop.f32.mrf.mxu0
      %v1585 = vadd.f32 0.0, %v1584
      %v1586 = vpop.f32.mrf.mxu0
      %1587 = vmatprep.mubr.f32.mxu0 0.0
      %1588 = vmatmul.mubr.f32.gmra.mxu0 %v1492
      %v1589 = vpop.f32.mrf.mxu0
      %v1590 = vadd.f32 0.0, %v1589
      %v1591 = vpop.f32.mrf.mxu0
      %1592 = vmatprep.mubr.f32.mxu0 0.0
      %1593 = vmatmul.mubr.f32.gmra.mxu0 %v1495
      %v1594 = vpop.f32.mrf.mxu0
      %v1595 = vadd.f32 0.0, %v1594
      %v1596 = vpop.f32.mrf.mxu0
      %1597 = vmatprep.mubr.f32.mxu0 0.0
      %1598 = vmatmul.mubr.f32.gmra.mxu0 %v1498
      %v1599 = vpop.f32.mrf.mxu0
      %v1600 = vadd.f32 0.0, %v1599
      %v1601 = vpop.f32.mrf.mxu0
      %1602 = vmatprep.mubr.f32.mxu0 0.0
      %1603 = vmatmul.mubr.f32.gmra.mxu0 %v1501
      %v1604 = vpop.f32.mrf.mxu0
      %v1605 = vadd.f32 0.0, %v1604
      %v1606 = vpop.f32.mrf.mxu0
      %1607 = vdwg.mxu0
      %v1609 = vsel %vm679, %v1051, 0
      %v1612 = vsel %vm679, %v1052, 0
      %v1615 = vsel %vm679, %v1053, 0
      %v1618 = vsel %vm679, %v1054, 0
      %v1621 = vsel %vm679, %v1055, 0
      %v1624 = vsel %vm679, %v1056, 0
      %v1627 = vsel %vm679, %v1057, 0
      %v1630 = vsel %vm679, %v1058, 0
      %1632 = vmatprep.subr.mxu0 0.0
      %1633 = vmatpush1.msra.mxu0 0.0
      %1634 = vmatprep.subr.mxu0 0.0
      %1635 = vmatpush1.msra.mxu0 0.0
      %1636 = vmatprep.subr.mxu0 0.0
      %1637 = vmatpush1.msra.mxu0 0.0
      %1638 = vmatprep.subr.mxu0 0.0
      %1639 = vmatpush1.msra.mxu0 0.0
      %1640 = vmatprep.subr.mxu0 0.0
      %1641 = vmatpush1.msra.mxu0 0.0
      %1642 = vmatprep.subr.mxu0 0.0
      %1643 = vmatpush1.msra.mxu0 0.0
      %1644 = vmatprep.subr.mxu0 0.0
      %1645 = vmatpush1.msra.mxu0 0.0
      %1646 = vmatprep.subr.mxu0 0.0
      %1647 = vmatpush1.msra.mxu0 0.0
      %1648 = vmatprep.subr.mxu0 0.0
      %1649 = vmatpush1.msra.mxu0 0.0
      %1650 = vmatprep.subr.mxu0 0.0
      %1651 = vmatpush1.msra.mxu0 0.0
      %1652 = vmatprep.subr.mxu0 0.0
      %1653 = vmatpush1.msra.mxu0 0.0
      %1654 = vmatprep.subr.mxu0 0.0
      %1655 = vmatpush1.msra.mxu0 0.0
      %1656 = vmatprep.subr.mxu0 0.0
      %1657 = vmatpush1.msra.mxu0 0.0
      %1658 = vmatprep.subr.mxu0 0.0
      %1659 = vmatpush1.msra.mxu0 0.0
      %1660 = vmatprep.subr.mxu0 0.0
      %1661 = vmatpush1.msra.mxu0 0.0
      %1662 = vmatprep.subr.mxu0 0.0
      %1663 = vmatpush1.msra.mxu0 %v1059
      %1664 = vmatprep.subr.mxu0 0.0
      %1665 = vmatpush2.msra.mxu0 0.0
      %1666 = vmatprep.subr.mxu0 0.0
      %1667 = vmatpush2.msra.mxu0 0.0
      %1668 = vmatprep.subr.mxu0 0.0
      %1669 = vmatpush2.msra.mxu0 0.0
      %1670 = vmatprep.subr.mxu0 0.0
      %1671 = vmatpush2.msra.mxu0 0.0
      %1672 = vmatprep.subr.mxu0 0.0
      %1673 = vmatpush2.msra.mxu0 0.0
      %1674 = vmatprep.subr.mxu0 0.0
      %1675 = vmatpush2.msra.mxu0 0.0
      %1676 = vmatprep.subr.mxu0 0.0
      %1677 = vmatpush2.msra.mxu0 0.0
      %1678 = vmatprep.subr.mxu0 0.0
      %1679 = vmatpush2.msra.mxu0 0.0
      %1680 = vmatprep.subr.mxu0 0.0
      %1681 = vmatpush2.msra.mxu0 0.0
      %1682 = vmatprep.subr.mxu0 0.0
      %1683 = vmatpush2.msra.mxu0 0.0
      %1684 = vmatprep.subr.mxu0 0.0
      %1685 = vmatpush2.msra.mxu0 0.0
      %1686 = vmatprep.subr.mxu0 0.0
      %1687 = vmatpush2.msra.mxu0 0.0
      %1688 = vmatprep.subr.mxu0 0.0
      %1689 = vmatpush2.msra.mxu0 0.0
      %1690 = vmatprep.subr.mxu0 0.0
      %1691 = vmatpush2.msra.mxu0 0.0
      %1692 = vmatprep.subr.mxu0 0.0
      %1693 = vmatpush2.msra.mxu0 0.0
      %1694 = vmatprep.subr.mxu0 0.0
      %1695 = vmatpush2.msra.mxu0 0.0
      %1696 = vmatprep.mubr.f32.mxu0 0.0
      %1697 = vmatmul.mubr.f32.gmra.mxu0 %v1609
      %v1698 = vpop.f32.mrf.mxu0
      %v1699 = vadd.f32 %v1570, %v1698
      %v1700 = vpop.f32.mrf.mxu0
      %1701 = vmatprep.mubr.f32.mxu0 0.0
      %1702 = vmatmul.mubr.f32.gmra.mxu0 %v1612
      %v1703 = vpop.f32.mrf.mxu0
      %v1704 = vadd.f32 %v1575, %v1703
      %v1705 = vpop.f32.mrf.mxu0
      %1706 = vmatprep.mubr.f32.mxu0 0.0
      %1707 = vmatmul.mubr.f32.gmra.mxu0 %v1615
      %v1708 = vpop.f32.mrf.mxu0
      %v1709 = vadd.f32 %v1580, %v1708
      %v1710 = vpop.f32.mrf.mxu0
      %1711 = vmatprep.mubr.f32.mxu0 0.0
      %1712 = vmatmul.mubr.f32.gmra.mxu0 %v1618
      %v1713 = vpop.f32.mrf.mxu0
      %v1714 = vadd.f32 %v1585, %v1713
      %v1715 = vpop.f32.mrf.mxu0
      %1716 = vmatprep.mubr.f32.mxu0 0.0
      %1717 = vmatmul.mubr.f32.gmra.mxu0 %v1621
      %v1718 = vpop.f32.mrf.mxu0
      %v1719 = vadd.f32 %v1590, %v1718
      %v1720 = vpop.f32.mrf.mxu0
      %1721 = vmatprep.mubr.f32.mxu0 0.0
      %1722 = vmatmul.mubr.f32.gmra.mxu0 %v1624
      %v1723 = vpop.f32.mrf.mxu0
      %v1724 = vadd.f32 %v1595, %v1723
      %v1725 = vpop.f32.mrf.mxu0
      %1726 = vmatprep.mubr.f32.mxu0 0.0
      %1727 = vmatmul.mubr.f32.gmra.mxu0 %v1627
      %v1728 = vpop.f32.mrf.mxu0
      %v1729 = vadd.f32 %v1600, %v1728
      %v1730 = vpop.f32.mrf.mxu0
      %1731 = vmatprep.mubr.f32.mxu0 0.0
      %1732 = vmatmul.mubr.f32.gmra.mxu0 %v1630
      %v1733 = vpop.f32.mrf.mxu0
      %v1734 = vadd.f32 %v1605, %v1733
      %v1735 = vpop.f32.mrf.mxu0
      %1736 = vdwg.mxu0
      %1737 = vrot.lane.b32.xlu0 %v663, 112
      %v1738 = vpop.permute.xlu0 %1737
      %1739 = vrot.lane.b32.xlu0 %v664, 112
      %v1740 = vpop.permute.xlu0 %1739
      %1741 = vrot.lane.b32.xlu0 %v665, 112
      %v1742 = vpop.permute.xlu0 %1741
      %1743 = vrot.lane.b32.xlu0 %v666, 112
      %v1744 = vpop.permute.xlu0 %1743
      %1745 = vrot.lane.b32.xlu0 %v667, 112
      %v1746 = vpop.permute.xlu0 %1745
      %1747 = vrot.lane.b32.xlu0 %v668, 112
      %v1748 = vpop.permute.xlu0 %1747
      %1749 = vrot.lane.b32.xlu0 %v669, 112
      %v1750 = vpop.permute.xlu0 %1749
      %1751 = vrot.lane.b32.xlu0 %v670, 112
      %v1752 = vpop.permute.xlu0 %1751
      %1753 = vrot.lane.b32.xlu0 %v671, 112
      %v1754 = vpop.permute.xlu0 %1753
      %1755 = vrot.lane.b32.xlu0 %v672, 112
      %v1756 = vpop.permute.xlu0 %1755
      %1757 = vrot.lane.b32.xlu0 %v673, 112
      %v1758 = vpop.permute.xlu0 %1757
      %1759 = vrot.lane.b32.xlu0 %v674, 112
      %v1760 = vpop.permute.xlu0 %1759
      %1761 = vrot.lane.b32.xlu0 %v675, 112
      %v1762 = vpop.permute.xlu0 %1761
      %1763 = vrot.lane.b32.xlu0 %v676, 112
      %v1764 = vpop.permute.xlu0 %1763
      %1765 = vrot.lane.b32.xlu0 %v677, 112
      %v1766 = vpop.permute.xlu0 %1765
      %1767 = vrot.lane.b32.xlu0 %v678, 112
      %v1768 = vpop.permute.xlu0 %1767
      %v1769 = vsel %vm679, %v1738, 0
      %v1771 = vsel %vm679, %v1740, 0
      %v1773 = vsel %vm679, %v1742, 0
      %v1775 = vsel %vm679, %v1744, 0
      %v1777 = vsel %vm679, %v1746, 0
      %v1779 = vsel %vm679, %v1748, 0
      %v1781 = vsel %vm679, %v1750, 0
      %v1783 = vsel %vm679, %v1752, 0
      %v1785 = vsel %vm679, %v1754, 0
      %v1787 = vsel %vm679, %v1756, 0
      %v1789 = vsel %vm679, %v1758, 0
      %v1791 = vsel %vm679, %v1760, 0
      %v1793 = vsel %vm679, %v1762, 0
      %v1795 = vsel %vm679, %v1764, 0
      %v1797 = vsel %vm679, %v1766, 0
      %v1799 = vsel %vm679, %v1768, 0
      %1801 = vmatprep.subr.mxu0 0.0
      %1802 = vmatpush1.xpose.msra.mxu0 0.0
      %1803 = vmatprep.subr.mxu0 0.0
      %1804 = vmatpush1.xpose.msra.mxu0 0.0
      %1805 = vmatprep.subr.mxu0 0.0
      %1806 = vmatpush1.xpose.msra.mxu0 0.0
      %1807 = vmatprep.subr.mxu0 0.0
      %1808 = vmatpush1.xpose.msra.mxu0 0.0
      %1809 = vmatprep.subr.mxu0 0.0
      %1810 = vmatpush1.xpose.msra.mxu0 0.0
      %1811 = vmatprep.subr.mxu0 0.0
      %1812 = vmatpush1.xpose.msra.mxu0 0.0
      %1813 = vmatprep.subr.mxu0 0.0
      %1814 = vmatpush1.xpose.msra.mxu0 0.0
      %1815 = vmatprep.subr.mxu0 0.0
      %1816 = vmatpush1.xpose.msra.mxu0 0.0
      %1817 = vmatprep.subr.mxu0 0.0
      %1818 = vmatpush1.xpose.msra.mxu0 %v1799
      %1819 = vmatprep.subr.mxu0 0.0
      %1820 = vmatpush1.xpose.msra.mxu0 %v1797
      %1821 = vmatprep.subr.mxu0 0.0
      %1822 = vmatpush1.xpose.msra.mxu0 %v1795
      %1823 = vmatprep.subr.mxu0 0.0
      %1824 = vmatpush1.xpose.msra.mxu0 %v1793
      %1825 = vmatprep.subr.mxu0 0.0
      %1826 = vmatpush1.xpose.msra.mxu0 %v1791
      %1827 = vmatprep.subr.mxu0 0.0
      %1828 = vmatpush1.xpose.msra.mxu0 %v1789
      %1829 = vmatprep.subr.mxu0 0.0
      %1830 = vmatpush1.xpose.msra.mxu0 %v1787
      %1831 = vmatprep.subr.mxu0 0.0
      %1832 = vmatpush1.xpose.msra.mxu0 %v1785
      %1833 = vmatprep.subr.mxu0 0.0
      %1834 = vmatpush2.xpose.msra.mxu0 0.0
      %1835 = vmatprep.subr.mxu0 0.0
      %1836 = vmatpush2.xpose.msra.mxu0 0.0
      %1837 = vmatprep.subr.mxu0 0.0
      %1838 = vmatpush2.xpose.msra.mxu0 0.0
      %1839 = vmatprep.subr.mxu0 0.0
      %1840 = vmatpush2.xpose.msra.mxu0 0.0
      %1841 = vmatprep.subr.mxu0 0.0
      %1842 = vmatpush2.xpose.msra.mxu0 0.0
      %1843 = vmatprep.subr.mxu0 0.0
      %1844 = vmatpush2.xpose.msra.mxu0 0.0
      %1845 = vmatprep.subr.mxu0 0.0
      %1846 = vmatpush2.xpose.msra.mxu0 0.0
      %1847 = vmatprep.subr.mxu0 0.0
      %1848 = vmatpush2.xpose.msra.mxu0 0.0
      %1849 = vmatprep.subr.mxu0 0.0
      %1850 = vmatpush2.xpose.msra.mxu0 0.0
      %1851 = vmatprep.subr.mxu0 0.0
      %1852 = vmatpush2.xpose.msra.mxu0 0.0
      %1853 = vmatprep.subr.mxu0 0.0
      %1854 = vmatpush2.xpose.msra.mxu0 0.0
      %1855 = vmatprep.subr.mxu0 0.0
      %1856 = vmatpush2.xpose.msra.mxu0 0.0
      %1857 = vmatprep.subr.mxu0 0.0
      %1858 = vmatpush2.xpose.msra.mxu0 0.0
      %1859 = vmatprep.subr.mxu0 0.0
      %1860 = vmatpush2.xpose.msra.mxu0 0.0
      %1861 = vmatprep.subr.mxu0 0.0
      %1862 = vmatpush2.xpose.msra.mxu0 0.0
      %1863 = vmatprep.subr.mxu0 0.0
      %1864 = vmatpush2.xpose.msra.mxu0 0.0
      %1865 = vmatprep.mubr.f32.mxu0 0.0
      %1866 = vmatmul.mubr.f32.gmra.mxu0 %v1769
      %v1867 = vpop.f32.mrf.mxu0
      %v1868 = vadd.f32 0.0, %v1867
      %v1869 = vpop.f32.mrf.mxu0
      %1870 = vmatprep.mubr.f32.mxu0 0.0
      %1871 = vmatmul.mubr.f32.gmra.mxu0 %v1771
      %v1872 = vpop.f32.mrf.mxu0
      %v1873 = vadd.f32 0.0, %v1872
      %v1874 = vpop.f32.mrf.mxu0
      %1875 = vmatprep.mubr.f32.mxu0 0.0
      %1876 = vmatmul.mubr.f32.gmra.mxu0 %v1773
      %v1877 = vpop.f32.mrf.mxu0
      %v1878 = vadd.f32 0.0, %v1877
      %v1879 = vpop.f32.mrf.mxu0
      %1880 = vmatprep.mubr.f32.mxu0 0.0
      %1881 = vmatmul.mubr.f32.gmra.mxu0 %v1775
      %v1882 = vpop.f32.mrf.mxu0
      %v1883 = vadd.f32 0.0, %v1882
      %v1884 = vpop.f32.mrf.mxu0
      %1885 = vmatprep.mubr.f32.mxu0 0.0
      %1886 = vmatmul.mubr.f32.gmra.mxu0 %v1777
      %v1887 = vpop.f32.mrf.mxu0
      %v1888 = vadd.f32 0.0, %v1887
      %v1889 = vpop.f32.mrf.mxu0
      %1890 = vmatprep.mubr.f32.mxu0 0.0
      %1891 = vmatmul.mubr.f32.gmra.mxu0 %v1779
      %v1892 = vpop.f32.mrf.mxu0
      %v1893 = vadd.f32 0.0, %v1892
      %v1894 = vpop.f32.mrf.mxu0
      %1895 = vmatprep.mubr.f32.mxu0 0.0
      %1896 = vmatmul.mubr.f32.gmra.mxu0 %v1781
      %v1897 = vpop.f32.mrf.mxu0
      %v1898 = vadd.f32 0.0, %v1897
      %v1899 = vpop.f32.mrf.mxu0
      %1900 = vmatprep.mubr.f32.mxu0 0.0
      %1901 = vmatmul.mubr.f32.gmra.mxu0 %v1783
      %v1902 = vpop.f32.mrf.mxu0
      %v1903 = vadd.f32 0.0, %v1902
      %v1904 = vpop.f32.mrf.mxu0
      %1905 = vdwg.mxu0
      %v1906 = vsel %vm833, %v1868, -inf
      %1907 = vmax.xlane.f32.xlu0 %v1906
      %v1908 = vpop.xlane.xlu0 %1907
      %v1909 = vsel %vm833, %v1873, -inf
      %1910 = vmax.xlane.f32.xlu0 %v1909
      %v1911 = vpop.xlane.xlu0 %1910
      %v1912 = vsel %vm833, %v1878, -inf
      %1913 = vmax.xlane.f32.xlu0 %v1912
      %v1914 = vpop.xlane.xlu0 %1913
      %v1915 = vsel %vm833, %v1883, -inf
      %1916 = vmax.xlane.f32.xlu0 %v1915
      %v1917 = vpop.xlane.xlu0 %1916
      %v1918 = vsel %vm833, %v1888, -inf
      %1919 = vmax.xlane.f32.xlu0 %v1918
      %v1920 = vpop.xlane.xlu0 %1919
      %v1921 = vsel %vm833, %v1893, -inf
      %1922 = vmax.xlane.f32.xlu0 %v1921
      %v1923 = vpop.xlane.xlu0 %1922
      %v1924 = vsel %vm833, %v1898, -inf
      %1925 = vmax.xlane.f32.xlu0 %v1924
      %v1926 = vpop.xlane.xlu0 %1925
      %v1927 = vsel %vm833, %v1903, -inf
      %1928 = vmax.xlane.f32.xlu0 %v1927
      %v1929 = vpop.xlane.xlu0 %1928
      %v1930 = vsub.f32 %v1868, %v1908
      %v1931 = vsub.f32 %v1873, %v1911
      %v1932 = vsub.f32 %v1878, %v1914
      %v1933 = vsub.f32 %v1883, %v1917
      %v1934 = vsub.f32 %v1888, %v1920
      %v1935 = vsub.f32 %v1893, %v1923
      %v1936 = vsub.f32 %v1898, %v1926
      %v1937 = vsub.f32 %v1903, %v1929
      %v1938 = vmul.f32 %v1930, 1.442695
      %v1939 = vpow.pop %v1938
      %v1940 = vmul.f32 %v1931, 1.442695
      %v1941 = vpow.pop %v1940
      %v1942 = vmul.f32 %v1932, 1.442695
      %v1943 = vpow.pop %v1942
      %v1944 = vmul.f32 %v1933, 1.442695
      %v1945 = vpow.pop %v1944
      %v1946 = vmul.f32 %v1934, 1.442695
      %v1947 = vpow.pop %v1946
      %v1948 = vmul.f32 %v1935, 1.442695
      %v1949 = vpow.pop %v1948
      %v1950 = vmul.f32 %v1936, 1.442695
      %v1951 = vpow.pop %v1950
      %v1952 = vmul.f32 %v1937, 1.442695
      %v1953 = vpow.pop %v1952
      %v1954 = vsel %vm833, %v1939, 0.0
      %1955 = vadd.xlane.f32.xlu0 %v1954
      %v1956 = vpop.xlane.xlu0 %1955
      %v1957 = vsel %vm833, %v1941, 0.0
      %1958 = vadd.xlane.f32.xlu0 %v1957
      %v1959 = vpop.xlane.xlu0 %1958
      %v1960 = vsel %vm833, %v1943, 0.0
      %1961 = vadd.xlane.f32.xlu0 %v1960
      %v1962 = vpop.xlane.xlu0 %1961
      %v1963 = vsel %vm833, %v1945, 0.0
      %1964 = vadd.xlane.f32.xlu0 %v1963
      %v1965 = vpop.xlane.xlu0 %1964
      %v1966 = vsel %vm833, %v1947, 0.0
      %1967 = vadd.xlane.f32.xlu0 %v1966
      %v1968 = vpop.xlane.xlu0 %1967
      %v1969 = vsel %vm833, %v1949, 0.0
      %1970 = vadd.xlane.f32.xlu0 %v1969
      %v1971 = vpop.xlane.xlu0 %1970
      %v1972 = vsel %vm833, %v1951, 0.0
      %1973 = vadd.xlane.f32.xlu0 %v1972
      %v1974 = vpop.xlane.xlu0 %1973
      %v1975 = vsel %vm833, %v1953, 0.0
      %1976 = vadd.xlane.f32.xlu0 %v1975
      %v1977 = vpop.xlane.xlu0 %1976
      %1978 = vrot.lane.b32.xlu0 %v906, 112
      %v1979 = vpop.permute.xlu0 %1978
      %1980 = vrot.lane.b32.xlu0 %v907, 112
      %v1981 = vpop.permute.xlu0 %1980
      %1982 = vrot.lane.b32.xlu0 %v908, 112
      %v1983 = vpop.permute.xlu0 %1982
      %1984 = vrot.lane.b32.xlu0 %v909, 112
      %v1985 = vpop.permute.xlu0 %1984
      %1986 = vrot.lane.b32.xlu0 %v910, 112
      %v1987 = vpop.permute.xlu0 %1986
      %1988 = vrot.lane.b32.xlu0 %v911, 112
      %v1989 = vpop.permute.xlu0 %1988
      %1990 = vrot.lane.b32.xlu0 %v912, 112
      %v1991 = vpop.permute.xlu0 %1990
      %1992 = vrot.lane.b32.xlu0 %v913, 112
      %v1993 = vpop.permute.xlu0 %1992
      %v2003 = vsel %vm833, %v1939, 0
      %v2006 = vsel %vm833, %v1941, 0
      %v2009 = vsel %vm833, %v1943, 0
      %v2012 = vsel %vm833, %v1945, 0
      %v2015 = vsel %vm833, %v1947, 0
      %v2018 = vsel %vm833, %v1949, 0
      %v2021 = vsel %vm833, %v1951, 0
      %v2024 = vsel %vm833, %v1953, 0
      %2026 = vmatprep.subr.mxu0 0.0
      %2027 = vmatpush1.msra.mxu0 0.0
      %2028 = vmatprep.subr.mxu0 0.0
      %2029 = vmatpush1.msra.mxu0 0.0
      %2030 = vmatprep.subr.mxu0 0.0
      %2031 = vmatpush1.msra.mxu0 0.0
      %2032 = vmatprep.subr.mxu0 0.0
      %2033 = vmatpush1.msra.mxu0 0.0
      %2034 = vmatprep.subr.mxu0 0.0
      %2035 = vmatpush1.msra.mxu0 0.0
      %2036 = vmatprep.subr.mxu0 0.0
      %2037 = vmatpush1.msra.mxu0 0.0
      %2038 = vmatprep.subr.mxu0 0.0
      %2039 = vmatpush1.msra.mxu0 0.0
      %2040 = vmatprep.subr.mxu0 0.0
      %2041 = vmatpush1.msra.mxu0 0.0
      %2042 = vmatprep.subr.mxu0 0.0
      %2043 = vmatpush1.msra.mxu0 %v1993
      %2044 = vmatprep.subr.mxu0 0.0
      %2045 = vmatpush1.msra.mxu0 %v1991
      %2046 = vmatprep.subr.mxu0 0.0
      %2047 = vmatpush1.msra.mxu0 %v1989
      %2048 = vmatprep.subr.mxu0 0.0
      %2049 = vmatpush1.msra.mxu0 %v1987
      %2050 = vmatprep.subr.mxu0 0.0
      %2051 = vmatpush1.msra.mxu0 %v1985
      %2052 = vmatprep.subr.mxu0 0.0
      %2053 = vmatpush1.msra.mxu0 %v1983
      %2054 = vmatprep.subr.mxu0 0.0
      %2055 = vmatpush1.msra.mxu0 %v1981
      %2056 = vmatprep.subr.mxu0 0.0
      %2057 = vmatpush1.msra.mxu0 %v1979
      %2058 = vmatprep.subr.mxu0 0.0
      %2059 = vmatpush2.msra.mxu0 0.0
      %2060 = vmatprep.subr.mxu0 0.0
      %2061 = vmatpush2.msra.mxu0 0.0
      %2062 = vmatprep.subr.mxu0 0.0
      %2063 = vmatpush2.msra.mxu0 0.0
      %2064 = vmatprep.subr.mxu0 0.0
      %2065 = vmatpush2.msra.mxu0 0.0
      %2066 = vmatprep.subr.mxu0 0.0
      %2067 = vmatpush2.msra.mxu0 0.0
      %2068 = vmatprep.subr.mxu0 0.0
      %2069 = vmatpush2.msra.mxu0 0.0
      %2070 = vmatprep.subr.mxu0 0.0
      %2071 = vmatpush2.msra.mxu0 0.0
      %2072 = vmatprep.subr.mxu0 0.0
      %2073 = vmatpush2.msra.mxu0 0.0
      %2074 = vmatprep.subr.mxu0 0.0
      %2075 = vmatpush2.msra.mxu0 0.0
      %2076 = vmatprep.subr.mxu0 0.0
      %2077 = vmatpush2.msra.mxu0 0.0
      %2078 = vmatprep.subr.mxu0 0.0
      %2079 = vmatpush2.msra.mxu0 0.0
      %2080 = vmatprep.subr.mxu0 0.0
      %2081 = vmatpush2.msra.mxu0 0.0
      %2082 = vmatprep.subr.mxu0 0.0
      %2083 = vmatpush2.msra.mxu0 0.0
      %2084 = vmatprep.subr.mxu0 0.0
      %2085 = vmatpush2.msra.mxu0 0.0
      %2086 = vmatprep.subr.mxu0 0.0
      %2087 = vmatpush2.msra.mxu0 0.0
      %2088 = vmatprep.subr.mxu0 0.0
      %2089 = vmatpush2.msra.mxu0 0.0
      %2090 = vmatprep.mubr.f32.mxu0 0.0
      %2091 = vmatmul.mubr.f32.gmra.mxu0 %v2003
      %v2092 = vpop.f32.mrf.mxu0
      %v2093 = vadd.f32 0.0, %v2092
      %v2094 = vpop.f32.mrf.mxu0
      %2095 = vmatprep.mubr.f32.mxu0 0.0
      %2096 = vmatmul.mubr.f32.gmra.mxu0 %v2006
      %v2097 = vpop.f32.mrf.mxu0
      %v2098 = vadd.f32 0.0, %v2097
      %v2099 = vpop.f32.mrf.mxu0
      %2100 = vmatprep.mubr.f32.mxu0 0.0
      %2101 = vmatmul.mubr.f32.gmra.mxu0 %v2009
      %v2102 = vpop.f32.mrf.mxu0
      %v2103 = vadd.f32 0.0, %v2102
      %v2104 = vpop.f32.mrf.mxu0
      %2105 = vmatprep.mubr.f32.mxu0 0.0
      %2106 = vmatmul.mubr.f32.gmra.mxu0 %v2012
      %v2107 = vpop.f32.mrf.mxu0
      %v2108 = vadd.f32 0.0, %v2107
      %v2109 = vpop.f32.mrf.mxu0
      %2110 = vmatprep.mubr.f32.mxu0 0.0
      %2111 = vmatmul.mubr.f32.gmra.mxu0 %v2015
      %v2112 = vpop.f32.mrf.mxu0
      %v2113 = vadd.f32 0.0, %v2112
      %v2114 = vpop.f32.mrf.mxu0
      %2115 = vmatprep.mubr.f32.mxu0 0.0
      %2116 = vmatmul.mubr.f32.gmra.mxu0 %v2018
      %v2117 = vpop.f32.mrf.mxu0
      %v2118 = vadd.f32 0.0, %v2117
      %v2119 = vpop.f32.mrf.mxu0
      %2120 = vmatprep.mubr.f32.mxu0 0.0
      %2121 = vmatmul.mubr.f32.gmra.mxu0 %v2021
      %v2122 = vpop.f32.mrf.mxu0
      %v2123 = vadd.f32 0.0, %v2122
      %v2124 = vpop.f32.mrf.mxu0
      %2125 = vmatprep.mubr.f32.mxu0 0.0
      %2126 = vmatmul.mubr.f32.gmra.mxu0 %v2024
      %v2127 = vpop.f32.mrf.mxu0
      %v2128 = vadd.f32 0.0, %v2127
      %v2129 = vpop.f32.mrf.mxu0
      %2130 = vdwg.mxu0
      %v2131 = vrcp.pop %v1956
      %v2132 = vrcp.pop %v1959
      %v2133 = vrcp.pop %v1962
      %v2134 = vrcp.pop %v1965
      %v2135 = vrcp.pop %v1968
      %v2136 = vrcp.pop %v1971
      %v2137 = vrcp.pop %v1974
      %v2138 = vrcp.pop %v1977
      %v2139 = vmul.f32 %v2093, %v2131
      %v2140 = vmul.f32 %v2098, %v2132
      %v2141 = vmul.f32 %v2103, %v2133
      %v2142 = vmul.f32 %v2108, %v2134
      %v2143 = vmul.f32 %v2113, %v2135
      %v2144 = vmul.f32 %v2118, %v2136
      %v2145 = vmul.f32 %v2123, %v2137
      %v2146 = vmul.f32 %v2128, %v2138
      %v2147 = vld [vmem:[%s4 + $0x10] sm:$0xff]
      %v2149 = vsel %vm679, %v2139, 0
      %v2152 = vsel %vm679, %v2140, 0
      %v2155 = vsel %vm679, %v2141, 0
      %v2158 = vsel %vm679, %v2142, 0
      %v2161 = vsel %vm679, %v2143, 0
      %v2164 = vsel %vm679, %v2144, 0
      %v2167 = vsel %vm679, %v2145, 0
      %v2170 = vsel %vm679, %v2146, 0
      %2172 = vmatprep.subr.mxu0 0.0
      %2173 = vmatpush1.msra.mxu0 0.0
      %2174 = vmatprep.subr.mxu0 0.0
      %2175 = vmatpush1.msra.mxu0 0.0
      %2176 = vmatprep.subr.mxu0 0.0
      %2177 = vmatpush1.msra.mxu0 0.0
      %2178 = vmatprep.subr.mxu0 0.0
      %2179 = vmatpush1.msra.mxu0 0.0
      %2180 = vmatprep.subr.mxu0 0.0
      %2181 = vmatpush1.msra.mxu0 0.0
      %2182 = vmatprep.subr.mxu0 0.0
      %2183 = vmatpush1.msra.mxu0 0.0
      %2184 = vmatprep.subr.mxu0 0.0
      %2185 = vmatpush1.msra.mxu0 0.0
      %2186 = vmatprep.subr.mxu0 0.0
      %2187 = vmatpush1.msra.mxu0 0.0
      %2188 = vmatprep.subr.mxu0 0.0
      %2189 = vmatpush1.msra.mxu0 0.0
      %2190 = vmatprep.subr.mxu0 0.0
      %2191 = vmatpush1.msra.mxu0 0.0
      %2192 = vmatprep.subr.mxu0 0.0
      %2193 = vmatpush1.msra.mxu0 0.0
      %2194 = vmatprep.subr.mxu0 0.0
      %2195 = vmatpush1.msra.mxu0 0.0
      %2196 = vmatprep.subr.mxu0 0.0
      %2197 = vmatpush1.msra.mxu0 0.0
      %2198 = vmatprep.subr.mxu0 0.0
      %2199 = vmatpush1.msra.mxu0 0.0
      %2200 = vmatprep.subr.mxu0 0.0
      %2201 = vmatpush1.msra.mxu0 0.0
      %2202 = vmatprep.subr.mxu0 0.0
      %2203 = vmatpush1.msra.mxu0 %v2147
      %2204 = vmatprep.subr.mxu0 0.0
      %2205 = vmatpush2.msra.mxu0 0.0
      %2206 = vmatprep.subr.mxu0 0.0
      %2207 = vmatpush2.msra.mxu0 0.0
      %2208 = vmatprep.subr.mxu0 0.0
      %2209 = vmatpush2.msra.mxu0 0.0
      %2210 = vmatprep.subr.mxu0 0.0
      %2211 = vmatpush2.msra.mxu0 0.0
      %2212 = vmatprep.subr.mxu0 0.0
      %2213 = vmatpush2.msra.mxu0 0.0
      %2214 = vmatprep.subr.mxu0 0.0
      %2215 = vmatpush2.msra.mxu0 0.0
      %2216 = vmatprep.subr.mxu0 0.0
      %2217 = vmatpush2.msra.mxu0 0.0
      %2218 = vmatprep.subr.mxu0 0.0
      %2219 = vmatpush2.msra.mxu0 0.0
      %2220 = vmatprep.subr.mxu0 0.0
      %2221 = vmatpush2.msra.mxu0 0.0
      %2222 = vmatprep.subr.mxu0 0.0
      %2223 = vmatpush2.msra.mxu0 0.0
      %2224 = vmatprep.subr.mxu0 0.0
      %2225 = vmatpush2.msra.mxu0 0.0
      %2226 = vmatprep.subr.mxu0 0.0
      %2227 = vmatpush2.msra.mxu0 0.0
      %2228 = vmatprep.subr.mxu0 0.0
      %2229 = vmatpush2.msra.mxu0 0.0
      %2230 = vmatprep.subr.mxu0 0.0
      %2231 = vmatpush2.msra.mxu0 0.0
      %2232 = vmatprep.subr.mxu0 0.0
      %2233 = vmatpush2.msra.mxu0 0.0
      %2234 = vmatprep.subr.mxu0 0.0
      %2235 = vmatpush2.msra.mxu0 0.0
      %2236 = vmatprep.mubr.f32.mxu0 0.0
      %2237 = vmatmul.mubr.f32.gmra.mxu0 %v2149
      %v2238 = vpop.f32.mrf.mxu0
      %v2239 = vadd.f32 0.0, %v2238
      %v2240 = vpop.f32.mrf.mxu0
      %2241 = vmatprep.mubr.f32.mxu0 0.0
      %2242 = vmatmul.mubr.f32.gmra.mxu0 %v2152
      %v2243 = vpop.f32.mrf.mxu0
      %v2244 = vadd.f32 0.0, %v2243
      %v2245 = vpop.f32.mrf.mxu0
      %2246 = vmatprep.mubr.f32.mxu0 0.0
      %2247 = vmatmul.mubr.f32.gmra.mxu0 %v2155
      %v2248 = vpop.f32.mrf.mxu0
      %v2249 = vadd.f32 0.0, %v2248
      %v2250 = vpop.f32.mrf.mxu0
      %2251 = vmatprep.mubr.f32.mxu0 0.0
      %2252 = vmatmul.mubr.f32.gmra.mxu0 %v2158
      %v2253 = vpop.f32.mrf.mxu0
      %v2254 = vadd.f32 0.0, %v2253
      %v2255 = vpop.f32.mrf.mxu0
      %2256 = vmatprep.mubr.f32.mxu0 0.0
      %2257 = vmatmul.mubr.f32.gmra.mxu0 %v2161
      %v2258 = vpop.f32.mrf.mxu0
      %v2259 = vadd.f32 0.0, %v2258
      %v2260 = vpop.f32.mrf.mxu0
      %2261 = vmatprep.mubr.f32.mxu0 0.0
      %2262 = vmatmul.mubr.f32.gmra.mxu0 %v2164
      %v2263 = vpop.f32.mrf.mxu0
      %v2264 = vadd.f32 0.0, %v2263
      %v2265 = vpop.f32.mrf.mxu0
      %2266 = vmatprep.mubr.f32.mxu0 0.0
      %2267 = vmatmul.mubr.f32.gmra.mxu0 %v2167
      %v2268 = vpop.f32.mrf.mxu0
      %v2269 = vadd.f32 0.0, %v2268
      %v2270 = vpop.f32.mrf.mxu0
      %2271 = vmatprep.mubr.f32.mxu0 0.0
      %2272 = vmatmul.mubr.f32.gmra.mxu0 %v2170
      %v2273 = vpop.f32.mrf.mxu0
      %v2274 = vadd.f32 0.0, %v2273
      %v2275 = vpop.f32.mrf.mxu0
      %2276 = vdwg.mxu0
      %v2277 = vadd.f32 %v1699, %v2239
      %v2278 = vadd.f32 %v1704, %v2244
      %v2279 = vadd.f32 %v1709, %v2249
      %v2280 = vadd.f32 %v1714, %v2254
      %v2281 = vadd.f32 %v1719, %v2259
      %v2282 = vadd.f32 %v1724, %v2264
      %v2283 = vadd.f32 %v1729, %v2269
      %v2284 = vadd.f32 %v1734, %v2274
      %2285 = vrot.lane.b32.xlu0 %v663, 104
      %v2286 = vpop.permute.xlu0 %2285
      %2287 = vrot.lane.b32.xlu0 %v664, 104
      %v2288 = vpop.permute.xlu0 %2287
      %2289 = vrot.lane.b32.xlu0 %v665, 104
      %v2290 = vpop.permute.xlu0 %2289
      %2291 = vrot.lane.b32.xlu0 %v666, 104
      %v2292 = vpop.permute.xlu0 %2291
      %2293 = vrot.lane.b32.xlu0 %v667, 104
      %v2294 = vpop.permute.xlu0 %2293
      %2295 = vrot.lane.b32.xlu0 %v668, 104
      %v2296 = vpop.permute.xlu0 %2295
      %2297 = vrot.lane.b32.xlu0 %v669, 104
      %v2298 = vpop.permute.xlu0 %2297
      %2299 = vrot.lane.b32.xlu0 %v670, 104
      %v2300 = vpop.permute.xlu0 %2299
      %2301 = vrot.lane.b32.xlu0 %v671, 104
      %v2302 = vpop.permute.xlu0 %2301
      %2303 = vrot.lane.b32.xlu0 %v672, 104
      %v2304 = vpop.permute.xlu0 %2303
      %2305 = vrot.lane.b32.xlu0 %v673, 104
      %v2306 = vpop.permute.xlu0 %2305
      %2307 = vrot.lane.b32.xlu0 %v674, 104
      %v2308 = vpop.permute.xlu0 %2307
      %2309 = vrot.lane.b32.xlu0 %v675, 104
      %v2310 = vpop.permute.xlu0 %2309
      %2311 = vrot.lane.b32.xlu0 %v676, 104
      %v2312 = vpop.permute.xlu0 %2311
      %2313 = vrot.lane.b32.xlu0 %v677, 104
      %v2314 = vpop.permute.xlu0 %2313
      %2315 = vrot.lane.b32.xlu0 %v678, 104
      %v2316 = vpop.permute.xlu0 %2315
      %v2317 = vsel %vm679, %v2286, 0
      %v2319 = vsel %vm679, %v2288, 0
      %v2321 = vsel %vm679, %v2290, 0
      %v2323 = vsel %vm679, %v2292, 0
      %v2325 = vsel %vm679, %v2294, 0
      %v2327 = vsel %vm679, %v2296, 0
      %v2329 = vsel %vm679, %v2298, 0
      %v2331 = vsel %vm679, %v2300, 0
      %v2333 = vsel %vm679, %v2302, 0
      %v2335 = vsel %vm679, %v2304, 0
      %v2337 = vsel %vm679, %v2306, 0
      %v2339 = vsel %vm679, %v2308, 0
      %v2341 = vsel %vm679, %v2310, 0
      %v2343 = vsel %vm679, %v2312, 0
      %v2345 = vsel %vm679, %v2314, 0
      %v2347 = vsel %vm679, %v2316, 0
      %2349 = vmatprep.subr.mxu0 0.0
      %2350 = vmatpush1.xpose.msra.mxu0 0.0
      %2351 = vmatprep.subr.mxu0 0.0
      %2352 = vmatpush1.xpose.msra.mxu0 0.0
      %2353 = vmatprep.subr.mxu0 0.0
      %2354 = vmatpush1.xpose.msra.mxu0 0.0
      %2355 = vmatprep.subr.mxu0 0.0
      %2356 = vmatpush1.xpose.msra.mxu0 0.0
      %2357 = vmatprep.subr.mxu0 0.0
      %2358 = vmatpush1.xpose.msra.mxu0 0.0
      %2359 = vmatprep.subr.mxu0 0.0
      %2360 = vmatpush1.xpose.msra.mxu0 0.0
      %2361 = vmatprep.subr.mxu0 0.0
      %2362 = vmatpush1.xpose.msra.mxu0 0.0
      %2363 = vmatprep.subr.mxu0 0.0
      %2364 = vmatpush1.xpose.msra.mxu0 0.0
      %2365 = vmatprep.subr.mxu0 0.0
      %2366 = vmatpush1.xpose.msra.mxu0 %v2347
      %2367 = vmatprep.subr.mxu0 0.0
      %2368 = vmatpush1.xpose.msra.mxu0 %v2345
      %2369 = vmatprep.subr.mxu0 0.0
      %2370 = vmatpush1.xpose.msra.mxu0 %v2343
      %2371 = vmatprep.subr.mxu0 0.0
      %2372 = vmatpush1.xpose.msra.mxu0 %v2341
      %2373 = vmatprep.subr.mxu0 0.0
      %2374 = vmatpush1.xpose.msra.mxu0 %v2339
      %2375 = vmatprep.subr.mxu0 0.0
      %2376 = vmatpush1.xpose.msra.mxu0 %v2337
      %2377 = vmatprep.subr.mxu0 0.0
      %2378 = vmatpush1.xpose.msra.mxu0 %v2335
      %2379 = vmatprep.subr.mxu0 0.0
      %2380 = vmatpush1.xpose.msra.mxu0 %v2333
      %2381 = vmatprep.subr.mxu0 0.0
      %2382 = vmatpush2.xpose.msra.mxu0 0.0
      %2383 = vmatprep.subr.mxu0 0.0
      %2384 = vmatpush2.xpose.msra.mxu0 0.0
      %2385 = vmatprep.subr.mxu0 0.0
      %2386 = vmatpush2.xpose.msra.mxu0 0.0
      %2387 = vmatprep.subr.mxu0 0.0
      %2388 = vmatpush2.xpose.msra.mxu0 0.0
      %2389 = vmatprep.subr.mxu0 0.0
      %2390 = vmatpush2.xpose.msra.mxu0 0.0
      %2391 = vmatprep.subr.mxu0 0.0
      %2392 = vmatpush2.xpose.msra.mxu0 0.0
      %2393 = vmatprep.subr.mxu0 0.0
      %2394 = vmatpush2.xpose.msra.mxu0 0.0
      %2395 = vmatprep.subr.mxu0 0.0
      %2396 = vmatpush2.xpose.msra.mxu0 0.0
      %2397 = vmatprep.subr.mxu0 0.0
      %2398 = vmatpush2.xpose.msra.mxu0 0.0
      %2399 = vmatprep.subr.mxu0 0.0
      %2400 = vmatpush2.xpose.msra.mxu0 0.0
      %2401 = vmatprep.subr.mxu0 0.0
      %2402 = vmatpush2.xpose.msra.mxu0 0.0
      %2403 = vmatprep.subr.mxu0 0.0
      %2404 = vmatpush2.xpose.msra.mxu0 0.0
      %2405 = vmatprep.subr.mxu0 0.0
      %2406 = vmatpush2.xpose.msra.mxu0 0.0
      %2407 = vmatprep.subr.mxu0 0.0
      %2408 = vmatpush2.xpose.msra.mxu0 0.0
      %2409 = vmatprep.subr.mxu0 0.0
      %2410 = vmatpush2.xpose.msra.mxu0 0.0
      %2411 = vmatprep.subr.mxu0 0.0
      %2412 = vmatpush2.xpose.msra.mxu0 0.0
      %2413 = vmatprep.mubr.f32.mxu0 0.0
      %2414 = vmatmul.mubr.f32.gmra.mxu0 %v2317
      %v2415 = vpop.f32.mrf.mxu0
      %v2416 = vadd.f32 0.0, %v2415
      %v2417 = vpop.f32.mrf.mxu0
      %2418 = vmatprep.mubr.f32.mxu0 0.0
      %2419 = vmatmul.mubr.f32.gmra.mxu0 %v2319
      %v2420 = vpop.f32.mrf.mxu0
      %v2421 = vadd.f32 0.0, %v2420
      %v2422 = vpop.f32.mrf.mxu0
      %2423 = vmatprep.mubr.f32.mxu0 0.0
      %2424 = vmatmul.mubr.f32.gmra.mxu0 %v2321
      %v2425 = vpop.f32.mrf.mxu0
      %v2426 = vadd.f32 0.0, %v2425
      %v2427 = vpop.f32.mrf.mxu0
      %2428 = vmatprep.mubr.f32.mxu0 0.0
      %2429 = vmatmul.mubr.f32.gmra.mxu0 %v2323
      %v2430 = vpop.f32.mrf.mxu0
      %v2431 = vadd.f32 0.0, %v2430
      %v2432 = vpop.f32.mrf.mxu0
      %2433 = vmatprep.mubr.f32.mxu0 0.0
      %2434 = vmatmul.mubr.f32.gmra.mxu0 %v2325
      %v2435 = vpop.f32.mrf.mxu0
      %v2436 = vadd.f32 0.0, %v2435
      %v2437 = vpop.f32.mrf.mxu0
      %2438 = vmatprep.mubr.f32.mxu0 0.0
      %2439 = vmatmul.mubr.f32.gmra.mxu0 %v2327
      %v2440 = vpop.f32.mrf.mxu0
      %v2441 = vadd.f32 0.0, %v2440
      %v2442 = vpop.f32.mrf.mxu0
      %2443 = vmatprep.mubr.f32.mxu0 0.0
      %2444 = vmatmul.mubr.f32.gmra.mxu0 %v2329
      %v2445 = vpop.f32.mrf.mxu0
      %v2446 = vadd.f32 0.0, %v2445
      %v2447 = vpop.f32.mrf.mxu0
      %2448 = vmatprep.mubr.f32.mxu0 0.0
      %2449 = vmatmul.mubr.f32.gmra.mxu0 %v2331
      %v2450 = vpop.f32.mrf.mxu0
      %v2451 = vadd.f32 0.0, %v2450
      %v2452 = vpop.f32.mrf.mxu0
      %2453 = vdwg.mxu0
      %v2454 = vsel %vm833, %v2416, -inf
      %2455 = vmax.xlane.f32.xlu0 %v2454
      %v2456 = vpop.xlane.xlu0 %2455
      %v2457 = vsel %vm833, %v2421, -inf
      %2458 = vmax.xlane.f32.xlu0 %v2457
      %v2459 = vpop.xlane.xlu0 %2458
      %v2460 = vsel %vm833, %v2426, -inf
      %2461 = vmax.xlane.f32.xlu0 %v2460
      %v2462 = vpop.xlane.xlu0 %2461
      %v2463 = vsel %vm833, %v2431, -inf
      %2464 = vmax.xlane.f32.xlu0 %v2463
      %v2465 = vpop.xlane.xlu0 %2464
      %v2466 = vsel %vm833, %v2436, -inf
      %2467 = vmax.xlane.f32.xlu0 %v2466
      %v2468 = vpop.xlane.xlu0 %2467
      %v2469 = vsel %vm833, %v2441, -inf
      %2470 = vmax.xlane.f32.xlu0 %v2469
      %v2471 = vpop.xlane.xlu0 %2470
      %v2472 = vsel %vm833, %v2446, -inf
      %2473 = vmax.xlane.f32.xlu0 %v2472
      %v2474 = vpop.xlane.xlu0 %2473
      %v2475 = vsel %vm833, %v2451, -inf
      %2476 = vmax.xlane.f32.xlu0 %v2475
      %v2477 = vpop.xlane.xlu0 %2476
      %v2478 = vsub.f32 %v2416, %v2456
      %v2479 = vsub.f32 %v2421, %v2459
      %v2480 = vsub.f32 %v2426, %v2462
      %v2481 = vsub.f32 %v2431, %v2465
      %v2482 = vsub.f32 %v2436, %v2468
      %v2483 = vsub.f32 %v2441, %v2471
      %v2484 = vsub.f32 %v2446, %v2474
      %v2485 = vsub.f32 %v2451, %v2477
      %v2486 = vmul.f32 %v2478, 1.442695
      %v2487 = vpow.pop %v2486
      %v2488 = vmul.f32 %v2479, 1.442695
      %v2489 = vpow.pop %v2488
      %v2490 = vmul.f32 %v2480, 1.442695
      %v2491 = vpow.pop %v2490
      %v2492 = vmul.f32 %v2481, 1.442695
      %v2493 = vpow.pop %v2492
      %v2494 = vmul.f32 %v2482, 1.442695
      %v2495 = vpow.pop %v2494
      %v2496 = vmul.f32 %v2483, 1.442695
      %v2497 = vpow.pop %v2496
      %v2498 = vmul.f32 %v2484, 1.442695
      %v2499 = vpow.pop %v2498
      %v2500 = vmul.f32 %v2485, 1.442695
      %v2501 = vpow.pop %v2500
      %v2502 = vsel %vm833, %v2487, 0.0
      %2503 = vadd.xlane.f32.xlu0 %v2502
      %v2504 = vpop.xlane.xlu0 %2503
      %v2505 = vsel %vm833, %v2489, 0.0
      %2506 = vadd.xlane.f32.xlu0 %v2505
      %v2507 = vpop.xlane.xlu0 %2506
      %v2508 = vsel %vm833, %v2491, 0.0
      %2509 = vadd.xlane.f32.xlu0 %v2508
      %v2510 = vpop.xlane.xlu0 %2509
      %v2511 = vsel %vm833, %v2493, 0.0
      %2512 = vadd.xlane.f32.xlu0 %v2511
      %v2513 = vpop.xlane.xlu0 %2512
      %v2514 = vsel %vm833, %v2495, 0.0
      %2515 = vadd.xlane.f32.xlu0 %v2514
      %v2516 = vpop.xlane.xlu0 %2515
      %v2517 = vsel %vm833, %v2497, 0.0
      %2518 = vadd.xlane.f32.xlu0 %v2517
      %v2519 = vpop.xlane.xlu0 %2518
      %v2520 = vsel %vm833, %v2499, 0.0
      %2521 = vadd.xlane.f32.xlu0 %v2520
      %v2522 = vpop.xlane.xlu0 %2521
      %v2523 = vsel %vm833, %v2501, 0.0
      %2524 = vadd.xlane.f32.xlu0 %v2523
      %v2525 = vpop.xlane.xlu0 %2524
      %2526 = vrot.lane.b32.xlu0 %v906, 104
      %v2527 = vpop.permute.xlu0 %2526
      %2528 = vrot.lane.b32.xlu0 %v907, 104
      %v2529 = vpop.permute.xlu0 %2528
      %2530 = vrot.lane.b32.xlu0 %v908, 104
      %v2531 = vpop.permute.xlu0 %2530
      %2532 = vrot.lane.b32.xlu0 %v909, 104
      %v2533 = vpop.permute.xlu0 %2532
      %2534 = vrot.lane.b32.xlu0 %v910, 104
      %v2535 = vpop.permute.xlu0 %2534
      %2536 = vrot.lane.b32.xlu0 %v911, 104
      %v2537 = vpop.permute.xlu0 %2536
      %2538 = vrot.lane.b32.xlu0 %v912, 104
      %v2539 = vpop.permute.xlu0 %2538
      %2540 = vrot.lane.b32.xlu0 %v913, 104
      %v2541 = vpop.permute.xlu0 %2540
      %v2551 = vsel %vm833, %v2487, 0
      %v2554 = vsel %vm833, %v2489, 0
      %v2557 = vsel %vm833, %v2491, 0
      %v2560 = vsel %vm833, %v2493, 0
      %v2563 = vsel %vm833, %v2495, 0
      %v2566 = vsel %vm833, %v2497, 0
      %v2569 = vsel %vm833, %v2499, 0
      %v2572 = vsel %vm833, %v2501, 0
      %2574 = vmatprep.subr.mxu0 0.0
      %2575 = vmatpush1.msra.mxu0 0.0
      %2576 = vmatprep.subr.mxu0 0.0
      %2577 = vmatpush1.msra.mxu0 0.0
      %2578 = vmatprep.subr.mxu0 0.0
      %2579 = vmatpush1.msra.mxu0 0.0
      %2580 = vmatprep.subr.mxu0 0.0
      %2581 = vmatpush1.msra.mxu0 0.0
      %2582 = vmatprep.subr.mxu0 0.0
      %2583 = vmatpush1.msra.mxu0 0.0
      %2584 = vmatprep.subr.mxu0 0.0
      %2585 = vmatpush1.msra.mxu0 0.0
      %2586 = vmatprep.subr.mxu0 0.0
      %2587 = vmatpush1.msra.mxu0 0.0
      %2588 = vmatprep.subr.mxu0 0.0
      %2589 = vmatpush1.msra.mxu0 0.0
      %2590 = vmatprep.subr.mxu0 0.0
      %2591 = vmatpush1.msra.mxu0 %v2541
      %2592 = vmatprep.subr.mxu0 0.0
      %2593 = vmatpush1.msra.mxu0 %v2539
      %2594 = vmatprep.subr.mxu0 0.0
      %2595 = vmatpush1.msra.mxu0 %v2537
      %2596 = vmatprep.subr.mxu0 0.0
      %2597 = vmatpush1.msra.mxu0 %v2535
      %2598 = vmatprep.subr.mxu0 0.0
      %2599 = vmatpush1.msra.mxu0 %v2533
      %2600 = vmatprep.subr.mxu0 0.0
      %2601 = vmatpush1.msra.mxu0 %v2531
      %2602 = vmatprep.subr.mxu0 0.0
      %2603 = vmatpush1.msra.mxu0 %v2529
      %2604 = vmatprep.subr.mxu0 0.0
      %2605 = vmatpush1.msra.mxu0 %v2527
      %2606 = vmatprep.subr.mxu0 0.0
      %2607 = vmatpush2.msra.mxu0 0.0
      %2608 = vmatprep.subr.mxu0 0.0
      %2609 = vmatpush2.msra.mxu0 0.0
      %2610 = vmatprep.subr.mxu0 0.0
      %2611 = vmatpush2.msra.mxu0 0.0
      %2612 = vmatprep.subr.mxu0 0.0
      %2613 = vmatpush2.msra.mxu0 0.0
      %2614 = vmatprep.subr.mxu0 0.0
      %2615 = vmatpush2.msra.mxu0 0.0
      %2616 = vmatprep.subr.mxu0 0.0
      %2617 = vmatpush2.msra.mxu0 0.0
      %2618 = vmatprep.subr.mxu0 0.0
      %2619 = vmatpush2.msra.mxu0 0.0
      %2620 = vmatprep.subr.mxu0 0.0
      %2621 = vmatpush2.msra.mxu0 0.0
      %2622 = vmatprep.subr.mxu0 0.0
      %2623 = vmatpush2.msra.mxu0 0.0
      %2624 = vmatprep.subr.mxu0 0.0
      %2625 = vmatpush2.msra.mxu0 0.0
      %2626 = vmatprep.subr.mxu0 0.0
      %2627 = vmatpush2.msra.mxu0 0.0
      %2628 = vmatprep.subr.mxu0 0.0
      %2629 = vmatpush2.msra.mxu0 0.0
      %2630 = vmatprep.subr.mxu0 0.0
      %2631 = vmatpush2.msra.mxu0 0.0
      %2632 = vmatprep.subr.mxu0 0.0
      %2633 = vmatpush2.msra.mxu0 0.0
      %2634 = vmatprep.subr.mxu0 0.0
      %2635 = vmatpush2.msra.mxu0 0.0
      %2636 = vmatprep.subr.mxu0 0.0
      %2637 = vmatpush2.msra.mxu0 0.0
      %2638 = vmatprep.mubr.f32.mxu0 0.0
      %2639 = vmatmul.mubr.f32.gmra.mxu0 %v2551
      %v2640 = vpop.f32.mrf.mxu0
      %v2641 = vadd.f32 0.0, %v2640
      %v2642 = vpop.f32.mrf.mxu0
      %2643 = vmatprep.mubr.f32.mxu0 0.0
      %2644 = vmatmul.mubr.f32.gmra.mxu0 %v2554
      %v2645 = vpop.f32.mrf.mxu0
      %v2646 = vadd.f32 0.0, %v2645
      %v2647 = vpop.f32.mrf.mxu0
      %2648 = vmatprep.mubr.f32.mxu0 0.0
      %2649 = vmatmul.mubr.f32.gmra.mxu0 %v2557
      %v2650 = vpop.f32.mrf.mxu0
      %v2651 = vadd.f32 0.0, %v2650
      %v2652 = vpop.f32.mrf.mxu0
      %2653 = vmatprep.mubr.f32.mxu0 0.0
      %2654 = vmatmul.mubr.f32.gmra.mxu0 %v2560
      %v2655 = vpop.f32.mrf.mxu0
      %v2656 = vadd.f32 0.0, %v2655
      %v2657 = vpop.f32.mrf.mxu0
      %2658 = vmatprep.mubr.f32.mxu0 0.0
      %2659 = vmatmul.mubr.f32.gmra.mxu0 %v2563
      %v2660 = vpop.f32.mrf.mxu0
      %v2661 = vadd.f32 0.0, %v2660
      %v2662 = vpop.f32.mrf.mxu0
      %2663 = vmatprep.mubr.f32.mxu0 0.0
      %2664 = vmatmul.mubr.f32.gmra.mxu0 %v2566
      %v2665 = vpop.f32.mrf.mxu0
      %v2666 = vadd.f32 0.0, %v2665
      %v2667 = vpop.f32.mrf.mxu0
      %2668 = vmatprep.mubr.f32.mxu0 0.0
      %2669 = vmatmul.mubr.f32.gmra.mxu0 %v2569
      %v2670 = vpop.f32.mrf.mxu0
      %v2671 = vadd.f32 0.0, %v2670
      %v2672 = vpop.f32.mrf.mxu0
      %2673 = vmatprep.mubr.f32.mxu0 0.0
      %2674 = vmatmul.mubr.f32.gmra.mxu0 %v2572
      %v2675 = vpop.f32.mrf.mxu0
      %v2676 = vadd.f32 0.0, %v2675
      %v2677 = vpop.f32.mrf.mxu0
      %2678 = vdwg.mxu0
      %v2679 = vrcp.pop %v2504
      %v2680 = vrcp.pop %v2507
      %v2681 = vrcp.pop %v2510
      %v2682 = vrcp.pop %v2513
      %v2683 = vrcp.pop %v2516
      %v2684 = vrcp.pop %v2519
      %v2685 = vrcp.pop %v2522
      %v2686 = vrcp.pop %v2525
      %v2687 = vmul.f32 %v2641, %v2679
      %v2688 = vmul.f32 %v2646, %v2680
      %v2689 = vmul.f32 %v2651, %v2681
      %v2690 = vmul.f32 %v2656, %v2682
      %v2691 = vmul.f32 %v2661, %v2683
      %v2692 = vmul.f32 %v2666, %v2684
      %v2693 = vmul.f32 %v2671, %v2685
      %v2694 = vmul.f32 %v2676, %v2686
      %v2695 = vld [vmem:[%s4 + $0x18] sm:$0xff]
      %v2697 = vsel %vm679, %v2687, 0
      %v2700 = vsel %vm679, %v2688, 0
      %v2703 = vsel %vm679, %v2689, 0
      %v2706 = vsel %vm679, %v2690, 0
      %v2709 = vsel %vm679, %v2691, 0
      %v2712 = vsel %vm679, %v2692, 0
      %v2715 = vsel %vm679, %v2693, 0
      %v2718 = vsel %vm679, %v2694, 0
      %2720 = vmatprep.subr.mxu0 0.0
      %2721 = vmatpush1.msra.mxu0 0.0
      %2722 = vmatprep.subr.mxu0 0.0
      %2723 = vmatpush1.msra.mxu0 0.0
      %2724 = vmatprep.subr.mxu0 0.0
      %2725 = vmatpush1.msra.mxu0 0.0
      %2726 = vmatprep.subr.mxu0 0.0
      %2727 = vmatpush1.msra.mxu0 0.0
      %2728 = vmatprep.subr.mxu0 0.0
      %2729 = vmatpush1.msra.mxu0 0.0
      %2730 = vmatprep.subr.mxu0 0.0
      %2731 = vmatpush1.msra.mxu0 0.0
      %2732 = vmatprep.subr.mxu0 0.0
      %2733 = vmatpush1.msra.mxu0 0.0
      %2734 = vmatprep.subr.mxu0 0.0
      %2735 = vmatpush1.msra.mxu0 0.0
      %2736 = vmatprep.subr.mxu0 0.0
      %2737 = vmatpush1.msra.mxu0 0.0
      %2738 = vmatprep.subr.mxu0 0.0
      %2739 = vmatpush1.msra.mxu0 0.0
      %2740 = vmatprep.subr.mxu0 0.0
      %2741 = vmatpush1.msra.mxu0 0.0
      %2742 = vmatprep.subr.mxu0 0.0
      %2743 = vmatpush1.msra.mxu0 0.0
      %2744 = vmatprep.subr.mxu0 0.0
      %2745 = vmatpush1.msra.mxu0 0.0
      %2746 = vmatprep.subr.mxu0 0.0
      %2747 = vmatpush1.msra.mxu0 0.0
      %2748 = vmatprep.subr.mxu0 0.0
      %2749 = vmatpush1.msra.mxu0 0.0
      %2750 = vmatprep.subr.mxu0 0.0
      %2751 = vmatpush1.msra.mxu0 %v2695
      %2752 = vmatprep.subr.mxu0 0.0
      %2753 = vmatpush2.msra.mxu0 0.0
      %2754 = vmatprep.subr.mxu0 0.0
      %2755 = vmatpush2.msra.mxu0 0.0
      %2756 = vmatprep.subr.mxu0 0.0
      %2757 = vmatpush2.msra.mxu0 0.0
      %2758 = vmatprep.subr.mxu0 0.0
      %2759 = vmatpush2.msra.mxu0 0.0
      %2760 = vmatprep.subr.mxu0 0.0
      %2761 = vmatpush2.msra.mxu0 0.0
      %2762 = vmatprep.subr.mxu0 0.0
      %2763 = vmatpush2.msra.mxu0 0.0
      %2764 = vmatprep.subr.mxu0 0.0
      %2765 = vmatpush2.msra.mxu0 0.0
      %2766 = vmatprep.subr.mxu0 0.0
      %2767 = vmatpush2.msra.mxu0 0.0
      %2768 = vmatprep.subr.mxu0 0.0
      %2769 = vmatpush2.msra.mxu0 0.0
      %2770 = vmatprep.subr.mxu0 0.0
      %2771 = vmatpush2.msra.mxu0 0.0
      %2772 = vmatprep.subr.mxu0 0.0
      %2773 = vmatpush2.msra.mxu0 0.0
      %2774 = vmatprep.subr.mxu0 0.0
      %2775 = vmatpush2.msra.mxu0 0.0
      %2776 = vmatprep.subr.mxu0 0.0
      %2777 = vmatpush2.msra.mxu0 0.0
      %2778 = vmatprep.subr.mxu0 0.0
      %2779 = vmatpush2.msra.mxu0 0.0
      %2780 = vmatprep.subr.mxu0 0.0
      %2781 = vmatpush2.msra.mxu0 0.0
      %2782 = vmatprep.subr.mxu0 0.0
      %2783 = vmatpush2.msra.mxu0 0.0
      %2784 = vmatprep.mubr.f32.mxu0 0.0
      %2785 = vmatmul.mubr.f32.gmra.mxu0 %v2697
      %v2786 = vpop.f32.mrf.mxu0
      %v2787 = vadd.f32 0.0, %v2786
      %v2788 = vpop.f32.mrf.mxu0
      %2789 = vmatprep.mubr.f32.mxu0 0.0
      %2790 = vmatmul.mubr.f32.gmra.mxu0 %v2700
      %v2791 = vpop.f32.mrf.mxu0
      %v2792 = vadd.f32 0.0, %v2791
      %v2793 = vpop.f32.mrf.mxu0
      %2794 = vmatprep.mubr.f32.mxu0 0.0
      %2795 = vmatmul.mubr.f32.gmra.mxu0 %v2703
      %v2796 = vpop.f32.mrf.mxu0
      %v2797 = vadd.f32 0.0, %v2796
      %v2798 = vpop.f32.mrf.mxu0
      %2799 = vmatprep.mubr.f32.mxu0 0.0
      %2800 = vmatmul.mubr.f32.gmra.mxu0 %v2706
      %v2801 = vpop.f32.mrf.mxu0
      %v2802 = vadd.f32 0.0, %v2801
      %v2803 = vpop.f32.mrf.mxu0
      %2804 = vmatprep.mubr.f32.mxu0 0.0
      %2805 = vmatmul.mubr.f32.gmra.mxu0 %v2709
      %v2806 = vpop.f32.mrf.mxu0
      %v2807 = vadd.f32 0.0, %v2806
      %v2808 = vpop.f32.mrf.mxu0
      %2809 = vmatprep.mubr.f32.mxu0 0.0
      %2810 = vmatmul.mubr.f32.gmra.mxu0 %v2712
      %v2811 = vpop.f32.mrf.mxu0
      %v2812 = vadd.f32 0.0, %v2811
      %v2813 = vpop.f32.mrf.mxu0
      %2814 = vmatprep.mubr.f32.mxu0 0.0
      %2815 = vmatmul.mubr.f32.gmra.mxu0 %v2715
      %v2816 = vpop.f32.mrf.mxu0
      %v2817 = vadd.f32 0.0, %v2816
      %v2818 = vpop.f32.mrf.mxu0
      %2819 = vmatprep.mubr.f32.mxu0 0.0
      %2820 = vmatmul.mubr.f32.gmra.mxu0 %v2718
      %v2821 = vpop.f32.mrf.mxu0
      %v2822 = vadd.f32 0.0, %v2821
      %v2823 = vpop.f32.mrf.mxu0
      %2824 = vdwg.mxu0
      %v2825 = vadd.f32 %v2277, %v2787
      %v2826 = vadd.f32 %v2278, %v2792
      %v2827 = vadd.f32 %v2279, %v2797
      %v2828 = vadd.f32 %v2280, %v2802
      %v2829 = vadd.f32 %v2281, %v2807
      %v2830 = vadd.f32 %v2282, %v2812
      %v2831 = vadd.f32 %v2283, %v2817
      %v2832 = vadd.f32 %v2284, %v2822
      %v2833 = vmul.f32 %v521, 0.7
      %v2834 = vmul.f32 %v522, 0.7
      %v2835 = vmul.f32 %v523, 0.7
      %v2836 = vmul.f32 %v524, 0.7
      %v2837 = vmul.f32 %v525, 0.7
      %v2838 = vmul.f32 %v526, 0.7
      %v2839 = vmul.f32 %v527, 0.7
      %v2840 = vmul.f32 %v528, 0.7
      %v2841 = vmul.f32 %v2825, 0.3
      %v2842 = vmul.f32 %v2826, 0.3
      %v2843 = vmul.f32 %v2827, 0.3
      %v2844 = vmul.f32 %v2828, 0.3
      %v2845 = vmul.f32 %v2829, 0.3
      %v2846 = vmul.f32 %v2830, 0.3
      %v2847 = vmul.f32 %v2831, 0.3
      %v2848 = vmul.f32 %v2832, 0.3
      %v2849 = vadd.f32 %v2833, %v2841
      %v2850 = vadd.f32 %v2834, %v2842
      %v2851 = vadd.f32 %v2835, %v2843
      %v2852 = vadd.f32 %v2836, %v2844
      %v2853 = vadd.f32 %v2837, %v2845
      %v2854 = vadd.f32 %v2838, %v2846
      %v2855 = vadd.f32 %v2839, %v2847
      %v2856 = vadd.f32 %v2840, %v2848
      %v2857 = vmul.f32 %v2849, 1.3130643
      %v2858 = vmul.f32 %v2850, 1.3130643
      %v2859 = vmul.f32 %v2851, 1.3130643
      %v2860 = vmul.f32 %v2852, 1.3130643
      %v2861 = vmul.f32 %v2853, 1.3130643
      %v2862 = vmul.f32 %v2854, 1.3130643
      %v2863 = vmul.f32 %v2855, 1.3130643
      %v2864 = vmul.f32 %v2856, 1.3130643
      %2865 = vst.msk [vmem:[%s246] sm:$0xff] %vm533, %v2857
      %2866 = vst.msk [vmem:[%s246 + $0x8] sm:$0xff] %vm533, %v2858
      %2867 = vst.msk [vmem:[%s246 + $0x10] sm:$0xff] %vm533, %v2859
      %2868 = vst.msk [vmem:[%s246 + $0x18] sm:$0xff] %vm533, %v2860
      %2869 = vst.msk [vmem:[%s246 + $0x20] sm:$0xff] %vm533, %v2861
      %2870 = vst.msk [vmem:[%s246 + $0x28] sm:$0xff] %vm533, %v2862
      %2871 = vst.msk [vmem:[%s246 + $0x30] sm:$0xff] %vm533, %v2863
      %2872 = vst.msk [vmem:[%s246 + $0x38] sm:$0xff] %vm533, %v2864
      %s2873 = smul.u32 8, %s21
      %p2874 = scmp.lt.s32.totalorder %s20, 1
      %s2875 = scalar_select %p2874, %s20, 1
      %p2876 = scmp.lt.s32.totalorder %s2873, 7
      %s2877 = scalar_select %p2876, %s2873, 7
      %s2878 = smul.addr %s2875, 8
      %s2879 = sadd.s32 %s2877, %s2878
      %s2880 = smul.addr %s2879, 8
      %s2881 = scalar_lea.vmem %s5, %s2880
      // Predicated region
      $region45: #{tpu_custom_call.1} parent=39 // pred_check
        %p2882 = pneg %p158
      $region46: #{tpu_custom_call.1} parent=39 // pred_check_branch
        %2884 = sbr.rel (%p2882) target = $region48
      $region47: #{tpu_custom_call.1} parent=39 // pred_region
        %s2885 = smul.u32 8, %s21
      $region48: #{tpu_custom_call.1} parent=39 // pred_fallthru
        _
    $region40: #{tpu_custom_call.1} parent=5 // pred_fallthru
      _
    %p2886 = scmp.le.s32.totalorder 2, %s11
    // Predicated region
    $region49: #{tpu_custom_call.1} parent=5 // pred_check
      %p2887 = pneg %p2886
    $region50: #{tpu_custom_call.1} parent=5 // pred_check_branch
      %2889 = sbr.rel (%p2887) target = $region52
    $region51: #{tpu_custom_call.1} parent=5 // pred_region
      %s2890 = ssub.s32 %s11, 2
      // Predicated region
      $region53: #{tpu_custom_call.1} parent=51 // pred_check
        %p2891 = pneg %p164
      $region54: #{tpu_custom_call.1} parent=51 // pred_check_branch
        %2893 = sbr.rel (%p2891) target = $region56
      $region55: #{tpu_custom_call.1} parent=51 // pred_region
        %s2894 = smul.u32 8, %s23
        %p2895 = scmp.lt.s32.totalorder %s22, 1
        %s2896 = scalar_select %p2895, %s22, 1
        %p2897 = scmp.lt.s32.totalorder %s2894, 7
        %s2898 = scalar_select %p2897, %s2894, 7
        %s2899 = smul.addr %s2896, 8
        %s2900 = sadd.s32 %s2898, %s2899
        %s2901 = smul.addr %s2900, 8
        %s2902 = scalar_lea.vmem %s5, %s2901
      $region56: #{tpu_custom_call.1} parent=51 // pred_fallthru
        _
    $region52: #{tpu_custom_call.1} parent=5 // pred_fallthru
      _
  $region6: #{tpu_custom_call.1} parent=0 // loop_footer
    %s15 = sadd.s32 1, %s11
  $region7: #{tpu_custom_call.1} parent=0 // loop_footer_branch
    %10 = sbr.rel target = $region3
  $region8: #{tpu_custom_call.1} parent=0 // loop_exit
    _

</llo_original>
